<compile_context>
chip_gen: v7x
topology: tpu7x:2x2x1
jax: 0.10.0
libtpu: 0.0.40
codegen_flags: <defaults>
</compile_context>

<pallas_src>
import functools

import jax
import jax.numpy as jnp
from jax.experimental import pallas as pl
from jax.experimental.pallas import tpu as pltpu


def _flash_sa_kernel(gamma_ref, x_ref, q_ref, k_ref, v_ref, o_ref, m_sc, acc_sc,
                     *, tk, c, n_real, n_pad, bf16_exp):
    """One (batch, q-tile, kv-tile) grid step of flash self-attention.

    gamma_ref : SMEM (1,)          f32
    x_ref     : VMEM (tq, C)       f32   residual input (query rows)
    q_ref     : VMEM (tq, Cq)      bf16  pre-projected queries (this q tile)
    k_ref     : VMEM (N_pad, Cq)   bf16  pre-projected keys (whole batch row, resident)
    v_ref     : VMEM (N_pad, C+1)  bf16  pre-projected values with appended ones column
    o_ref     : VMEM (tq, C)       f32
    m_sc      : VMEM (tq, 1)       f32   running max
    acc_sc    : VMEM (tq, C+1)     f32   [unnormalized p@v | running sum l]
    """
    ki = pl.program_id(2)
    nk = pl.num_programs(2)

    # ---- per-q-tile init of the online-softmax state ----
    @pl.when(ki == 0)
    def _init():
        m_sc[...] = jnp.full_like(m_sc, -jnp.inf)
        acc_sc[...] = jnp.zeros_like(acc_sc)

    # ---- slice this kv tile out of the VMEM-resident K / V ----
    kv_start = pl.multiple_of(ki * tk, tk)
    k = k_ref[pl.ds(kv_start, tk), :]                       # (tk, Cq)  bf16
    v = v_ref[pl.ds(kv_start, tk), :]                       # (tk, C+1) bf16

    # ---- scores: NT dot contracting over the true Cq channels (no zero padding) ----
    s = jax.lax.dot_general(q_ref[...], k,
                            dimension_numbers=(((1,), (1,)), ((), ())),
                            preferred_element_type=jnp.float32)   # (tq, tk) f32

    if n_real != n_pad:   # mask padded kv positions (static: only emitted when needed)
        pos = kv_start + jax.lax.broadcasted_iota(jnp.int32, (1, tk), 1)
        s = jnp.where(pos < n_real, s, -jnp.inf)

    # ---- online softmax (f32 running max, unnormalized accumulator) ----
    m_prev = m_sc[...]                                            # (tq, 1)
    m_new = jnp.maximum(m_prev, jnp.max(s, axis=-1, keepdims=True))
    alpha = jnp.exp(m_prev - m_new)                               # (tq, 1) f32

    if bf16_exp:
        p = jnp.exp((s - m_new).astype(jnp.bfloat16))             # bf16 EUP (v6e/v7x)
    else:
        p = jnp.exp(s - m_new).astype(jnp.bfloat16)               # f32 EUP (v5e/older)

    # [acc | l] <- alpha * [acc | l] + p @ [v | 1]  (row-sum folded into the MXU dot)
    acc_sc[...] = alpha * acc_sc[...] + jnp.dot(
        p, v, preferred_element_type=jnp.float32)                 # (tq, C+1) f32
    m_sc[...] = m_new

    # ---- finalize: exact normalization + gamma residual ----
    @pl.when(ki == nk - 1)
    def _finalize():
        acc = acc_sc[...]
        l = acc[:, c:c + 1]                                       # (tq, 1)
        out = acc[:, :c] / l                                      # exact divide
        o_ref[...] = (gamma_ref[0] * out + x_ref[...]).astype(o_ref.dtype)


def self_attention_3d(x_ncdhw, wq, bq, wk, bk, wv, bv, gamma):
    """x_ncdhw: (B, C, D, H, W) float32.  Weights in PyTorch Conv3d layout:
       wq/wk: (C//8, C, 1, 1, 1), wv: (C, C, 1, 1, 1), biases (C//8,), (C,), gamma (1,)."""
    B, C, D, H, W = x_ncdhw.shape
    N = D * H * W
    Cq = C // 8

    # ---- layout glue (once) + hoisted projections (single XLA matmuls) ----
    x_nc = jnp.transpose(x_ncdhw, (0, 2, 3, 4, 1)).reshape(B, N, C).astype(jnp.float32)
    wq_m = wq.reshape(Cq, C).astype(jnp.float32)
    wk_m = wk.reshape(Cq, C).astype(jnp.float32)
    wv_m = wv.reshape(C, C).astype(jnp.float32)
    q = (x_nc @ wq_m.T + bq[None, None, :]).astype(jnp.bfloat16)        # (B, N, Cq)
    k = (x_nc @ wk_m.T + bk[None, None, :]).astype(jnp.bfloat16)        # (B, N, Cq)
    v = (x_nc @ wv_m.T + bv[None, None, :]).astype(jnp.bfloat16)        # (B, N, C)
    v_aug = jnp.concatenate([v, jnp.ones((B, N, 1), jnp.bfloat16)], -1)  # (B, N, C+1)

    # ---- tiling: pad N to a multiple of 128, prefer big (<=512) tiles ----
    N_pad = ((N + 127) // 128) * 128
    tile = 128
    for t in (512, 256):
        if N_pad % t == 0:
            tile = t
            break
    tq = tk = tile
    # keep both v7x TensorCores busy: "parallel" grid extent B*nq >= 2 when possible
    while B * (N_pad // tq) < 2 and tq > 128:
        tq //= 2
    nq, nkv = N_pad // tq, N_pad // tk

    pad = N_pad - N
    if pad:
        q = jnp.pad(q, ((0, 0), (0, pad), (0, 0)))
        k = jnp.pad(k, ((0, 0), (0, pad), (0, 0)))
        v_aug = jnp.pad(v_aug, ((0, 0), (0, pad), (0, 0)))
        x_in = jnp.pad(x_nc, ((0, 0), (0, pad), (0, 0)))
    else:
        x_in = x_nc

    gamma1 = gamma.reshape(1).astype(jnp.float32)

    # bf16 EUP exists on v6e/v7x; keep exp in f32 on v5e and older generations.
    kind = jax.devices()[0].device_kind.lower()
    bf16_exp = not any(v in kind for v in ("v2", "v3", "v4", "v5"))

    kernel = functools.partial(_flash_sa_kernel, tk=tk, c=C,
                               n_real=N, n_pad=N_pad, bf16_exp=bf16_exp)

    # rough VMEM budget (lane-padded, double-buffered blocks + scratch + s/p temps)
    lane = lambda n: ((n + 127) // 128) * 128
    est = 2 * (tq * lane(C) * 4 +             # x block
               tq * lane(Cq) * 2 +            # q block
               N_pad * lane(Cq) * 2 +         # resident K
               N_pad * lane(C + 1) * 2 +      # resident V|1
               tq * lane(C) * 4)              # out block
    est += tq * lane(1) * 4 + tq * lane(C + 1) * 4 + tq * tk * 6
    vmem_limit = int(min(100 << 20, max(32 << 20, 2 * est)))

    out_nc = pl.pallas_call(
        kernel,
        out_shape=jax.ShapeDtypeStruct((B, N_pad, C), jnp.float32),
        grid_spec=pltpu.PrefetchScalarGridSpec(
            num_scalar_prefetch=0,
            grid=(B, nq, nkv),
            in_specs=[
                pl.BlockSpec(memory_space=pltpu.MemorySpace.SMEM),               # gamma
                pl.BlockSpec((None, tq, C), lambda b, qi, ki: (b, qi, 0)),       # x (residual)
                pl.BlockSpec((None, tq, Cq), lambda b, qi, ki: (b, qi, 0)),      # q tile
                pl.BlockSpec((None, N_pad, Cq), lambda b, qi, ki: (b, 0, 0)),    # K (resident / batch)
                pl.BlockSpec((None, N_pad, C + 1), lambda b, qi, ki: (b, 0, 0)), # V|1 (resident / batch)
            ],
            out_specs=pl.BlockSpec((None, tq, C), lambda b, qi, ki: (b, qi, 0)),
            scratch_shapes=[
                pltpu.VMEM((tq, 1), jnp.float32),        # running max m
                pltpu.VMEM((tq, C + 1), jnp.float32),    # [unnormalized acc | l]
            ],
        ),
        compiler_params=pltpu.CompilerParams(
            dimension_semantics=("parallel", "parallel", "arbitrary"),
            vmem_limit_bytes=vmem_limit,
        ),
    )(gamma1, x_in, q, k, v_aug)

    # ---- glue: drop N padding, back to NCDHW ----
    out = out_nc[:, :N, :].reshape(B, D, H, W, C)
    return jnp.transpose(out, (0, 4, 1, 2, 3))


def _reference(x, wq, bq, wk, bk, wv, bv, gamma):
    """Pure-JAX f32 reference mirroring the PyTorch forward exactly."""
    B, C, D, H, W = x.shape
    N = D * H * W
    Cq = C // 8
    xf = x.reshape(B, C, N)                                    # (B, C, N)
    q = jnp.einsum('oc,bcn->bon', wq.reshape(Cq, C), xf) + bq[None, :, None]
    k = jnp.einsum('oc,bcn->bon', wk.reshape(Cq, C), xf) + bk[None, :, None]
    v = jnp.einsum('oc,bcn->bon', wv.reshape(C, C), xf) + bv[None, :, None]
    query = jnp.transpose(q, (0, 2, 1))                        # (B, N, Cq)
    attn = jax.nn.softmax(jnp.einsum('bnc,bcm->bnm', query, k), axis=-1)
    out = jnp.einsum('bcn,bmn->bcm', v, attn)                  # value @ attn^T
    out = out.reshape(B, C, D, H, W)
    return gamma.reshape(()) * out + x


if __name__ == "__main__":
    key = jax.random.PRNGKey(0)
    B, C, D, H, W = 2, 32, 8, 8, 8        # N = 512 -> single 512 tile per batch, Cq = 4
    Cq = C // 8

    ks = jax.random.split(key, 8)
    x = jax.random.normal(ks[0], (B, C, D, H, W), dtype=jnp.float32)
    wq = jax.random.normal(ks[1], (Cq, C, 1, 1, 1), dtype=jnp.float32) * 0.1
    bq = jax.random.normal(ks[2], (Cq,), dtype=jnp.float32) * 0.1
    wk = jax.random.normal(ks[3], (Cq, C, 1, 1, 1), dtype=jnp.float32) * 0.1
    bk = jax.random.normal(ks[4], (Cq,), dtype=jnp.float32) * 0.1
    wv = jax.random.normal(ks[5], (C, C, 1, 1, 1), dtype=jnp.float32) * 0.1
    bv = jax.random.normal(ks[6], (C,), dtype=jnp.float32) * 0.1
    # PyTorch initializes gamma to 0 (output == x); use a nonzero deterministic
    # value so the attention path is actually exercised.
    gamma = jnp.asarray([0.5], dtype=jnp.float32)

    out = self_attention_3d(x, wq, bq, wk, bk, wv, bv, gamma)
    out = jax.block_until_ready(out)

    ref = _reference(x, wq, bq, wk, bk, wv, bv, gamma)
    assert out.shape == (B, C, D, H, W)
    # bf16 MXU inputs (and bf16 exp on v6e/v7x) -> loosen the f32 tolerance accordingly.
    max_err = float(jnp.max(jnp.abs(out - ref)))
    assert jnp.allclose(out, ref, atol=5e-2, rtol=5e-2), \
        f"mismatch vs reference (max abs err {max_err})"

    print("KERNEL_OK")
</pallas_src>

<mosaic_0001>
module attributes {stable_mosaic.version = 11 : i64} {
  func.func @_flash_sa_kernel(%arg0: i32, %arg1: i32, %arg2: i32, %arg3: memref<1xf32, #tpu.memory_space<smem>>, %arg4: memref<1x512x32xf32, #tpu.memory_space<vmem>>, %arg5: memref<1x512x4xbf16, #tpu.memory_space<vmem>>, %arg6: memref<1x512x4xbf16, #tpu.memory_space<vmem>>, %arg7: memref<1x512x33xbf16, #tpu.memory_space<vmem>>, %arg8: memref<1x512x32xf32, #tpu.memory_space<vmem>>, %arg9: memref<512x1xf32, #tpu.memory_space<vmem>>, %arg10: memref<512x33xf32, #tpu.memory_space<vmem>>) attributes {dimension_semantics = [#tpu.dimension_semantics<parallel>, #tpu.dimension_semantics<parallel>, #tpu.dimension_semantics<arbitrary>], iteration_bounds = array<i64: 2, 1, 1>, scalar_prefetch = 0 : i64, scratch_operands = 2 : i64, tpu.core_type = #tpu.core_type<tc>, window_params = [{transform_indices = @transform_0, window_bounds = array<i64: 1>}, {transform_indices = @transform_1, window_bounds = array<i64: 1, 512, 32>}, {transform_indices = @transform_2, window_bounds = array<i64: 1, 512, 4>}, {transform_indices = @transform_3, window_bounds = array<i64: 1, 512, 4>}, {transform_indices = @transform_4, window_bounds = array<i64: 1, 512, 33>}, {transform_indices = @transform_5, window_bounds = array<i64: 1, 512, 32>}]} {
    %c0_i32 = arith.constant 0 : i32
    %0 = arith.cmpi eq, %arg2, %c0_i32 : i32
    %1 = arith.extui %0 : i1 to i32
    %c0_i32_0 = arith.constant 0 : i32
    %2 = arith.cmpi ne, %1, %c0_i32_0 : i32
    scf.if %2 {
      %cst_19 = arith.constant 0xFF800000 : f32
      %34 = vector.broadcast %cst_19 : f32 to vector<512x1xf32>
      %c0_20 = arith.constant 0 : index
      %c0_21 = arith.constant 0 : index
      %35 = vector.load %arg9[%c0_20, %c0_21] : memref<512x1xf32, #tpu.memory_space<vmem>>, vector<512x1xf32>
      tpu.vector_store %arg9[%c0_20, %c0_21], %34 {strides = array<i32>} : memref<512x1xf32, #tpu.memory_space<vmem>>, vector<512x1xf32>,
      %cst_22 = arith.constant 0.000000e+00 : f32
      %36 = vector.broadcast %cst_22 : f32 to vector<512x33xf32>
      %c0_23 = arith.constant 0 : index
      %c0_24 = arith.constant 0 : index
      %37 = vector.load %arg10[%c0_23, %c0_24] : memref<512x33xf32, #tpu.memory_space<vmem>>, vector<512x33xf32>
      tpu.vector_store %arg10[%c0_23, %c0_24], %36 {strides = array<i32>} : memref<512x33xf32, #tpu.memory_space<vmem>>, vector<512x33xf32>,
    } else {
    }
    %c512_i32 = arith.constant 512 : i32
    %3 = arith.muli %arg2, %c512_i32 : i32
    %4 = tpu.assume_multiple %3, 512 : i32
    %c0 = arith.constant 0 : index
    %5 = arith.index_cast %4 : i32 to index
    %c0_1 = arith.constant 0 : index
    %6 = vector.load %arg6[%c0, %5, %c0_1] : memref<1x512x4xbf16, #tpu.memory_space<vmem>>, vector<1x512x4xbf16>
    %7 = vector.shape_cast %6 : vector<1x512x4xbf16> to vector<512x4xbf16>
    %c0_2 = arith.constant 0 : index
    %8 = arith.index_cast %4 : i32 to index
    %c0_3 = arith.constant 0 : index
    %9 = vector.load %arg7[%c0_2, %8, %c0_3] : memref<1x512x33xbf16, #tpu.memory_space<vmem>>, vector<1x512x33xbf16>
    %10 = vector.shape_cast %9 : vector<1x512x33xbf16> to vector<512x33xbf16>
    %c0_4 = arith.constant 0 : index
    %c0_5 = arith.constant 0 : index
    %c0_6 = arith.constant 0 : index
    %11 = vector.load %arg5[%c0_4, %c0_5, %c0_6] : memref<1x512x4xbf16, #tpu.memory_space<vmem>>, vector<1x512x4xbf16>
    %12 = vector.shape_cast %11 : vector<1x512x4xbf16> to vector<512x4xbf16>
    %cst = arith.constant dense<0.000000e+00> : vector<512x512xf32>
    %13 = tpu.matmul %12, %7, %cst {dimension_numbers = #tpu.dot_dimension_numbers<[1], [1], [0], [0], [0, 0, 1, 0], [], []>} : vector<512x4xbf16>, vector<512x4xbf16>, vector<512x512xf32> -> vector<512x512xf32>
    %c0_7 = arith.constant 0 : index
    %c0_8 = arith.constant 0 : index
    %14 = vector.load %arg9[%c0_7, %c0_8] : memref<512x1xf32, #tpu.memory_space<vmem>>, vector<512x1xf32>
    %cst_9 = arith.constant dense<0xFF800000> : vector<512xf32>
    %15 = vector.multi_reduction <maximumf>, %13, %cst_9 [1] : vector<512x512xf32> to vector<512xf32>
    %16 = vector.shape_cast %15 : vector<512xf32> to vector<512x1xf32>
    %17 = arith.maximumf %14, %16 : vector<512x1xf32>
    %18 = arith.subf %14, %17 : vector<512x1xf32>
    %19 = math.exp %18 : vector<512x1xf32>
    %20 = vector.broadcast %17 : vector<512x1xf32> to vector<512x512xf32>
    %21 = arith.subf %13, %20 : vector<512x512xf32>
    %22 = arith.truncf %21 : vector<512x512xf32> to vector<512x512xbf16>
    %23 = math.exp %22 : vector<512x512xbf16>
    %c0_10 = arith.constant 0 : index
    %c0_11 = arith.constant 0 : index
    %24 = vector.load %arg10[%c0_10, %c0_11] : memref<512x33xf32, #tpu.memory_space<vmem>>, vector<512x33xf32>
    %25 = vector.broadcast %19 : vector<512x1xf32> to vector<512x33xf32>
    %26 = arith.mulf %25, %24 : vector<512x33xf32>
    %cst_12 = arith.constant dense<0.000000e+00> : vector<512x33xf32>
    %27 = tpu.matmul %23, %10, %cst_12 {dimension_numbers = #tpu.dot_dimension_numbers<[1], [0], [0], [1], [0, 0, 1, 1], [], []>} : vector<512x512xbf16>, vector<512x33xbf16>, vector<512x33xf32> -> vector<512x33xf32>
    %28 = arith.addf %26, %27 : vector<512x33xf32>
    %c0_13 = arith.constant 0 : index
    %c0_14 = arith.constant 0 : index
    %29 = vector.load %arg10[%c0_13, %c0_14] : memref<512x33xf32, #tpu.memory_space<vmem>>, vector<512x33xf32>
    tpu.vector_store %arg10[%c0_13, %c0_14], %28 {strides = array<i32>} : memref<512x33xf32, #tpu.memory_space<vmem>>, vector<512x33xf32>,
    %c0_15 = arith.constant 0 : index
    %c0_16 = arith.constant 0 : index
    %30 = vector.load %arg9[%c0_15, %c0_16] : memref<512x1xf32, #tpu.memory_space<vmem>>, vector<512x1xf32>
    tpu.vector_store %arg9[%c0_15, %c0_16], %17 {strides = array<i32>} : memref<512x1xf32, #tpu.memory_space<vmem>>, vector<512x1xf32>,
    %c0_i32_17 = arith.constant 0 : i32
    %31 = arith.cmpi eq, %arg2, %c0_i32_17 : i32
    %32 = arith.extui %31 : i1 to i32
    %c0_i32_18 = arith.constant 0 : i32
    %33 = arith.cmpi ne, %32, %c0_i32_18 : i32
    scf.if %33 {
      %c0_19 = arith.constant 0 : index
      %c0_20 = arith.constant 0 : index
      %34 = vector.load %arg10[%c0_19, %c0_20] : memref<512x33xf32, #tpu.memory_space<vmem>>, vector<512x33xf32>
      %35 = vector.extract_strided_slice %34 {offsets = [0, 32], sizes = [512, 1], strides = [1, 1]} : vector<512x33xf32> to vector<512x1xf32>
      %36 = vector.extract_strided_slice %34 {offsets = [0, 0], sizes = [512, 32], strides = [1, 1]} : vector<512x33xf32> to vector<512x32xf32>
      %37 = vector.broadcast %35 : vector<512x1xf32> to vector<512x32xf32>
      %38 = arith.divf %36, %37 : vector<512x32xf32>
      %c0_21 = arith.constant 0 : index
      %39 = memref.load %arg3[%c0_21] : memref<1xf32, #tpu.memory_space<smem>>
      %40 = vector.broadcast %39 : f32 to vector<512x32xf32>
      %41 = arith.mulf %40, %38 : vector<512x32xf32>
      %c0_22 = arith.constant 0 : index
      %c0_23 = arith.constant 0 : index
      %c0_24 = arith.constant 0 : index
      %42 = vector.load %arg4[%c0_22, %c0_23, %c0_24] : memref<1x512x32xf32, #tpu.memory_space<vmem>>, vector<1x512x32xf32>
      %43 = vector.shape_cast %42 : vector<1x512x32xf32> to vector<512x32xf32>
      %44 = arith.addf %41, %43 : vector<512x32xf32>
      %c0_25 = arith.constant 0 : index
      %c0_26 = arith.constant 0 : index
      %c0_27 = arith.constant 0 : index
      %45 = vector.load %arg8[%c0_25, %c0_26, %c0_27] : memref<1x512x32xf32, #tpu.memory_space<vmem>>, vector<1x512x32xf32>
      %46 = vector.shape_cast %45 : vector<1x512x32xf32> to vector<512x32xf32>
      %47 = vector.shape_cast %44 : vector<512x32xf32> to vector<1x512x32xf32>
      tpu.vector_store %arg8[%c0_25, %c0_26, %c0_27], %47 {strides = array<i32>} : memref<1x512x32xf32, #tpu.memory_space<vmem>>, vector<1x512x32xf32>,
    } else {
    }
    return
  }
  func.func @transform_0(%arg0: i32, %arg1: i32, %arg2: i32) -> i32 {
    %c0_i32 = arith.constant 0 : i32
    %c0_i32_0 = arith.constant 0 : i32
    return %c0_i32 : i32
  }
  func.func @transform_1(%arg0: i32, %arg1: i32, %arg2: i32) -> (i32, i32, i32) {
    %c0_i32 = arith.constant 0 : i32
    %c0_i32_0 = arith.constant 0 : i32
    return %arg0, %arg1, %c0_i32 : i32, i32, i32
  }
  func.func @transform_2(%arg0: i32, %arg1: i32, %arg2: i32) -> (i32, i32, i32) {
    %c0_i32 = arith.constant 0 : i32
    %c0_i32_0 = arith.constant 0 : i32
    return %arg0, %arg1, %c0_i32 : i32, i32, i32
  }
  func.func @transform_3(%arg0: i32, %arg1: i32, %arg2: i32) -> (i32, i32, i32) {
    %c0_i32 = arith.constant 0 : i32
    %c0_i32_0 = arith.constant 0 : i32
    %c0_i32_1 = arith.constant 0 : i32
    return %arg0, %c0_i32, %c0_i32_0 : i32, i32, i32
  }
  func.func @transform_4(%arg0: i32, %arg1: i32, %arg2: i32) -> (i32, i32, i32) {
    %c0_i32 = arith.constant 0 : i32
    %c0_i32_0 = arith.constant 0 : i32
    %c0_i32_1 = arith.constant 0 : i32
    return %arg0, %c0_i32, %c0_i32_0 : i32, i32, i32
  }
  func.func @transform_5(%arg0: i32, %arg1: i32, %arg2: i32) -> (i32, i32, i32) {
    %c0_i32 = arith.constant 0 : i32
    %c0_i32_0 = arith.constant 0 : i32
    return %arg0, %arg1, %c0_i32 : i32, i32, i32
  }
}

</mosaic_0001>

<llo_original>
// kernel: tpu_custom_call.1
$region0: #{tpu_custom_call.1}
  #allocation0 [shape = 'u32[]', space=smem, size = 0x4, offset = 0x4, fixed_abs, tag = 'smem constant byte address 0x4 - core index']
  #allocation1 [shape = 'u32[144,128]{1,0:T(1,128)}', space=vmem, size = 0x12000, scoped, tag = 'internal scratch']
  #allocation2 [shape = 'f32[512,1]{1,0:T(8,128)}', space=vmem, size = 0x40000, scoped, tag = 'scratch operand']
  #allocation3 [shape = 'f32[512,33]{1,0:T(8,128)}', space=vmem, size = 0x40000, scoped, tag = 'scratch operand']
  #allocation4 [shape = 'f32[1]{0:T(128)S(6)}', space=smem, size = 0x200, scoped, tag = 'scoped memory for tpu_custom_call.1']
  %s0 = inlined_call_operand.<no memory space> [shape: f32[1], index: 0, kind: input, shape index: {}]
  %s1 = inlined_call_operand.vmem [shape: f32[2,512,32], index: 1, kind: input, shape index: {}]
  %s2 = inlined_call_operand.vmem [shape: bf16[2,512,4], index: 2, kind: input, shape index: {}]
  %s3 = inlined_call_operand.vmem [shape: bf16[2,512,4], index: 3, kind: input, shape index: {}]
  %s4 = inlined_call_operand.vmem [shape: bf16[2,512,33], index: 4, kind: input, shape index: {}]
  %s5 = inlined_call_operand.vmem [shape: f32[2,512,32], index: 5, kind: output, shape index: {}]
  %s6 = sld [smem:[#allocation0]]
  $region61: #{tpu_custom_call.1} parent=0
    _
  %s8 = ssub.s32 1, %s6
  %s9 = scalar_select 0, %s8, %s6
  %10 = sst [smem:[#allocation4]] %s0
  loop: start=0, step=1, limit=4
  $region2: #{tpu_custom_call.1} parent=0 // loop_pre_header
    _
  $region3: #{tpu_custom_call.1} parent=0 // loop_header
    %s12 = sphi 0, %s16
    %p13 = scmp.ge.s32.totalorder %s12, 4
    %s19 = sphi 0, %s38
    %s20 = sphi 0, %s34
    %s21 = sphi 0, %s30
    %s22 = sphi 0, %s19
    %s23 = sphi 0, %s20
    %s24 = sphi 0, %s21
    %s25 = sphi 0, %s22
    %s26 = sphi 0, %s23
    %s27 = sphi 0, %s24
    %s39 = sphi 0, %s39
    %s41 = sphi 0, %s39
    %s42 = sphi 0, %s41
    %s56 = sphi 0, %s42
    %s64 = sphi 0, %s66
    %s67 = sphi 0, %s64
    %s68 = sphi 0, %s67
    %s84 = sphi 0, %s68
    %s92 = sphi 0, %s94
    %s95 = sphi 0, %s92
    %s96 = sphi 0, %s95
    %s112 = sphi 0, %s96
    %s118 = sphi 0, %s120
    %s121 = sphi 0, %s118
    %s122 = sphi 0, %s121
    %s138 = sphi 0, %s122
    %s144 = sphi 0, %s146
    %s147 = sphi 0, %s144
    %s148 = sphi 0, %s147
    %s164 = sphi 0, %s148
    %s172 = sphi 0, %s174
    %s175 = sphi 0, %s172
    %s176 = sphi 0, %s175
    %s192 = sphi 0, %s176
  $region4: #{tpu_custom_call.1} parent=0 // loop_header_branch
    %15 = sbr.rel (%p13) target = $region8
  $region5: #{tpu_custom_call.1} parent=0 // loop_body
    %s17 = ssub.s32 %s12, 1
    %s18 = ssub.s32 %s12, 2
    %s28 = sadd.s32 1, %s21
    %p29 = scmp.ge.s32.totalorder %s28, 1
    %s30 = scalar_select %p29, 0, %s28
    %s31 = sadd.s32 1, %s20
    %s32 = scalar_select %p29, %s31, %s20
    %p33 = scmp.ge.s32.totalorder %s32, 1
    %s34 = scalar_select %p33, 0, %s32
    %s35 = sadd.s32 1, %s19
    %s36 = scalar_select %p33, %s35, %s19
    %p37 = scmp.ge.s32.totalorder %s36, 2
    %s38 = scalar_select %p37, 0, %s36
    %s40 = sadd.s32 %s39, 1
    %p43 = scmp.eq.s32.totalorder %s12, 1
    %p44 = scmp.ne.s32.totalorder %s39, %s41
    %p45 = scmp.eq.s32.totalorder %s12, 0
    %p46 = por %p44, %p45
    %p47 = scmp.ne.s32.totalorder %s39, %s41
    %p48 = scmp.eq.s32.totalorder %s17, 1
    %p49 = por %p47, %p48
    %p50 = scmp.ne.s32.totalorder %s41, %s42
    %p51 = scmp.eq.s32.totalorder %s17, 0
    %p52 = por %p50, %p51
    %p53 = scmp.ne.s32.totalorder %s41, %s42
    %p54 = scmp.eq.s32.totalorder %s18, 1
    %p55 = por %p53, %p54
    %p57 = scmp.ne.s32.totalorder %s42, %s56
    %p58 = scmp.eq.s32.totalorder %s18, 0
    %p59 = por %p57, %p58
    %s60 = ssub.s32 %s19, %s38
    %s61 = ssub.s32 %s20, %s34
    %s62 = sor.u32 %s60, %s61
    %p63 = scmp.eq.s32.totalorder %s62, 0
    %s65 = sadd.s32 %s64, 1
    %s66 = scalar_select %p63, %s64, %s65
    %p69 = pneg %p63
    %p70 = scmp.eq.s32.totalorder %s12, 1
    %p71 = por %p69, %p70
    %p72 = scmp.ne.s32.totalorder %s64, %s67
    %p73 = scmp.eq.s32.totalorder %s12, 0
    %p74 = por %p72, %p73
    %p75 = scmp.ne.s32.totalorder %s64, %s67
    %p76 = scmp.eq.s32.totalorder %s17, 1
    %p77 = por %p75, %p76
    %p78 = scmp.ne.s32.totalorder %s67, %s68
    %p79 = scmp.eq.s32.totalorder %s17, 0
    %p80 = por %p78, %p79
    %p81 = scmp.ne.s32.totalorder %s67, %s68
    %p82 = scmp.eq.s32.totalorder %s18, 1
    %p83 = por %p81, %p82
    %p85 = scmp.ne.s32.totalorder %s68, %s84
    %p86 = scmp.eq.s32.totalorder %s18, 0
    %p87 = por %p85, %p86
    %s88 = ssub.s32 %s19, %s38
    %s89 = ssub.s32 %s20, %s34
    %s90 = sor.u32 %s88, %s89
    %p91 = scmp.eq.s32.totalorder %s90, 0
    %s93 = sadd.s32 %s92, 1
    %s94 = scalar_select %p91, %s92, %s93
    %p97 = pneg %p91
    %p98 = scmp.eq.s32.totalorder %s12, 1
    %p99 = por %p97, %p98
    %p100 = scmp.ne.s32.totalorder %s92, %s95
    %p101 = scmp.eq.s32.totalorder %s12, 0
    %p102 = por %p100, %p101
    %p103 = scmp.ne.s32.totalorder %s92, %s95
    %p104 = scmp.eq.s32.totalorder %s17, 1
    %p105 = por %p103, %p104
    %p106 = scmp.ne.s32.totalorder %s95, %s96
    %p107 = scmp.eq.s32.totalorder %s17, 0
    %p108 = por %p106, %p107
    %p109 = scmp.ne.s32.totalorder %s95, %s96
    %p110 = scmp.eq.s32.totalorder %s18, 1
    %p111 = por %p109, %p110
    %p113 = scmp.ne.s32.totalorder %s96, %s112
    %p114 = scmp.eq.s32.totalorder %s18, 0
    %p115 = por %p113, %p114
    %s116 = ssub.s32 %s19, %s38
    %p117 = scmp.eq.s32.totalorder %s116, 0
    %s119 = sadd.s32 %s118, 1
    %s120 = scalar_select %p117, %s118, %s119
    %p123 = pneg %p117
    %p124 = scmp.eq.s32.totalorder %s12, 1
    %p125 = por %p123, %p124
    %p126 = scmp.ne.s32.totalorder %s118, %s121
    %p127 = scmp.eq.s32.totalorder %s12, 0
    %p128 = por %p126, %p127
    %p129 = scmp.ne.s32.totalorder %s118, %s121
    %p130 = scmp.eq.s32.totalorder %s17, 1
    %p131 = por %p129, %p130
    %p132 = scmp.ne.s32.totalorder %s121, %s122
    %p133 = scmp.eq.s32.totalorder %s17, 0
    %p134 = por %p132, %p133
    %p135 = scmp.ne.s32.totalorder %s121, %s122
    %p136 = scmp.eq.s32.totalorder %s18, 1
    %p137 = por %p135, %p136
    %p139 = scmp.ne.s32.totalorder %s122, %s138
    %p140 = scmp.eq.s32.totalorder %s18, 0
    %p141 = por %p139, %p140
    %s142 = ssub.s32 %s19, %s38
    %p143 = scmp.eq.s32.totalorder %s142, 0
    %s145 = sadd.s32 %s144, 1
    %s146 = scalar_select %p143, %s144, %s145
    %p149 = pneg %p143
    %p150 = scmp.eq.s32.totalorder %s12, 1
    %p151 = por %p149, %p150
    %p152 = scmp.ne.s32.totalorder %s144, %s147
    %p153 = scmp.eq.s32.totalorder %s12, 0
    %p154 = por %p152, %p153
    %p155 = scmp.ne.s32.totalorder %s144, %s147
    %p156 = scmp.eq.s32.totalorder %s17, 1
    %p157 = por %p155, %p156
    %p158 = scmp.ne.s32.totalorder %s147, %s148
    %p159 = scmp.eq.s32.totalorder %s17, 0
    %p160 = por %p158, %p159
    %p161 = scmp.ne.s32.totalorder %s147, %s148
    %p162 = scmp.eq.s32.totalorder %s18, 1
    %p163 = por %p161, %p162
    %p165 = scmp.ne.s32.totalorder %s148, %s164
    %p166 = scmp.eq.s32.totalorder %s18, 0
    %p167 = por %p165, %p166
    %s168 = ssub.s32 %s19, %s38
    %s169 = ssub.s32 %s20, %s34
    %s170 = sor.u32 %s168, %s169
    %p171 = scmp.eq.s32.totalorder %s170, 0
    %s173 = sadd.s32 %s172, 1
    %s174 = scalar_select %p171, %s172, %s173
    %p177 = pneg %p171
    %p178 = scmp.eq.s32.totalorder %s12, 1
    %p179 = por %p177, %p178
    %p180 = scmp.ne.s32.totalorder %s172, %s175
    %p181 = scmp.eq.s32.totalorder %s12, 0
    %p182 = por %p180, %p181
    %p183 = scmp.ne.s32.totalorder %s172, %s175
    %p184 = scmp.eq.s32.totalorder %s17, 1
    %p185 = por %p183, %p184
    %p186 = scmp.ne.s32.totalorder %s175, %s176
    %p187 = scmp.eq.s32.totalorder %s17, 0
    %p188 = por %p186, %p187
    %p189 = scmp.ne.s32.totalorder %s175, %s176
    %p190 = scmp.eq.s32.totalorder %s18, 1
    %p191 = por %p189, %p190
    %p193 = scmp.ne.s32.totalorder %s176, %s192
    %p194 = scmp.eq.s32.totalorder %s18, 0
    %p195 = por %p193, %p194
    %p196 = scmp.le.s32.totalorder 1, %s12
    %p197 = scmp.lt.s32.totalorder %s12, 3
    %p198 = pnand %p196, %p197
    %p199 = pneg %p198
    // Predicated region
    $region9: #{tpu_custom_call.1} parent=5 // pred_check
      _
    $region10: #{tpu_custom_call.1} parent=5 // pred_check_branch
      %201 = sbr.rel (%p198) target = $region12
    $region11: #{tpu_custom_call.1} parent=5 // pred_region
      %s202 = ssub.s32 %s12, 1
      // Predicated region
      $region13: #{tpu_custom_call.1} parent=11 // pred_check
        %p203 = pneg %p52
      $region14: #{tpu_custom_call.1} parent=11 // pred_check_branch
        %205 = sbr.rel (%p203) target = $region16
      $region15: #{tpu_custom_call.1} parent=11 // pred_region
        _
      $region16: #{tpu_custom_call.1} parent=11 // pred_fallthru
        _
    $region12: #{tpu_custom_call.1} parent=5 // pred_fallthru
      _
    %p206 = scmp.lt.s32.totalorder %s12, 2
    // Predicated region
    $region17: #{tpu_custom_call.1} parent=5 // pred_check
      %p207 = pneg %p206
    $region18: #{tpu_custom_call.1} parent=5 // pred_check_branch
      %209 = sbr.rel (%p207) target = $region20
    $region19: #{tpu_custom_call.1} parent=5 // pred_region
      // Predicated region
      $region21: #{tpu_custom_call.1} parent=19 // pred_check
        %p210 = pneg %p74
      $region22: #{tpu_custom_call.1} parent=19 // pred_check_branch
        %212 = sbr.rel (%p210) target = $region24
      $region23: #{tpu_custom_call.1} parent=19 // pred_region
        %s213 = smul.u32 64, %s20
        %p214 = scmp.lt.s32.totalorder %s19, 1
        %s215 = scalar_select %p214, %s19, 1
        %p216 = scmp.lt.s32.totalorder %s213, 63
        %s217 = scalar_select %p216, %s213, 63
        %s218 = smul.addr %s215, 64
        %s219 = sadd.s32 %s217, %s218
        %s220 = smul.addr %s219, 8
        %s221 = scalar_lea.vmem %s1, %s220
        %s222 = smul.u32 64, %s20
      $region24: #{tpu_custom_call.1} parent=19 // pred_fallthru
        _
      // Predicated region
      $region25: #{tpu_custom_call.1} parent=19 // pred_check
        %p223 = pneg %p102
      $region26: #{tpu_custom_call.1} parent=19 // pred_check_branch
        %225 = sbr.rel (%p223) target = $region28
      $region27: #{tpu_custom_call.1} parent=19 // pred_region
        %s226 = smul.u32 64, %s20
        %p227 = scmp.lt.s32.totalorder %s19, 1
        %s228 = scalar_select %p227, %s19, 1
        %p229 = scmp.lt.s32.totalorder %s226, 63
        %s230 = scalar_select %p229, %s226, 63
        %s231 = smul.addr %s228, 64
        %s232 = sadd.s32 %s230, %s231
        %s233 = smul.addr %s232, 4
        %s234 = scalar_lea.vmem %s2, %s233
        %s235 = smul.u32 64, %s20
      $region28: #{tpu_custom_call.1} parent=19 // pred_fallthru
        _
      // Predicated region
      $region29: #{tpu_custom_call.1} parent=19 // pred_check
        %p236 = pneg %p128
      $region30: #{tpu_custom_call.1} parent=19 // pred_check_branch
        %238 = sbr.rel (%p236) target = $region32
      $region31: #{tpu_custom_call.1} parent=19 // pred_region
        %p239 = scmp.lt.s32.totalorder %s19, 1
        %s240 = scalar_select %p239, %s19, 1
        %s241 = smul.addr %s240, 64
        %s242 = smul.addr %s241, 4
        %s243 = scalar_lea.vmem %s3, %s242
      $region32: #{tpu_custom_call.1} parent=19 // pred_fallthru
        _
      // Predicated region
      $region33: #{tpu_custom_call.1} parent=19 // pred_check
        %p244 = pneg %p154
      $region34: #{tpu_custom_call.1} parent=19 // pred_check_branch
        %246 = sbr.rel (%p244) target = $region36
      $region35: #{tpu_custom_call.1} parent=19 // pred_region
        %p247 = scmp.lt.s32.totalorder %s19, 1
        %s248 = scalar_select %p247, %s19, 1
        %s249 = smul.addr %s248, 64
        %s250 = smul.addr %s249, 4
        %s251 = scalar_lea.vmem %s4, %s250
      $region36: #{tpu_custom_call.1} parent=19 // pred_fallthru
        _
    $region20: #{tpu_custom_call.1} parent=5 // pred_fallthru
      _
    %p252 = scmp.le.s32.totalorder 1, %s12
    %p253 = scmp.lt.s32.totalorder %s12, 3
    %p254 = pnand %p252, %p253
    %p255 = pneg %p254
    // Predicated region
    $region37: #{tpu_custom_call.1} parent=5 // pred_check
      _
    $region38: #{tpu_custom_call.1} parent=5 // pred_check_branch
      %257 = sbr.rel (%p254) target = $region40
    $region39: #{tpu_custom_call.1} parent=5 // pred_region
      %s258 = ssub.s32 %s12, 1
      %p259 = pneg %p52
      %p260 = pneg %p49
      %s261 = smul.u32 64, %s23
      %p262 = scmp.lt.s32.totalorder %s22, 1
      %s263 = scalar_select %p262, %s22, 1
      %p264 = scmp.lt.s32.totalorder %s261, 63
      %s265 = scalar_select %p264, %s261, 63
      %s266 = smul.addr %s263, 64
      %s267 = sadd.s32 %s265, %s266
      %s268 = smul.addr %s267, 8
      %s269 = scalar_lea.vmem %s1, %s268
      %p270 = pneg %p80
      %p271 = pneg %p77
      %s272 = smul.u32 64, %s23
      %p273 = scmp.lt.s32.totalorder %s22, 1
      %s274 = scalar_select %p273, %s22, 1
      %p275 = scmp.lt.s32.totalorder %s272, 63
      %s276 = scalar_select %p275, %s272, 63
      %s277 = smul.addr %s274, 64
      %s278 = sadd.s32 %s276, %s277
      %s279 = smul.addr %s278, 4
      %s280 = scalar_lea.vmem %s2, %s279
      %p281 = pneg %p108
      %p282 = pneg %p105
      %p283 = scmp.lt.s32.totalorder %s22, 1
      %s284 = scalar_select %p283, %s22, 1
      %s285 = smul.addr %s284, 64
      %s286 = smul.addr %s285, 4
      %s287 = scalar_lea.vmem %s3, %s286
      %p288 = pneg %p134
      %p289 = pneg %p131
      %p290 = scmp.lt.s32.totalorder %s22, 1
      %s291 = scalar_select %p290, %s22, 1
      %s292 = smul.addr %s291, 64
      %s293 = smul.addr %s292, 4
      %s294 = scalar_lea.vmem %s4, %s293
      %p295 = pneg %p160
      %p296 = pneg %p157
      %p297 = pneg %p188
      %p298 = pneg %p185
      %s299 = smul.u32 64, %s23
      %p300 = scmp.lt.s32.totalorder %s22, 1
      %s301 = scalar_select %p300, %s22, 1
      %p302 = scmp.lt.s32.totalorder %s299, 63
      %s303 = scalar_select %p302, %s299, 63
      %s304 = smul.addr %s301, 64
      %s305 = sadd.s32 %s303, %s304
      %s306 = smul.addr %s305, 8
      %s307 = scalar_lea.vmem %s5, %s306
      %s308 = smul.u32 64, %s23
      %p309 = scmp.lt.s32.totalorder %s22, 1
      %s310 = scalar_select %p309, %s22, 1
      %p311 = scmp.lt.s32.totalorder %s308, 63
      %s312 = scalar_select %p311, %s308, 63
      %s313 = smul.addr %s310, 64
      %s314 = sadd.s32 %s312, %s313
      %s315 = smul.addr %s314, 8
      %s316 = scalar_lea.vmem %s1, %s315
      %s317 = smul.u32 64, %s23
      %s318 = smul.u32 64, %s23
      %p319 = scmp.lt.s32.totalorder %s22, 1
      %s320 = scalar_select %p319, %s22, 1
      %p321 = scmp.lt.s32.totalorder %s318, 63
      %s322 = scalar_select %p321, %s318, 63
      %s323 = smul.addr %s320, 64
      %s324 = sadd.s32 %s322, %s323
      %s325 = smul.addr %s324, 4
      %s326 = scalar_lea.vmem %s2, %s325
      %s327 = smul.u32 64, %s23
      %p328 = scmp.lt.s32.totalorder %s22, 1
      %s329 = scalar_select %p328, %s22, 1
      %s330 = smul.addr %s329, 64
      %s331 = smul.addr %s330, 4
      %s332 = scalar_lea.vmem %s3, %s331
      %p333 = scmp.lt.s32.totalorder %s22, 1
      %s334 = scalar_select %p333, %s22, 1
      %s335 = smul.addr %s334, 64
      %s336 = smul.addr %s335, 4
      %s337 = scalar_lea.vmem %s4, %s336
      %s338 = smul.u32 64, %s23
      %p339 = scmp.lt.s32.totalorder %s22, 1
      %s340 = scalar_select %p339, %s22, 1
      %p341 = scmp.lt.s32.totalorder %s338, 63
      %s342 = scalar_select %p341, %s338, 63
      %s343 = smul.addr %s340, 64
      %s344 = sadd.s32 %s342, %s343
      %s345 = smul.addr %s344, 8
      %s346 = scalar_lea.vmem %s5, %s345
      %s347 = smul.u32 64, %s23
      %p349 = scmp.eq.s32.totalorder %s24, 0
      // Predicated region
      $region41: #{tpu_custom_call.1} parent=39 // pred_check
        %p350 = pneg %p349
      $region42: #{tpu_custom_call.1} parent=39 // pred_check_branch
        %352 = sbr.rel (%p350) target = $region44
      $region43: #{tpu_custom_call.1} parent=39 // pred_region
        %vm353 = vcmask 7168
        %354 = vst.msk [vmem:[#allocation2] sm:$0xff] %vm353, -inf
        %355 = vst.msk [vmem:[#allocation2 + $0x8] sm:$0xff] %vm353, -inf
        %356 = vst.msk [vmem:[#allocation2 + $0x10] sm:$0xff] %vm353, -inf
        %357 = vst.msk [vmem:[#allocation2 + $0x18] sm:$0xff] %vm353, -inf
        %358 = vst.msk [vmem:[#allocation2 + $0x20] sm:$0xff] %vm353, -inf
        %359 = vst.msk [vmem:[#allocation2 + $0x28] sm:$0xff] %vm353, -inf
        %360 = vst.msk [vmem:[#allocation2 + $0x30] sm:$0xff] %vm353, -inf
        %361 = vst.msk [vmem:[#allocation2 + $0x38] sm:$0xff] %vm353, -inf
        %362 = vst.msk [vmem:[#allocation2 + $0x40] sm:$0xff] %vm353, -inf
        %363 = vst.msk [vmem:[#allocation2 + $0x48] sm:$0xff] %vm353, -inf
        %364 = vst.msk [vmem:[#allocation2 + $0x50] sm:$0xff] %vm353, -inf
        %365 = vst.msk [vmem:[#allocation2 + $0x58] sm:$0xff] %vm353, -inf
        %366 = vst.msk [vmem:[#allocation2 + $0x60] sm:$0xff] %vm353, -inf
        %367 = vst.msk [vmem:[#allocation2 + $0x68] sm:$0xff] %vm353, -inf
        %368 = vst.msk [vmem:[#allocation2 + $0x70] sm:$0xff] %vm353, -inf
        %369 = vst.msk [vmem:[#allocation2 + $0x78] sm:$0xff] %vm353, -inf
        %370 = vst.msk [vmem:[#allocation2 + $0x80] sm:$0xff] %vm353, -inf
        %371 = vst.msk [vmem:[#allocation2 + $0x88] sm:$0xff] %vm353, -inf
        %372 = vst.msk [vmem:[#allocation2 + $0x90] sm:$0xff] %vm353, -inf
        %373 = vst.msk [vmem:[#allocation2 + $0x98] sm:$0xff] %vm353, -inf
        %374 = vst.msk [vmem:[#allocation2 + $0xa0] sm:$0xff] %vm353, -inf
        %375 = vst.msk [vmem:[#allocation2 + $0xa8] sm:$0xff] %vm353, -inf
        %376 = vst.msk [vmem:[#allocation2 + $0xb0] sm:$0xff] %vm353, -inf
        %377 = vst.msk [vmem:[#allocation2 + $0xb8] sm:$0xff] %vm353, -inf
        %378 = vst.msk [vmem:[#allocation2 + $0xc0] sm:$0xff] %vm353, -inf
        %379 = vst.msk [vmem:[#allocation2 + $0xc8] sm:$0xff] %vm353, -inf
        %380 = vst.msk [vmem:[#allocation2 + $0xd0] sm:$0xff] %vm353, -inf
        %381 = vst.msk [vmem:[#allocation2 + $0xd8] sm:$0xff] %vm353, -inf
        %382 = vst.msk [vmem:[#allocation2 + $0xe0] sm:$0xff] %vm353, -inf
        %383 = vst.msk [vmem:[#allocation2 + $0xe8] sm:$0xff] %vm353, -inf
        %384 = vst.msk [vmem:[#allocation2 + $0xf0] sm:$0xff] %vm353, -inf
        %385 = vst.msk [vmem:[#allocation2 + $0xf8] sm:$0xff] %vm353, -inf
        %386 = vst.msk [vmem:[#allocation2 + $0x100] sm:$0xff] %vm353, -inf
        %387 = vst.msk [vmem:[#allocation2 + $0x108] sm:$0xff] %vm353, -inf
        %388 = vst.msk [vmem:[#allocation2 + $0x110] sm:$0xff] %vm353, -inf
        %389 = vst.msk [vmem:[#allocation2 + $0x118] sm:$0xff] %vm353, -inf
        %390 = vst.msk [vmem:[#allocation2 + $0x120] sm:$0xff] %vm353, -inf
        %391 = vst.msk [vmem:[#allocation2 + $0x128] sm:$0xff] %vm353, -inf
        %392 = vst.msk [vmem:[#allocation2 + $0x130] sm:$0xff] %vm353, -inf
        %393 = vst.msk [vmem:[#allocation2 + $0x138] sm:$0xff] %vm353, -inf
        %394 = vst.msk [vmem:[#allocation2 + $0x140] sm:$0xff] %vm353, -inf
        %395 = vst.msk [vmem:[#allocation2 + $0x148] sm:$0xff] %vm353, -inf
        %396 = vst.msk [vmem:[#allocation2 + $0x150] sm:$0xff] %vm353, -inf
        %397 = vst.msk [vmem:[#allocation2 + $0x158] sm:$0xff] %vm353, -inf
        %398 = vst.msk [vmem:[#allocation2 + $0x160] sm:$0xff] %vm353, -inf
        %399 = vst.msk [vmem:[#allocation2 + $0x168] sm:$0xff] %vm353, -inf
        %400 = vst.msk [vmem:[#allocation2 + $0x170] sm:$0xff] %vm353, -inf
        %401 = vst.msk [vmem:[#allocation2 + $0x178] sm:$0xff] %vm353, -inf
        %402 = vst.msk [vmem:[#allocation2 + $0x180] sm:$0xff] %vm353, -inf
        %403 = vst.msk [vmem:[#allocation2 + $0x188] sm:$0xff] %vm353, -inf
        %404 = vst.msk [vmem:[#allocation2 + $0x190] sm:$0xff] %vm353, -inf
        %405 = vst.msk [vmem:[#allocation2 + $0x198] sm:$0xff] %vm353, -inf
        %406 = vst.msk [vmem:[#allocation2 + $0x1a0] sm:$0xff] %vm353, -inf
        %407 = vst.msk [vmem:[#allocation2 + $0x1a8] sm:$0xff] %vm353, -inf
        %408 = vst.msk [vmem:[#allocation2 + $0x1b0] sm:$0xff] %vm353, -inf
        %409 = vst.msk [vmem:[#allocation2 + $0x1b8] sm:$0xff] %vm353, -inf
        %410 = vst.msk [vmem:[#allocation2 + $0x1c0] sm:$0xff] %vm353, -inf
        %411 = vst.msk [vmem:[#allocation2 + $0x1c8] sm:$0xff] %vm353, -inf
        %412 = vst.msk [vmem:[#allocation2 + $0x1d0] sm:$0xff] %vm353, -inf
        %413 = vst.msk [vmem:[#allocation2 + $0x1d8] sm:$0xff] %vm353, -inf
        %414 = vst.msk [vmem:[#allocation2 + $0x1e0] sm:$0xff] %vm353, -inf
        %415 = vst.msk [vmem:[#allocation2 + $0x1e8] sm:$0xff] %vm353, -inf
        %416 = vst.msk [vmem:[#allocation2 + $0x1f0] sm:$0xff] %vm353, -inf
        %417 = vst.msk [vmem:[#allocation2 + $0x1f8] sm:$0xff] %vm353, -inf
        %vm418 = vcmask 269312
        %419 = vst.msk [vmem:[#allocation3] sm:$0xff] %vm418, 0.0
        %420 = vst.msk [vmem:[#allocation3 + $0x8] sm:$0xff] %vm418, 0.0
        %421 = vst.msk [vmem:[#allocation3 + $0x10] sm:$0xff] %vm418, 0.0
        %422 = vst.msk [vmem:[#allocation3 + $0x18] sm:$0xff] %vm418, 0.0
        %423 = vst.msk [vmem:[#allocation3 + $0x20] sm:$0xff] %vm418, 0.0
        %424 = vst.msk [vmem:[#allocation3 + $0x28] sm:$0xff] %vm418, 0.0
        %425 = vst.msk [vmem:[#allocation3 + $0x30] sm:$0xff] %vm418, 0.0
        %426 = vst.msk [vmem:[#allocation3 + $0x38] sm:$0xff] %vm418, 0.0
        %427 = vst.msk [vmem:[#allocation3 + $0x40] sm:$0xff] %vm418, 0.0
        %428 = vst.msk [vmem:[#allocation3 + $0x48] sm:$0xff] %vm418, 0.0
        %429 = vst.msk [vmem:[#allocation3 + $0x50] sm:$0xff] %vm418, 0.0
        %430 = vst.msk [vmem:[#allocation3 + $0x58] sm:$0xff] %vm418, 0.0
        %431 = vst.msk [vmem:[#allocation3 + $0x60] sm:$0xff] %vm418, 0.0
        %432 = vst.msk [vmem:[#allocation3 + $0x68] sm:$0xff] %vm418, 0.0
        %433 = vst.msk [vmem:[#allocation3 + $0x70] sm:$0xff] %vm418, 0.0
        %434 = vst.msk [vmem:[#allocation3 + $0x78] sm:$0xff] %vm418, 0.0
        %435 = vst.msk [vmem:[#allocation3 + $0x80] sm:$0xff] %vm418, 0.0
        %436 = vst.msk [vmem:[#allocation3 + $0x88] sm:$0xff] %vm418, 0.0
        %437 = vst.msk [vmem:[#allocation3 + $0x90] sm:$0xff] %vm418, 0.0
        %438 = vst.msk [vmem:[#allocation3 + $0x98] sm:$0xff] %vm418, 0.0
        %439 = vst.msk [vmem:[#allocation3 + $0xa0] sm:$0xff] %vm418, 0.0
        %440 = vst.msk [vmem:[#allocation3 + $0xa8] sm:$0xff] %vm418, 0.0
        %441 = vst.msk [vmem:[#allocation3 + $0xb0] sm:$0xff] %vm418, 0.0
        %442 = vst.msk [vmem:[#allocation3 + $0xb8] sm:$0xff] %vm418, 0.0
        %443 = vst.msk [vmem:[#allocation3 + $0xc0] sm:$0xff] %vm418, 0.0
        %444 = vst.msk [vmem:[#allocation3 + $0xc8] sm:$0xff] %vm418, 0.0
        %445 = vst.msk [vmem:[#allocation3 + $0xd0] sm:$0xff] %vm418, 0.0
        %446 = vst.msk [vmem:[#allocation3 + $0xd8] sm:$0xff] %vm418, 0.0
        %447 = vst.msk [vmem:[#allocation3 + $0xe0] sm:$0xff] %vm418, 0.0
        %448 = vst.msk [vmem:[#allocation3 + $0xe8] sm:$0xff] %vm418, 0.0
        %449 = vst.msk [vmem:[#allocation3 + $0xf0] sm:$0xff] %vm418, 0.0
        %450 = vst.msk [vmem:[#allocation3 + $0xf8] sm:$0xff] %vm418, 0.0
        %451 = vst.msk [vmem:[#allocation3 + $0x100] sm:$0xff] %vm418, 0.0
        %452 = vst.msk [vmem:[#allocation3 + $0x108] sm:$0xff] %vm418, 0.0
        %453 = vst.msk [vmem:[#allocation3 + $0x110] sm:$0xff] %vm418, 0.0
        %454 = vst.msk [vmem:[#allocation3 + $0x118] sm:$0xff] %vm418, 0.0
        %455 = vst.msk [vmem:[#allocation3 + $0x120] sm:$0xff] %vm418, 0.0
        %456 = vst.msk [vmem:[#allocation3 + $0x128] sm:$0xff] %vm418, 0.0
        %457 = vst.msk [vmem:[#allocation3 + $0x130] sm:$0xff] %vm418, 0.0
        %458 = vst.msk [vmem:[#allocation3 + $0x138] sm:$0xff] %vm418, 0.0
        %459 = vst.msk [vmem:[#allocation3 + $0x140] sm:$0xff] %vm418, 0.0
        %460 = vst.msk [vmem:[#allocation3 + $0x148] sm:$0xff] %vm418, 0.0
        %461 = vst.msk [vmem:[#allocation3 + $0x150] sm:$0xff] %vm418, 0.0
        %462 = vst.msk [vmem:[#allocation3 + $0x158] sm:$0xff] %vm418, 0.0
        %463 = vst.msk [vmem:[#allocation3 + $0x160] sm:$0xff] %vm418, 0.0
        %464 = vst.msk [vmem:[#allocation3 + $0x168] sm:$0xff] %vm418, 0.0
        %465 = vst.msk [vmem:[#allocation3 + $0x170] sm:$0xff] %vm418, 0.0
        %466 = vst.msk [vmem:[#allocation3 + $0x178] sm:$0xff] %vm418, 0.0
        %467 = vst.msk [vmem:[#allocation3 + $0x180] sm:$0xff] %vm418, 0.0
        %468 = vst.msk [vmem:[#allocation3 + $0x188] sm:$0xff] %vm418, 0.0
        %469 = vst.msk [vmem:[#allocation3 + $0x190] sm:$0xff] %vm418, 0.0
        %470 = vst.msk [vmem:[#allocation3 + $0x198] sm:$0xff] %vm418, 0.0
        %471 = vst.msk [vmem:[#allocation3 + $0x1a0] sm:$0xff] %vm418, 0.0
        %472 = vst.msk [vmem:[#allocation3 + $0x1a8] sm:$0xff] %vm418, 0.0
        %473 = vst.msk [vmem:[#allocation3 + $0x1b0] sm:$0xff] %vm418, 0.0
        %474 = vst.msk [vmem:[#allocation3 + $0x1b8] sm:$0xff] %vm418, 0.0
        %475 = vst.msk [vmem:[#allocation3 + $0x1c0] sm:$0xff] %vm418, 0.0
        %476 = vst.msk [vmem:[#allocation3 + $0x1c8] sm:$0xff] %vm418, 0.0
        %477 = vst.msk [vmem:[#allocation3 + $0x1d0] sm:$0xff] %vm418, 0.0
        %478 = vst.msk [vmem:[#allocation3 + $0x1d8] sm:$0xff] %vm418, 0.0
        %479 = vst.msk [vmem:[#allocation3 + $0x1e0] sm:$0xff] %vm418, 0.0
        %480 = vst.msk [vmem:[#allocation3 + $0x1e8] sm:$0xff] %vm418, 0.0
        %481 = vst.msk [vmem:[#allocation3 + $0x1f0] sm:$0xff] %vm418, 0.0
        %482 = vst.msk [vmem:[#allocation3 + $0x1f8] sm:$0xff] %vm418, 0.0
      $region44: #{tpu_custom_call.1} parent=39 // pred_fallthru
        _
      %s483 = smul.u32 %s24, 512
      %s484 = sshra.s32 %s483, 3
      %s485 = sand.u32 %s483, 7
      %s486 = smul.addr %s484, 4
      %s487 = scalar_lea.vmem %s332, %s486
      %v488 = vld [vmem:[%s487] sm:$0xf]
      %v489 = vld [vmem:[%s487 + $0x4] sm:$0xf]
      %v490 = vld [vmem:[%s487 + $0x8] sm:$0xf]
      %v491 = vld [vmem:[%s487 + $0xc] sm:$0xf]
      %v492 = vld [vmem:[%s487 + $0x10] sm:$0xf]
      %v493 = vld [vmem:[%s487 + $0x14] sm:$0xf]
      %v494 = vld [vmem:[%s487 + $0x18] sm:$0xf]
      %v495 = vld [vmem:[%s487 + $0x1c] sm:$0xf]
      %v496 = vld [vmem:[%s487 + $0x20] sm:$0xf]
      %v497 = vld [vmem:[%s487 + $0x24] sm:$0xf]
      %v498 = vld [vmem:[%s487 + $0x28] sm:$0xf]
      %v499 = vld [vmem:[%s487 + $0x2c] sm:$0xf]
      %v500 = vld [vmem:[%s487 + $0x30] sm:$0xf]
      %v501 = vld [vmem:[%s487 + $0x34] sm:$0xf]
      %v502 = vld [vmem:[%s487 + $0x38] sm:$0xf]
      %v503 = vld [vmem:[%s487 + $0x3c] sm:$0xf]
      %v504 = vld [vmem:[%s487 + $0x40] sm:$0xf]
      %v505 = vld [vmem:[%s487 + $0x44] sm:$0xf]
      %v506 = vld [vmem:[%s487 + $0x48] sm:$0xf]
      %v507 = vld [vmem:[%s487 + $0x4c] sm:$0xf]
      %v508 = vld [vmem:[%s487 + $0x50] sm:$0xf]
      %v509 = vld [vmem:[%s487 + $0x54] sm:$0xf]
      %v510 = vld [vmem:[%s487 + $0x58] sm:$0xf]
      %v511 = vld [vmem:[%s487 + $0x5c] sm:$0xf]
      %v512 = vld [vmem:[%s487 + $0x60] sm:$0xf]
      %v513 = vld [vmem:[%s487 + $0x64] sm:$0xf]
      %v514 = vld [vmem:[%s487 + $0x68] sm:$0xf]
      %v515 = vld [vmem:[%s487 + $0x6c] sm:$0xf]
      %v516 = vld [vmem:[%s487 + $0x70] sm:$0xf]
      %v517 = vld [vmem:[%s487 + $0x74] sm:$0xf]
      %v518 = vld [vmem:[%s487 + $0x78] sm:$0xf]
      %v519 = vld [vmem:[%s487 + $0x7c] sm:$0xf]
      %v520 = vld [vmem:[%s487 + $0x80] sm:$0xf]
      %v521 = vld [vmem:[%s487 + $0x84] sm:$0xf]
      %v522 = vld [vmem:[%s487 + $0x88] sm:$0xf]
      %v523 = vld [vmem:[%s487 + $0x8c] sm:$0xf]
      %v524 = vld [vmem:[%s487 + $0x90] sm:$0xf]
      %v525 = vld [vmem:[%s487 + $0x94] sm:$0xf]
      %v526 = vld [vmem:[%s487 + $0x98] sm:$0xf]
      %v527 = vld [vmem:[%s487 + $0x9c] sm:$0xf]
      %v528 = vld [vmem:[%s487 + $0xa0] sm:$0xf]
      %v529 = vld [vmem:[%s487 + $0xa4] sm:$0xf]
      %v530 = vld [vmem:[%s487 + $0xa8] sm:$0xf]
      %v531 = vld [vmem:[%s487 + $0xac] sm:$0xf]
      %v532 = vld [vmem:[%s487 + $0xb0] sm:$0xf]
      %v533 = vld [vmem:[%s487 + $0xb4] sm:$0xf]
      %v534 = vld [vmem:[%s487 + $0xb8] sm:$0xf]
      %v535 = vld [vmem:[%s487 + $0xbc] sm:$0xf]
      %v536 = vld [vmem:[%s487 + $0xc0] sm:$0xf]
      %v537 = vld [vmem:[%s487 + $0xc4] sm:$0xf]
      %v538 = vld [vmem:[%s487 + $0xc8] sm:$0xf]
      %v539 = vld [vmem:[%s487 + $0xcc] sm:$0xf]
      %v540 = vld [vmem:[%s487 + $0xd0] sm:$0xf]
      %v541 = vld [vmem:[%s487 + $0xd4] sm:$0xf]
      %v542 = vld [vmem:[%s487 + $0xd8] sm:$0xf]
      %v543 = vld [vmem:[%s487 + $0xdc] sm:$0xf]
      %v544 = vld [vmem:[%s487 + $0xe0] sm:$0xf]
      %v545 = vld [vmem:[%s487 + $0xe4] sm:$0xf]
      %v546 = vld [vmem:[%s487 + $0xe8] sm:$0xf]
      %v547 = vld [vmem:[%s487 + $0xec] sm:$0xf]
      %v548 = vld [vmem:[%s487 + $0xf0] sm:$0xf]
      %v549 = vld [vmem:[%s487 + $0xf4] sm:$0xf]
      %v550 = vld [vmem:[%s487 + $0xf8] sm:$0xf]
      %v551 = vld [vmem:[%s487 + $0xfc] sm:$0xf]
      %s552 = smul.addr %s484, 4
      %s553 = scalar_lea.vmem %s337, %s552
      %v554 = vld [vmem:[%s553] sm:$0xf]
      %v555 = vld [vmem:[%s553 + $0x4] sm:$0xf]
      %v556 = vld [vmem:[%s553 + $0x8] sm:$0xf]
      %v557 = vld [vmem:[%s553 + $0xc] sm:$0xf]
      %v558 = vld [vmem:[%s553 + $0x10] sm:$0xf]
      %v559 = vld [vmem:[%s553 + $0x14] sm:$0xf]
      %v560 = vld [vmem:[%s553 + $0x18] sm:$0xf]
      %v561 = vld [vmem:[%s553 + $0x1c] sm:$0xf]
      %v562 = vld [vmem:[%s553 + $0x20] sm:$0xf]
      %v563 = vld [vmem:[%s553 + $0x24] sm:$0xf]
      %v564 = vld [vmem:[%s553 + $0x28] sm:$0xf]
      %v565 = vld [vmem:[%s553 + $0x2c] sm:$0xf]
      %v566 = vld [vmem:[%s553 + $0x30] sm:$0xf]
      %v567 = vld [vmem:[%s553 + $0x34] sm:$0xf]
      %v568 = vld [vmem:[%s553 + $0x38] sm:$0xf]
      %v569 = vld [vmem:[%s553 + $0x3c] sm:$0xf]
      %v570 = vld [vmem:[%s553 + $0x40] sm:$0xf]
      %v571 = vld [vmem:[%s553 + $0x44] sm:$0xf]
      %v572 = vld [vmem:[%s553 + $0x48] sm:$0xf]
      %v573 = vld [vmem:[%s553 + $0x4c] sm:$0xf]
      %v574 = vld [vmem:[%s553 + $0x50] sm:$0xf]
      %v575 = vld [vmem:[%s553 + $0x54] sm:$0xf]
      %v576 = vld [vmem:[%s553 + $0x58] sm:$0xf]
      %v577 = vld [vmem:[%s553 + $0x5c] sm:$0xf]
      %v578 = vld [vmem:[%s553 + $0x60] sm:$0xf]
      %v579 = vld [vmem:[%s553 + $0x64] sm:$0xf]
      %v580 = vld [vmem:[%s553 + $0x68] sm:$0xf]
      %v581 = vld [vmem:[%s553 + $0x6c] sm:$0xf]
      %v582 = vld [vmem:[%s553 + $0x70] sm:$0xf]
      %v583 = vld [vmem:[%s553 + $0x74] sm:$0xf]
      %v584 = vld [vmem:[%s553 + $0x78] sm:$0xf]
      %v585 = vld [vmem:[%s553 + $0x7c] sm:$0xf]
      %v586 = vld [vmem:[%s553 + $0x80] sm:$0xf]
      %v587 = vld [vmem:[%s553 + $0x84] sm:$0xf]
      %v588 = vld [vmem:[%s553 + $0x88] sm:$0xf]
      %v589 = vld [vmem:[%s553 + $0x8c] sm:$0xf]
      %v590 = vld [vmem:[%s553 + $0x90] sm:$0xf]
      %v591 = vld [vmem:[%s553 + $0x94] sm:$0xf]
      %v592 = vld [vmem:[%s553 + $0x98] sm:$0xf]
      %v593 = vld [vmem:[%s553 + $0x9c] sm:$0xf]
      %v594 = vld [vmem:[%s553 + $0xa0] sm:$0xf]
      %v595 = vld [vmem:[%s553 + $0xa4] sm:$0xf]
      %v596 = vld [vmem:[%s553 + $0xa8] sm:$0xf]
      %v597 = vld [vmem:[%s553 + $0xac] sm:$0xf]
      %v598 = vld [vmem:[%s553 + $0xb0] sm:$0xf]
      %v599 = vld [vmem:[%s553 + $0xb4] sm:$0xf]
      %v600 = vld [vmem:[%s553 + $0xb8] sm:$0xf]
      %v601 = vld [vmem:[%s553 + $0xbc] sm:$0xf]
      %v602 = vld [vmem:[%s553 + $0xc0] sm:$0xf]
      %v603 = vld [vmem:[%s553 + $0xc4] sm:$0xf]
      %v604 = vld [vmem:[%s553 + $0xc8] sm:$0xf]
      %v605 = vld [vmem:[%s553 + $0xcc] sm:$0xf]
      %v606 = vld [vmem:[%s553 + $0xd0] sm:$0xf]
      %v607 = vld [vmem:[%s553 + $0xd4] sm:$0xf]
      %v608 = vld [vmem:[%s553 + $0xd8] sm:$0xf]
      %v609 = vld [vmem:[%s553 + $0xdc] sm:$0xf]
      %v610 = vld [vmem:[%s553 + $0xe0] sm:$0xf]
      %v611 = vld [vmem:[%s553 + $0xe4] sm:$0xf]
      %v612 = vld [vmem:[%s553 + $0xe8] sm:$0xf]
      %v613 = vld [vmem:[%s553 + $0xec] sm:$0xf]
      %v614 = vld [vmem:[%s553 + $0xf0] sm:$0xf]
      %v615 = vld [vmem:[%s553 + $0xf4] sm:$0xf]
      %v616 = vld [vmem:[%s553 + $0xf8] sm:$0xf]
      %v617 = vld [vmem:[%s553 + $0xfc] sm:$0xf]
      %v618 = vld [vmem:[%s326] sm:$0xf]
      %v619 = vld [vmem:[%s326 + $0x4] sm:$0xf]
      %v620 = vld [vmem:[%s326 + $0x8] sm:$0xf]
      %v621 = vld [vmem:[%s326 + $0xc] sm:$0xf]
      %v622 = vld [vmem:[%s326 + $0x10] sm:$0xf]
      %v623 = vld [vmem:[%s326 + $0x14] sm:$0xf]
      %v624 = vld [vmem:[%s326 + $0x18] sm:$0xf]
      %v625 = vld [vmem:[%s326 + $0x1c] sm:$0xf]
      %v626 = vld [vmem:[%s326 + $0x20] sm:$0xf]
      %v627 = vld [vmem:[%s326 + $0x24] sm:$0xf]
      %v628 = vld [vmem:[%s326 + $0x28] sm:$0xf]
      %v629 = vld [vmem:[%s326 + $0x2c] sm:$0xf]
      %v630 = vld [vmem:[%s326 + $0x30] sm:$0xf]
      %v631 = vld [vmem:[%s326 + $0x34] sm:$0xf]
      %v632 = vld [vmem:[%s326 + $0x38] sm:$0xf]
      %v633 = vld [vmem:[%s326 + $0x3c] sm:$0xf]
      %v634 = vld [vmem:[%s326 + $0x40] sm:$0xf]
      %v635 = vld [vmem:[%s326 + $0x44] sm:$0xf]
      %v636 = vld [vmem:[%s326 + $0x48] sm:$0xf]
      %v637 = vld [vmem:[%s326 + $0x4c] sm:$0xf]
      %v638 = vld [vmem:[%s326 + $0x50] sm:$0xf]
      %v639 = vld [vmem:[%s326 + $0x54] sm:$0xf]
      %v640 = vld [vmem:[%s326 + $0x58] sm:$0xf]
      %v641 = vld [vmem:[%s326 + $0x5c] sm:$0xf]
      %v642 = vld [vmem:[%s326 + $0x60] sm:$0xf]
      %v643 = vld [vmem:[%s326 + $0x64] sm:$0xf]
      %v644 = vld [vmem:[%s326 + $0x68] sm:$0xf]
      %v645 = vld [vmem:[%s326 + $0x6c] sm:$0xf]
      %v646 = vld [vmem:[%s326 + $0x70] sm:$0xf]
      %v647 = vld [vmem:[%s326 + $0x74] sm:$0xf]
      %v648 = vld [vmem:[%s326 + $0x78] sm:$0xf]
      %v649 = vld [vmem:[%s326 + $0x7c] sm:$0xf]
      %v650 = vld [vmem:[%s326 + $0x80] sm:$0xf]
      %v651 = vld [vmem:[%s326 + $0x84] sm:$0xf]
      %v652 = vld [vmem:[%s326 + $0x88] sm:$0xf]
      %v653 = vld [vmem:[%s326 + $0x8c] sm:$0xf]
      %v654 = vld [vmem:[%s326 + $0x90] sm:$0xf]
      %v655 = vld [vmem:[%s326 + $0x94] sm:$0xf]
      %v656 = vld [vmem:[%s326 + $0x98] sm:$0xf]
      %v657 = vld [vmem:[%s326 + $0x9c] sm:$0xf]
      %v658 = vld [vmem:[%s326 + $0xa0] sm:$0xf]
      %v659 = vld [vmem:[%s326 + $0xa4] sm:$0xf]
      %v660 = vld [vmem:[%s326 + $0xa8] sm:$0xf]
      %v661 = vld [vmem:[%s326 + $0xac] sm:$0xf]
      %v662 = vld [vmem:[%s326 + $0xb0] sm:$0xf]
      %v663 = vld [vmem:[%s326 + $0xb4] sm:$0xf]
      %v664 = vld [vmem:[%s326 + $0xb8] sm:$0xf]
      %v665 = vld [vmem:[%s326 + $0xbc] sm:$0xf]
      %v666 = vld [vmem:[%s326 + $0xc0] sm:$0xf]
      %v667 = vld [vmem:[%s326 + $0xc4] sm:$0xf]
      %v668 = vld [vmem:[%s326 + $0xc8] sm:$0xf]
      %v669 = vld [vmem:[%s326 + $0xcc] sm:$0xf]
      %v670 = vld [vmem:[%s326 + $0xd0] sm:$0xf]
      %v671 = vld [vmem:[%s326 + $0xd4] sm:$0xf]
      %v672 = vld [vmem:[%s326 + $0xd8] sm:$0xf]
      %v673 = vld [vmem:[%s326 + $0xdc] sm:$0xf]
      %v674 = vld [vmem:[%s326 + $0xe0] sm:$0xf]
      %v675 = vld [vmem:[%s326 + $0xe4] sm:$0xf]
      %v676 = vld [vmem:[%s326 + $0xe8] sm:$0xf]
      %v677 = vld [vmem:[%s326 + $0xec] sm:$0xf]
      %v678 = vld [vmem:[%s326 + $0xf0] sm:$0xf]
      %v679 = vld [vmem:[%s326 + $0xf4] sm:$0xf]
      %v680 = vld [vmem:[%s326 + $0xf8] sm:$0xf]
      %v681 = vld [vmem:[%s326 + $0xfc] sm:$0xf]
      %v746 = vunpack.c.l.b16 %v618
      %v747 = vunpack.c.l.b16 %v619
      %v748 = vunpack.c.l.b16 %v620
      %v749 = vunpack.c.l.b16 %v621
      %v750 = vunpack.c.l.b16 %v622
      %v751 = vunpack.c.l.b16 %v623
      %v752 = vunpack.c.l.b16 %v624
      %v753 = vunpack.c.l.b16 %v625
      %v754 = vunpack.c.l.b16 %v626
      %v755 = vunpack.c.l.b16 %v627
      %v756 = vunpack.c.l.b16 %v628
      %v757 = vunpack.c.l.b16 %v629
      %v758 = vunpack.c.l.b16 %v630
      %v759 = vunpack.c.l.b16 %v631
      %v760 = vunpack.c.l.b16 %v632
      %v761 = vunpack.c.l.b16 %v633
      %v762 = vunpack.c.l.b16 %v634
      %v763 = vunpack.c.l.b16 %v635
      %v764 = vunpack.c.l.b16 %v636
      %v765 = vunpack.c.l.b16 %v637
      %v766 = vunpack.c.l.b16 %v638
      %v767 = vunpack.c.l.b16 %v639
      %v768 = vunpack.c.l.b16 %v640
      %v769 = vunpack.c.l.b16 %v641
      %v770 = vunpack.c.l.b16 %v642
      %v771 = vunpack.c.l.b16 %v643
      %v772 = vunpack.c.l.b16 %v644
      %v773 = vunpack.c.l.b16 %v645
      %v774 = vunpack.c.l.b16 %v646
      %v775 = vunpack.c.l.b16 %v647
      %v776 = vunpack.c.l.b16 %v648
      %v777 = vunpack.c.l.b16 %v649
      %v778 = vunpack.c.l.b16 %v650
      %v779 = vunpack.c.l.b16 %v651
      %v780 = vunpack.c.l.b16 %v652
      %v781 = vunpack.c.l.b16 %v653
      %v782 = vunpack.c.l.b16 %v654
      %v783 = vunpack.c.l.b16 %v655
      %v784 = vunpack.c.l.b16 %v656
      %v785 = vunpack.c.l.b16 %v657
      %v786 = vunpack.c.l.b16 %v658
      %v787 = vunpack.c.l.b16 %v659
      %v788 = vunpack.c.l.b16 %v660
      %v789 = vunpack.c.l.b16 %v661
      %v790 = vunpack.c.l.b16 %v662
      %v791 = vunpack.c.l.b16 %v663
      %v792 = vunpack.c.l.b16 %v664
      %v793 = vunpack.c.l.b16 %v665
      %v794 = vunpack.c.l.b16 %v666
      %v795 = vunpack.c.l.b16 %v667
      %v796 = vunpack.c.l.b16 %v668
      %v797 = vunpack.c.l.b16 %v669
      %v798 = vunpack.c.l.b16 %v670
      %v799 = vunpack.c.l.b16 %v671
      %v800 = vunpack.c.l.b16 %v672
      %v801 = vunpack.c.l.b16 %v673
      %v802 = vunpack.c.l.b16 %v674
      %v803 = vunpack.c.l.b16 %v675
      %v804 = vunpack.c.l.b16 %v676
      %v805 = vunpack.c.l.b16 %v677
      %v806 = vunpack.c.l.b16 %v678
      %v807 = vunpack.c.l.b16 %v679
      %v808 = vunpack.c.l.b16 %v680
      %v809 = vunpack.c.l.b16 %v681
      %v810 = vpack.c.b16 %v747, %v746
      %v811 = vpack.c.b16 %v749, %v748
      %v812 = vpack.c.b16 %v751, %v750
      %v813 = vpack.c.b16 %v753, %v752
      %v814 = vpack.c.b16 %v755, %v754
      %v815 = vpack.c.b16 %v757, %v756
      %v816 = vpack.c.b16 %v759, %v758
      %v817 = vpack.c.b16 %v761, %v760
      %v818 = vpack.c.b16 %v763, %v762
      %v819 = vpack.c.b16 %v765, %v764
      %v820 = vpack.c.b16 %v767, %v766
      %v821 = vpack.c.b16 %v769, %v768
      %v822 = vpack.c.b16 %v771, %v770
      %v823 = vpack.c.b16 %v773, %v772
      %v824 = vpack.c.b16 %v775, %v774
      %v825 = vpack.c.b16 %v777, %v776
      %v826 = vpack.c.b16 %v779, %v778
      %v827 = vpack.c.b16 %v781, %v780
      %v828 = vpack.c.b16 %v783, %v782
      %v829 = vpack.c.b16 %v785, %v784
      %v830 = vpack.c.b16 %v787, %v786
      %v831 = vpack.c.b16 %v789, %v788
      %v832 = vpack.c.b16 %v791, %v790
      %v833 = vpack.c.b16 %v793, %v792
      %v834 = vpack.c.b16 %v795, %v794
      %v835 = vpack.c.b16 %v797, %v796
      %v836 = vpack.c.b16 %v799, %v798
      %v837 = vpack.c.b16 %v801, %v800
      %v838 = vpack.c.b16 %v803, %v802
      %v839 = vpack.c.b16 %v805, %v804
      %v840 = vpack.c.b16 %v807, %v806
      %v841 = vpack.c.b16 %v809, %v808
      %v906 = vunpack.c.l.b16 %v488
      %v907 = vunpack.c.l.b16 %v489
      %v908 = vunpack.c.l.b16 %v490
      %v909 = vunpack.c.l.b16 %v491
      %v910 = vunpack.c.l.b16 %v492
      %v911 = vunpack.c.l.b16 %v493
      %v912 = vunpack.c.l.b16 %v494
      %v913 = vunpack.c.l.b16 %v495
      %v914 = vunpack.c.l.b16 %v496
      %v915 = vunpack.c.l.b16 %v497
      %v916 = vunpack.c.l.b16 %v498
      %v917 = vunpack.c.l.b16 %v499
      %v918 = vunpack.c.l.b16 %v500
      %v919 = vunpack.c.l.b16 %v501
      %v920 = vunpack.c.l.b16 %v502
      %v921 = vunpack.c.l.b16 %v503
      %v922 = vunpack.c.l.b16 %v504
      %v923 = vunpack.c.l.b16 %v505
      %v924 = vunpack.c.l.b16 %v506
      %v925 = vunpack.c.l.b16 %v507
      %v926 = vunpack.c.l.b16 %v508
      %v927 = vunpack.c.l.b16 %v509
      %v928 = vunpack.c.l.b16 %v510
      %v929 = vunpack.c.l.b16 %v511
      %v930 = vunpack.c.l.b16 %v512
      %v931 = vunpack.c.l.b16 %v513
      %v932 = vunpack.c.l.b16 %v514
      %v933 = vunpack.c.l.b16 %v515
      %v934 = vunpack.c.l.b16 %v516
      %v935 = vunpack.c.l.b16 %v517
      %v936 = vunpack.c.l.b16 %v518
      %v937 = vunpack.c.l.b16 %v519
      %v938 = vunpack.c.l.b16 %v520
      %v939 = vunpack.c.l.b16 %v521
      %v940 = vunpack.c.l.b16 %v522
      %v941 = vunpack.c.l.b16 %v523
      %v942 = vunpack.c.l.b16 %v524
      %v943 = vunpack.c.l.b16 %v525
      %v944 = vunpack.c.l.b16 %v526
      %v945 = vunpack.c.l.b16 %v527
      %v946 = vunpack.c.l.b16 %v528
      %v947 = vunpack.c.l.b16 %v529
      %v948 = vunpack.c.l.b16 %v530
      %v949 = vunpack.c.l.b16 %v531
      %v950 = vunpack.c.l.b16 %v532
      %v951 = vunpack.c.l.b16 %v533
      %v952 = vunpack.c.l.b16 %v534
      %v953 = vunpack.c.l.b16 %v535
      %v954 = vunpack.c.l.b16 %v536
      %v955 = vunpack.c.l.b16 %v537
      %v956 = vunpack.c.l.b16 %v538
      %v957 = vunpack.c.l.b16 %v539
      %v958 = vunpack.c.l.b16 %v540
      %v959 = vunpack.c.l.b16 %v541
      %v960 = vunpack.c.l.b16 %v542
      %v961 = vunpack.c.l.b16 %v543
      %v962 = vunpack.c.l.b16 %v544
      %v963 = vunpack.c.l.b16 %v545
      %v964 = vunpack.c.l.b16 %v546
      %v965 = vunpack.c.l.b16 %v547
      %v966 = vunpack.c.l.b16 %v548
      %v967 = vunpack.c.l.b16 %v549
      %v968 = vunpack.c.l.b16 %v550
      %v969 = vunpack.c.l.b16 %v551
      %v970 = vpack.c.b16 %v907, %v906
      %v971 = vpack.c.b16 %v909, %v908
      %v972 = vpack.c.b16 %v911, %v910
      %v973 = vpack.c.b16 %v913, %v912
      %v974 = vpack.c.b16 %v915, %v914
      %v975 = vpack.c.b16 %v917, %v916
      %v976 = vpack.c.b16 %v919, %v918
      %v977 = vpack.c.b16 %v921, %v920
      %v978 = vpack.c.b16 %v923, %v922
      %v979 = vpack.c.b16 %v925, %v924
      %v980 = vpack.c.b16 %v927, %v926
      %v981 = vpack.c.b16 %v929, %v928
      %v982 = vpack.c.b16 %v931, %v930
      %v983 = vpack.c.b16 %v933, %v932
      %v984 = vpack.c.b16 %v935, %v934
      %v985 = vpack.c.b16 %v937, %v936
      %v986 = vpack.c.b16 %v939, %v938
      %v987 = vpack.c.b16 %v941, %v940
      %v988 = vpack.c.b16 %v943, %v942
      %v989 = vpack.c.b16 %v945, %v944
      %v990 = vpack.c.b16 %v947, %v946
      %v991 = vpack.c.b16 %v949, %v948
      %v992 = vpack.c.b16 %v951, %v950
      %v993 = vpack.c.b16 %v953, %v952
      %v994 = vpack.c.b16 %v955, %v954
      %v995 = vpack.c.b16 %v957, %v956
      %v996 = vpack.c.b16 %v959, %v958
      %v997 = vpack.c.b16 %v961, %v960
      %v998 = vpack.c.b16 %v963, %v962
      %v999 = vpack.c.b16 %v965, %v964
      %v1000 = vpack.c.b16 %v967, %v966
      %v1001 = vpack.c.b16 %v969, %v968
      %vm1002 = vcmask 31744
      %v1004 = vsel %vm1002, %v810, 0
      %v1007 = vsel %vm1002, %v811, 0
      %v1010 = vsel %vm1002, %v812, 0
      %v1013 = vsel %vm1002, %v813, 0
      %v1016 = vsel %vm1002, %v814, 0
      %v1019 = vsel %vm1002, %v815, 0
      %v1022 = vsel %vm1002, %v816, 0
      %v1025 = vsel %vm1002, %v817, 0
      %v1028 = vsel %vm1002, %v818, 0
      %v1031 = vsel %vm1002, %v819, 0
      %v1034 = vsel %vm1002, %v820, 0
      %v1037 = vsel %vm1002, %v821, 0
      %v1040 = vsel %vm1002, %v822, 0
      %v1043 = vsel %vm1002, %v823, 0
      %v1046 = vsel %vm1002, %v824, 0
      %v1049 = vsel %vm1002, %v825, 0
      %v1052 = vsel %vm1002, %v826, 0
      %v1055 = vsel %vm1002, %v827, 0
      %v1058 = vsel %vm1002, %v828, 0
      %v1061 = vsel %vm1002, %v829, 0
      %v1064 = vsel %vm1002, %v830, 0
      %v1067 = vsel %vm1002, %v831, 0
      %v1070 = vsel %vm1002, %v832, 0
      %v1073 = vsel %vm1002, %v833, 0
      %v1076 = vsel %vm1002, %v834, 0
      %v1079 = vsel %vm1002, %v835, 0
      %v1082 = vsel %vm1002, %v836, 0
      %v1085 = vsel %vm1002, %v837, 0
      %v1088 = vsel %vm1002, %v838, 0
      %v1091 = vsel %vm1002, %v839, 0
      %v1094 = vsel %vm1002, %v840, 0
      %v1097 = vsel %vm1002, %v841, 0
      %v1100 = vsel %vm1002, %v970, 0
      %v1103 = vsel %vm1002, %v971, 0
      %v1106 = vsel %vm1002, %v972, 0
      %v1109 = vsel %vm1002, %v973, 0
      %v1112 = vsel %vm1002, %v974, 0
      %v1115 = vsel %vm1002, %v975, 0
      %v1118 = vsel %vm1002, %v976, 0
      %v1121 = vsel %vm1002, %v977, 0
      %v1124 = vsel %vm1002, %v978, 0
      %v1127 = vsel %vm1002, %v979, 0
      %v1130 = vsel %vm1002, %v980, 0
      %v1133 = vsel %vm1002, %v981, 0
      %v1136 = vsel %vm1002, %v982, 0
      %v1139 = vsel %vm1002, %v983, 0
      %v1142 = vsel %vm1002, %v984, 0
      %v1145 = vsel %vm1002, %v985, 0
      %v1148 = vsel %vm1002, %v986, 0
      %v1151 = vsel %vm1002, %v987, 0
      %v1154 = vsel %vm1002, %v988, 0
      %v1157 = vsel %vm1002, %v989, 0
      %v1160 = vsel %vm1002, %v990, 0
      %v1163 = vsel %vm1002, %v991, 0
      %v1166 = vsel %vm1002, %v992, 0
      %v1169 = vsel %vm1002, %v993, 0
      %v1172 = vsel %vm1002, %v994, 0
      %v1175 = vsel %vm1002, %v995, 0
      %v1178 = vsel %vm1002, %v996, 0
      %v1181 = vsel %vm1002, %v997, 0
      %v1184 = vsel %vm1002, %v998, 0
      %v1187 = vsel %vm1002, %v999, 0
      %v1190 = vsel %vm1002, %v1000, 0
      %v1193 = vsel %vm1002, %v1001, 0
      %1195 = vmatprep.subr.bf16.mxu0 0
      %1196 = vmatpush1.bf16.xpose.msra.mxu0 %v1100
      %1197 = vmatprep.subr.bf16.mxu0 0
      %1198 = vmatpush1.bf16.xpose.msra.mxu0 %v1103
      %1199 = vmatprep.subr.bf16.mxu0 0
      %1200 = vmatpush1.bf16.xpose.msra.mxu0 %v1106
      %1201 = vmatprep.subr.bf16.mxu0 0
      %1202 = vmatpush1.bf16.xpose.msra.mxu0 %v1109
      %1203 = vmatprep.subr.bf16.mxu0 0
      %1204 = vmatpush1.bf16.xpose.msra.mxu0 %v1112
      %1205 = vmatprep.subr.bf16.mxu0 0
      %1206 = vmatpush1.bf16.xpose.msra.mxu0 %v1115
      %1207 = vmatprep.subr.bf16.mxu0 0
      %1208 = vmatpush1.bf16.xpose.msra.mxu0 %v1118
      %1209 = vmatprep.subr.bf16.mxu0 0
      %1210 = vmatpush1.bf16.xpose.msra.mxu0 %v1121
      %1211 = vmatprep.subr.bf16.mxu0 0
      %1212 = vmatpush1.bf16.xpose.msra.mxu0 %v1124
      %1213 = vmatprep.subr.bf16.mxu0 0
      %1214 = vmatpush1.bf16.xpose.msra.mxu0 %v1127
      %1215 = vmatprep.subr.bf16.mxu0 0
      %1216 = vmatpush1.bf16.xpose.msra.mxu0 %v1130
      %1217 = vmatprep.subr.bf16.mxu0 0
      %1218 = vmatpush1.bf16.xpose.msra.mxu0 %v1133
      %1219 = vmatprep.subr.bf16.mxu0 0
      %1220 = vmatpush1.bf16.xpose.msra.mxu0 %v1136
      %1221 = vmatprep.subr.bf16.mxu0 0
      %1222 = vmatpush1.bf16.xpose.msra.mxu0 %v1139
      %1223 = vmatprep.subr.bf16.mxu0 0
      %1224 = vmatpush1.bf16.xpose.msra.mxu0 %v1142
      %1225 = vmatprep.subr.bf16.mxu0 0
      %1226 = vmatpush1.bf16.xpose.msra.mxu0 %v1145
      %1227 = vmatprep.mubr.bf16.mxu0 0
      %1228 = vmatmul.mubr.bf16.gmra.mrb[0].mxu0 %v1004
      %v1229 = vpop.f32.mrb[0].mxu0
      %v1230 = vadd.f32 0.0, %v1229
      %v1231 = vpop.f32.mrb[0].mxu0
      %v1232 = vadd.f32 0.0, %v1231
      %v1233 = vpop.f32.mrb[0].mxu0
      %v1234 = vadd.f32 0.0, %v1233
      %v1235 = vpop.f32.mrb[0].mxu0
      %v1236 = vadd.f32 0.0, %v1235
      %1237 = vmatprep.mubr.bf16.mxu0 0
      %1238 = vmatmul.mubr.bf16.gmra.mrb[0].mxu0 %v1007
      %v1239 = vpop.f32.mrb[0].mxu0
      %v1240 = vadd.f32 0.0, %v1239
      %v1241 = vpop.f32.mrb[0].mxu0
      %v1242 = vadd.f32 0.0, %v1241
      %v1243 = vpop.f32.mrb[0].mxu0
      %v1244 = vadd.f32 0.0, %v1243
      %v1245 = vpop.f32.mrb[0].mxu0
      %v1246 = vadd.f32 0.0, %v1245
      %1247 = vmatprep.mubr.bf16.mxu0 0
      %1248 = vmatmul.mubr.bf16.gmra.mrb[0].mxu0 %v1010
      %v1249 = vpop.f32.mrb[0].mxu0
      %v1250 = vadd.f32 0.0, %v1249
      %v1251 = vpop.f32.mrb[0].mxu0
      %v1252 = vadd.f32 0.0, %v1251
      %v1253 = vpop.f32.mrb[0].mxu0
      %v1254 = vadd.f32 0.0, %v1253
      %v1255 = vpop.f32.mrb[0].mxu0
      %v1256 = vadd.f32 0.0, %v1255
      %1257 = vmatprep.mubr.bf16.mxu0 0
      %1258 = vmatmul.mubr.bf16.gmra.mrb[0].mxu0 %v1013
      %v1259 = vpop.f32.mrb[0].mxu0
      %v1260 = vadd.f32 0.0, %v1259
      %v1261 = vpop.f32.mrb[0].mxu0
      %v1262 = vadd.f32 0.0, %v1261
      %v1263 = vpop.f32.mrb[0].mxu0
      %v1264 = vadd.f32 0.0, %v1263
      %v1265 = vpop.f32.mrb[0].mxu0
      %v1266 = vadd.f32 0.0, %v1265
      %1267 = vmatprep.mubr.bf16.mxu0 0
      %1268 = vmatmul.mubr.bf16.gmra.mrb[0].mxu0 %v1016
      %v1269 = vpop.f32.mrb[0].mxu0
      %v1270 = vadd.f32 0.0, %v1269
      %v1271 = vpop.f32.mrb[0].mxu0
      %v1272 = vadd.f32 0.0, %v1271
      %v1273 = vpop.f32.mrb[0].mxu0
      %v1274 = vadd.f32 0.0, %v1273
      %v1275 = vpop.f32.mrb[0].mxu0
      %v1276 = vadd.f32 0.0, %v1275
      %1277 = vmatprep.mubr.bf16.mxu0 0
      %1278 = vmatmul.mubr.bf16.gmra.mrb[0].mxu0 %v1019
      %v1279 = vpop.f32.mrb[0].mxu0
      %v1280 = vadd.f32 0.0, %v1279
      %v1281 = vpop.f32.mrb[0].mxu0
      %v1282 = vadd.f32 0.0, %v1281
      %v1283 = vpop.f32.mrb[0].mxu0
      %v1284 = vadd.f32 0.0, %v1283
      %v1285 = vpop.f32.mrb[0].mxu0
      %v1286 = vadd.f32 0.0, %v1285
      %1287 = vmatprep.mubr.bf16.mxu0 0
      %1288 = vmatmul.mubr.bf16.gmra.mrb[0].mxu0 %v1022
      %v1289 = vpop.f32.mrb[0].mxu0
      %v1290 = vadd.f32 0.0, %v1289
      %v1291 = vpop.f32.mrb[0].mxu0
      %v1292 = vadd.f32 0.0, %v1291
      %v1293 = vpop.f32.mrb[0].mxu0
      %v1294 = vadd.f32 0.0, %v1293
      %v1295 = vpop.f32.mrb[0].mxu0
      %v1296 = vadd.f32 0.0, %v1295
      %1297 = vmatprep.mubr.bf16.mxu0 0
      %1298 = vmatmul.mubr.bf16.gmra.mrb[0].mxu0 %v1025
      %v1299 = vpop.f32.mrb[0].mxu0
      %v1300 = vadd.f32 0.0, %v1299
      %v1301 = vpop.f32.mrb[0].mxu0
      %v1302 = vadd.f32 0.0, %v1301
      %v1303 = vpop.f32.mrb[0].mxu0
      %v1304 = vadd.f32 0.0, %v1303
      %v1305 = vpop.f32.mrb[0].mxu0
      %v1306 = vadd.f32 0.0, %v1305
      %1307 = vmatprep.mubr.bf16.mxu0 0
      %1308 = vmatmul.mubr.bf16.gmra.mrb[0].mxu0 %v1028
      %v1309 = vpop.f32.mrb[0].mxu0
      %v1310 = vadd.f32 0.0, %v1309
      %v1311 = vpop.f32.mrb[0].mxu0
      %v1312 = vadd.f32 0.0, %v1311
      %v1313 = vpop.f32.mrb[0].mxu0
      %v1314 = vadd.f32 0.0, %v1313
      %v1315 = vpop.f32.mrb[0].mxu0
      %v1316 = vadd.f32 0.0, %v1315
      %1317 = vmatprep.mubr.bf16.mxu0 0
      %1318 = vmatmul.mubr.bf16.gmra.mrb[0].mxu0 %v1031
      %v1319 = vpop.f32.mrb[0].mxu0
      %v1320 = vadd.f32 0.0, %v1319
      %v1321 = vpop.f32.mrb[0].mxu0
      %v1322 = vadd.f32 0.0, %v1321
      %v1323 = vpop.f32.mrb[0].mxu0
      %v1324 = vadd.f32 0.0, %v1323
      %v1325 = vpop.f32.mrb[0].mxu0
      %v1326 = vadd.f32 0.0, %v1325
      %1327 = vmatprep.mubr.bf16.mxu0 0
      %1328 = vmatmul.mubr.bf16.gmra.mrb[0].mxu0 %v1034
      %v1329 = vpop.f32.mrb[0].mxu0
      %v1330 = vadd.f32 0.0, %v1329
      %v1331 = vpop.f32.mrb[0].mxu0
      %v1332 = vadd.f32 0.0, %v1331
      %v1333 = vpop.f32.mrb[0].mxu0
      %v1334 = vadd.f32 0.0, %v1333
      %v1335 = vpop.f32.mrb[0].mxu0
      %v1336 = vadd.f32 0.0, %v1335
      %1337 = vmatprep.mubr.bf16.mxu0 0
      %1338 = vmatmul.mubr.bf16.gmra.mrb[0].mxu0 %v1037
      %v1339 = vpop.f32.mrb[0].mxu0
      %v1340 = vadd.f32 0.0, %v1339
      %v1341 = vpop.f32.mrb[0].mxu0
      %v1342 = vadd.f32 0.0, %v1341
      %v1343 = vpop.f32.mrb[0].mxu0
      %v1344 = vadd.f32 0.0, %v1343
      %v1345 = vpop.f32.mrb[0].mxu0
      %v1346 = vadd.f32 0.0, %v1345
      %1347 = vmatprep.mubr.bf16.mxu0 0
      %1348 = vmatmul.mubr.bf16.gmra.mrb[0].mxu0 %v1040
      %v1349 = vpop.f32.mrb[0].mxu0
      %v1350 = vadd.f32 0.0, %v1349
      %v1351 = vpop.f32.mrb[0].mxu0
      %v1352 = vadd.f32 0.0, %v1351
      %v1353 = vpop.f32.mrb[0].mxu0
      %v1354 = vadd.f32 0.0, %v1353
      %v1355 = vpop.f32.mrb[0].mxu0
      %v1356 = vadd.f32 0.0, %v1355
      %1357 = vmatprep.mubr.bf16.mxu0 0
      %1358 = vmatmul.mubr.bf16.gmra.mrb[0].mxu0 %v1043
      %v1359 = vpop.f32.mrb[0].mxu0
      %v1360 = vadd.f32 0.0, %v1359
      %v1361 = vpop.f32.mrb[0].mxu0
      %v1362 = vadd.f32 0.0, %v1361
      %v1363 = vpop.f32.mrb[0].mxu0
      %v1364 = vadd.f32 0.0, %v1363
      %v1365 = vpop.f32.mrb[0].mxu0
      %v1366 = vadd.f32 0.0, %v1365
      %1367 = vmatprep.mubr.bf16.mxu0 0
      %1368 = vmatmul.mubr.bf16.gmra.mrb[0].mxu0 %v1046
      %v1369 = vpop.f32.mrb[0].mxu0
      %v1370 = vadd.f32 0.0, %v1369
      %v1371 = vpop.f32.mrb[0].mxu0
      %v1372 = vadd.f32 0.0, %v1371
      %v1373 = vpop.f32.mrb[0].mxu0
      %v1374 = vadd.f32 0.0, %v1373
      %v1375 = vpop.f32.mrb[0].mxu0
      %v1376 = vadd.f32 0.0, %v1375
      %1377 = vmatprep.mubr.bf16.mxu0 0
      %1378 = vmatmul.mubr.bf16.gmra.mrb[0].mxu0 %v1049
      %v1379 = vpop.f32.mrb[0].mxu0
      %v1380 = vadd.f32 0.0, %v1379
      %v1381 = vpop.f32.mrb[0].mxu0
      %v1382 = vadd.f32 0.0, %v1381
      %v1383 = vpop.f32.mrb[0].mxu0
      %v1384 = vadd.f32 0.0, %v1383
      %v1385 = vpop.f32.mrb[0].mxu0
      %v1386 = vadd.f32 0.0, %v1385
      %1387 = vmatprep.mubr.bf16.mxu0 0
      %1388 = vmatmul.mubr.bf16.gmra.mrb[0].mxu0 %v1052
      %v1389 = vpop.f32.mrb[0].mxu0
      %v1390 = vadd.f32 0.0, %v1389
      %v1391 = vpop.f32.mrb[0].mxu0
      %v1392 = vadd.f32 0.0, %v1391
      %v1393 = vpop.f32.mrb[0].mxu0
      %v1394 = vadd.f32 0.0, %v1393
      %v1395 = vpop.f32.mrb[0].mxu0
      %v1396 = vadd.f32 0.0, %v1395
      %1397 = vmatprep.mubr.bf16.mxu0 0
      %1398 = vmatmul.mubr.bf16.gmra.mrb[0].mxu0 %v1055
      %v1399 = vpop.f32.mrb[0].mxu0
      %v1400 = vadd.f32 0.0, %v1399
      %v1401 = vpop.f32.mrb[0].mxu0
      %v1402 = vadd.f32 0.0, %v1401
      %v1403 = vpop.f32.mrb[0].mxu0
      %v1404 = vadd.f32 0.0, %v1403
      %v1405 = vpop.f32.mrb[0].mxu0
      %v1406 = vadd.f32 0.0, %v1405
      %1407 = vmatprep.mubr.bf16.mxu0 0
      %1408 = vmatmul.mubr.bf16.gmra.mrb[0].mxu0 %v1058
      %v1409 = vpop.f32.mrb[0].mxu0
      %v1410 = vadd.f32 0.0, %v1409
      %v1411 = vpop.f32.mrb[0].mxu0
      %v1412 = vadd.f32 0.0, %v1411
      %v1413 = vpop.f32.mrb[0].mxu0
      %v1414 = vadd.f32 0.0, %v1413
      %v1415 = vpop.f32.mrb[0].mxu0
      %v1416 = vadd.f32 0.0, %v1415
      %1417 = vmatprep.mubr.bf16.mxu0 0
      %1418 = vmatmul.mubr.bf16.gmra.mrb[0].mxu0 %v1061
      %v1419 = vpop.f32.mrb[0].mxu0
      %v1420 = vadd.f32 0.0, %v1419
      %v1421 = vpop.f32.mrb[0].mxu0
      %v1422 = vadd.f32 0.0, %v1421
      %v1423 = vpop.f32.mrb[0].mxu0
      %v1424 = vadd.f32 0.0, %v1423
      %v1425 = vpop.f32.mrb[0].mxu0
      %v1426 = vadd.f32 0.0, %v1425
      %1427 = vmatprep.mubr.bf16.mxu0 0
      %1428 = vmatmul.mubr.bf16.gmra.mrb[0].mxu0 %v1064
      %v1429 = vpop.f32.mrb[0].mxu0
      %v1430 = vadd.f32 0.0, %v1429
      %v1431 = vpop.f32.mrb[0].mxu0
      %v1432 = vadd.f32 0.0, %v1431
      %v1433 = vpop.f32.mrb[0].mxu0
      %v1434 = vadd.f32 0.0, %v1433
      %v1435 = vpop.f32.mrb[0].mxu0
      %v1436 = vadd.f32 0.0, %v1435
      %1437 = vmatprep.mubr.bf16.mxu0 0
      %1438 = vmatmul.mubr.bf16.gmra.mrb[0].mxu0 %v1067
      %v1439 = vpop.f32.mrb[0].mxu0
      %v1440 = vadd.f32 0.0, %v1439
      %v1441 = vpop.f32.mrb[0].mxu0
      %v1442 = vadd.f32 0.0, %v1441
      %v1443 = vpop.f32.mrb[0].mxu0
      %v1444 = vadd.f32 0.0, %v1443
      %v1445 = vpop.f32.mrb[0].mxu0
      %v1446 = vadd.f32 0.0, %v1445
      %1447 = vmatprep.mubr.bf16.mxu0 0
      %1448 = vmatmul.mubr.bf16.gmra.mrb[0].mxu0 %v1070
      %v1449 = vpop.f32.mrb[0].mxu0
      %v1450 = vadd.f32 0.0, %v1449
      %v1451 = vpop.f32.mrb[0].mxu0
      %v1452 = vadd.f32 0.0, %v1451
      %v1453 = vpop.f32.mrb[0].mxu0
      %v1454 = vadd.f32 0.0, %v1453
      %v1455 = vpop.f32.mrb[0].mxu0
      %v1456 = vadd.f32 0.0, %v1455
      %1457 = vmatprep.mubr.bf16.mxu0 0
      %1458 = vmatmul.mubr.bf16.gmra.mrb[0].mxu0 %v1073
      %v1459 = vpop.f32.mrb[0].mxu0
      %v1460 = vadd.f32 0.0, %v1459
      %v1461 = vpop.f32.mrb[0].mxu0
      %v1462 = vadd.f32 0.0, %v1461
      %v1463 = vpop.f32.mrb[0].mxu0
      %v1464 = vadd.f32 0.0, %v1463
      %v1465 = vpop.f32.mrb[0].mxu0
      %v1466 = vadd.f32 0.0, %v1465
      %1467 = vmatprep.mubr.bf16.mxu0 0
      %1468 = vmatmul.mubr.bf16.gmra.mrb[0].mxu0 %v1076
      %v1469 = vpop.f32.mrb[0].mxu0
      %v1470 = vadd.f32 0.0, %v1469
      %v1471 = vpop.f32.mrb[0].mxu0
      %v1472 = vadd.f32 0.0, %v1471
      %v1473 = vpop.f32.mrb[0].mxu0
      %v1474 = vadd.f32 0.0, %v1473
      %v1475 = vpop.f32.mrb[0].mxu0
      %v1476 = vadd.f32 0.0, %v1475
      %1477 = vmatprep.mubr.bf16.mxu0 0
      %1478 = vmatmul.mubr.bf16.gmra.mrb[0].mxu0 %v1079
      %v1479 = vpop.f32.mrb[0].mxu0
      %v1480 = vadd.f32 0.0, %v1479
      %v1481 = vpop.f32.mrb[0].mxu0
      %v1482 = vadd.f32 0.0, %v1481
      %v1483 = vpop.f32.mrb[0].mxu0
      %v1484 = vadd.f32 0.0, %v1483
      %v1485 = vpop.f32.mrb[0].mxu0
      %v1486 = vadd.f32 0.0, %v1485
      %1487 = vmatprep.mubr.bf16.mxu0 0
      %1488 = vmatmul.mubr.bf16.gmra.mrb[0].mxu0 %v1082
      %v1489 = vpop.f32.mrb[0].mxu0
      %v1490 = vadd.f32 0.0, %v1489
      %v1491 = vpop.f32.mrb[0].mxu0
      %v1492 = vadd.f32 0.0, %v1491
      %v1493 = vpop.f32.mrb[0].mxu0
      %v1494 = vadd.f32 0.0, %v1493
      %v1495 = vpop.f32.mrb[0].mxu0
      %v1496 = vadd.f32 0.0, %v1495
      %1497 = vmatprep.mubr.bf16.mxu0 0
      %1498 = vmatmul.mubr.bf16.gmra.mrb[0].mxu0 %v1085
      %v1499 = vpop.f32.mrb[0].mxu0
      %v1500 = vadd.f32 0.0, %v1499
      %v1501 = vpop.f32.mrb[0].mxu0
      %v1502 = vadd.f32 0.0, %v1501
      %v1503 = vpop.f32.mrb[0].mxu0
      %v1504 = vadd.f32 0.0, %v1503
      %v1505 = vpop.f32.mrb[0].mxu0
      %v1506 = vadd.f32 0.0, %v1505
      %1507 = vmatprep.mubr.bf16.mxu0 0
      %1508 = vmatmul.mubr.bf16.gmra.mrb[0].mxu0 %v1088
      %v1509 = vpop.f32.mrb[0].mxu0
      %v1510 = vadd.f32 0.0, %v1509
      %v1511 = vpop.f32.mrb[0].mxu0
      %v1512 = vadd.f32 0.0, %v1511
      %v1513 = vpop.f32.mrb[0].mxu0
      %v1514 = vadd.f32 0.0, %v1513
      %v1515 = vpop.f32.mrb[0].mxu0
      %v1516 = vadd.f32 0.0, %v1515
      %1517 = vmatprep.mubr.bf16.mxu0 0
      %1518 = vmatmul.mubr.bf16.gmra.mrb[0].mxu0 %v1091
      %v1519 = vpop.f32.mrb[0].mxu0
      %v1520 = vadd.f32 0.0, %v1519
      %v1521 = vpop.f32.mrb[0].mxu0
      %v1522 = vadd.f32 0.0, %v1521
      %v1523 = vpop.f32.mrb[0].mxu0
      %v1524 = vadd.f32 0.0, %v1523
      %v1525 = vpop.f32.mrb[0].mxu0
      %v1526 = vadd.f32 0.0, %v1525
      %1527 = vmatprep.mubr.bf16.mxu0 0
      %1528 = vmatmul.mubr.bf16.gmra.mrb[0].mxu0 %v1094
      %v1529 = vpop.f32.mrb[0].mxu0
      %v1530 = vadd.f32 0.0, %v1529
      %v1531 = vpop.f32.mrb[0].mxu0
      %v1532 = vadd.f32 0.0, %v1531
      %v1533 = vpop.f32.mrb[0].mxu0
      %v1534 = vadd.f32 0.0, %v1533
      %v1535 = vpop.f32.mrb[0].mxu0
      %v1536 = vadd.f32 0.0, %v1535
      %1537 = vmatprep.mubr.bf16.mxu0 0
      %1538 = vmatmul.mubr.bf16.gmra.mrb[0].mxu0 %v1097
      %v1539 = vpop.f32.mrb[0].mxu0
      %v1540 = vadd.f32 0.0, %v1539
      %v1541 = vpop.f32.mrb[0].mxu0
      %v1542 = vadd.f32 0.0, %v1541
      %v1543 = vpop.f32.mrb[0].mxu0
      %v1544 = vadd.f32 0.0, %v1543
      %v1545 = vpop.f32.mrb[0].mxu0
      %v1546 = vadd.f32 0.0, %v1545
      %1547 = vdwg.mxu0
      %1548 = vmatprep.subr.bf16.mxu0 0
      %1549 = vmatpush1.bf16.xpose.msra.mxu0 %v1148
      %1550 = vmatprep.subr.bf16.mxu0 0
      %1551 = vmatpush1.bf16.xpose.msra.mxu0 %v1151
      %1552 = vmatprep.subr.bf16.mxu0 0
      %1553 = vmatpush1.bf16.xpose.msra.mxu0 %v1154
      %1554 = vmatprep.subr.bf16.mxu0 0
      %1555 = vmatpush1.bf16.xpose.msra.mxu0 %v1157
      %1556 = vmatprep.subr.bf16.mxu0 0
      %1557 = vmatpush1.bf16.xpose.msra.mxu0 %v1160
      %1558 = vmatprep.subr.bf16.mxu0 0
      %1559 = vmatpush1.bf16.xpose.msra.mxu0 %v1163
      %1560 = vmatprep.subr.bf16.mxu0 0
      %1561 = vmatpush1.bf16.xpose.msra.mxu0 %v1166
      %1562 = vmatprep.subr.bf16.mxu0 0
      %1563 = vmatpush1.bf16.xpose.msra.mxu0 %v1169
      %1564 = vmatprep.subr.bf16.mxu0 0
      %1565 = vmatpush1.bf16.xpose.msra.mxu0 %v1172
      %1566 = vmatprep.subr.bf16.mxu0 0
      %1567 = vmatpush1.bf16.xpose.msra.mxu0 %v1175
      %1568 = vmatprep.subr.bf16.mxu0 0
      %1569 = vmatpush1.bf16.xpose.msra.mxu0 %v1178
      %1570 = vmatprep.subr.bf16.mxu0 0
      %1571 = vmatpush1.bf16.xpose.msra.mxu0 %v1181
      %1572 = vmatprep.subr.bf16.mxu0 0
      %1573 = vmatpush1.bf16.xpose.msra.mxu0 %v1184
      %1574 = vmatprep.subr.bf16.mxu0 0
      %1575 = vmatpush1.bf16.xpose.msra.mxu0 %v1187
      %1576 = vmatprep.subr.bf16.mxu0 0
      %1577 = vmatpush1.bf16.xpose.msra.mxu0 %v1190
      %1578 = vmatprep.subr.bf16.mxu0 0
      %1579 = vmatpush1.bf16.xpose.msra.mxu0 %v1193
      %1580 = vmatprep.mubr.bf16.mxu0 0
      %1581 = vmatmul.mubr.bf16.gmra.mrb[0].mxu0 %v1004
      %v1582 = vpop.f32.mrb[0].mxu0
      %v1583 = vadd.f32 0.0, %v1582
      %v1584 = vpop.f32.mrb[0].mxu0
      %v1585 = vadd.f32 0.0, %v1584
      %v1586 = vpop.f32.mrb[0].mxu0
      %v1587 = vadd.f32 0.0, %v1586
      %v1588 = vpop.f32.mrb[0].mxu0
      %v1589 = vadd.f32 0.0, %v1588
      %1590 = vmatprep.mubr.bf16.mxu0 0
      %1591 = vmatmul.mubr.bf16.gmra.mrb[0].mxu0 %v1007
      %v1592 = vpop.f32.mrb[0].mxu0
      %v1593 = vadd.f32 0.0, %v1592
      %v1594 = vpop.f32.mrb[0].mxu0
      %v1595 = vadd.f32 0.0, %v1594
      %v1596 = vpop.f32.mrb[0].mxu0
      %v1597 = vadd.f32 0.0, %v1596
      %v1598 = vpop.f32.mrb[0].mxu0
      %v1599 = vadd.f32 0.0, %v1598
      %1600 = vmatprep.mubr.bf16.mxu0 0
      %1601 = vmatmul.mubr.bf16.gmra.mrb[0].mxu0 %v1010
      %v1602 = vpop.f32.mrb[0].mxu0
      %v1603 = vadd.f32 0.0, %v1602
      %v1604 = vpop.f32.mrb[0].mxu0
      %v1605 = vadd.f32 0.0, %v1604
      %v1606 = vpop.f32.mrb[0].mxu0
      %v1607 = vadd.f32 0.0, %v1606
      %v1608 = vpop.f32.mrb[0].mxu0
      %v1609 = vadd.f32 0.0, %v1608
      %1610 = vmatprep.mubr.bf16.mxu0 0
      %1611 = vmatmul.mubr.bf16.gmra.mrb[0].mxu0 %v1013
      %v1612 = vpop.f32.mrb[0].mxu0
      %v1613 = vadd.f32 0.0, %v1612
      %v1614 = vpop.f32.mrb[0].mxu0
      %v1615 = vadd.f32 0.0, %v1614
      %v1616 = vpop.f32.mrb[0].mxu0
      %v1617 = vadd.f32 0.0, %v1616
      %v1618 = vpop.f32.mrb[0].mxu0
      %v1619 = vadd.f32 0.0, %v1618
      %1620 = vmatprep.mubr.bf16.mxu0 0
      %1621 = vmatmul.mubr.bf16.gmra.mrb[0].mxu0 %v1016
      %v1622 = vpop.f32.mrb[0].mxu0
      %v1623 = vadd.f32 0.0, %v1622
      %v1624 = vpop.f32.mrb[0].mxu0
      %v1625 = vadd.f32 0.0, %v1624
      %v1626 = vpop.f32.mrb[0].mxu0
      %v1627 = vadd.f32 0.0, %v1626
      %v1628 = vpop.f32.mrb[0].mxu0
      %v1629 = vadd.f32 0.0, %v1628
      %1630 = vmatprep.mubr.bf16.mxu0 0
      %1631 = vmatmul.mubr.bf16.gmra.mrb[0].mxu0 %v1019
      %v1632 = vpop.f32.mrb[0].mxu0
      %v1633 = vadd.f32 0.0, %v1632
      %v1634 = vpop.f32.mrb[0].mxu0
      %v1635 = vadd.f32 0.0, %v1634
      %v1636 = vpop.f32.mrb[0].mxu0
      %v1637 = vadd.f32 0.0, %v1636
      %v1638 = vpop.f32.mrb[0].mxu0
      %v1639 = vadd.f32 0.0, %v1638
      %1640 = vmatprep.mubr.bf16.mxu0 0
      %1641 = vmatmul.mubr.bf16.gmra.mrb[0].mxu0 %v1022
      %v1642 = vpop.f32.mrb[0].mxu0
      %v1643 = vadd.f32 0.0, %v1642
      %v1644 = vpop.f32.mrb[0].mxu0
      %v1645 = vadd.f32 0.0, %v1644
      %v1646 = vpop.f32.mrb[0].mxu0
      %v1647 = vadd.f32 0.0, %v1646
      %v1648 = vpop.f32.mrb[0].mxu0
      %v1649 = vadd.f32 0.0, %v1648
      %1650 = vmatprep.mubr.bf16.mxu0 0
      %1651 = vmatmul.mubr.bf16.gmra.mrb[0].mxu0 %v1025
      %v1652 = vpop.f32.mrb[0].mxu0
      %v1653 = vadd.f32 0.0, %v1652
      %v1654 = vpop.f32.mrb[0].mxu0
      %v1655 = vadd.f32 0.0, %v1654
      %v1656 = vpop.f32.mrb[0].mxu0
      %v1657 = vadd.f32 0.0, %v1656
      %v1658 = vpop.f32.mrb[0].mxu0
      %v1659 = vadd.f32 0.0, %v1658
      %1660 = vmatprep.mubr.bf16.mxu0 0
      %1661 = vmatmul.mubr.bf16.gmra.mrb[0].mxu0 %v1028
      %v1662 = vpop.f32.mrb[0].mxu0
      %v1663 = vadd.f32 0.0, %v1662
      %v1664 = vpop.f32.mrb[0].mxu0
      %v1665 = vadd.f32 0.0, %v1664
      %v1666 = vpop.f32.mrb[0].mxu0
      %v1667 = vadd.f32 0.0, %v1666
      %v1668 = vpop.f32.mrb[0].mxu0
      %v1669 = vadd.f32 0.0, %v1668
      %1670 = vmatprep.mubr.bf16.mxu0 0
      %1671 = vmatmul.mubr.bf16.gmra.mrb[0].mxu0 %v1031
      %v1672 = vpop.f32.mrb[0].mxu0
      %v1673 = vadd.f32 0.0, %v1672
      %v1674 = vpop.f32.mrb[0].mxu0
      %v1675 = vadd.f32 0.0, %v1674
      %v1676 = vpop.f32.mrb[0].mxu0
      %v1677 = vadd.f32 0.0, %v1676
      %v1678 = vpop.f32.mrb[0].mxu0
      %v1679 = vadd.f32 0.0, %v1678
      %1680 = vmatprep.mubr.bf16.mxu0 0
      %1681 = vmatmul.mubr.bf16.gmra.mrb[0].mxu0 %v1034
      %v1682 = vpop.f32.mrb[0].mxu0
      %v1683 = vadd.f32 0.0, %v1682
      %v1684 = vpop.f32.mrb[0].mxu0
      %v1685 = vadd.f32 0.0, %v1684
      %v1686 = vpop.f32.mrb[0].mxu0
      %v1687 = vadd.f32 0.0, %v1686
      %v1688 = vpop.f32.mrb[0].mxu0
      %v1689 = vadd.f32 0.0, %v1688
      %1690 = vmatprep.mubr.bf16.mxu0 0
      %1691 = vmatmul.mubr.bf16.gmra.mrb[0].mxu0 %v1037
      %v1692 = vpop.f32.mrb[0].mxu0
      %v1693 = vadd.f32 0.0, %v1692
      %v1694 = vpop.f32.mrb[0].mxu0
      %v1695 = vadd.f32 0.0, %v1694
      %v1696 = vpop.f32.mrb[0].mxu0
      %v1697 = vadd.f32 0.0, %v1696
      %v1698 = vpop.f32.mrb[0].mxu0
      %v1699 = vadd.f32 0.0, %v1698
      %1700 = vmatprep.mubr.bf16.mxu0 0
      %1701 = vmatmul.mubr.bf16.gmra.mrb[0].mxu0 %v1040
      %v1702 = vpop.f32.mrb[0].mxu0
      %v1703 = vadd.f32 0.0, %v1702
      %v1704 = vpop.f32.mrb[0].mxu0
      %v1705 = vadd.f32 0.0, %v1704
      %v1706 = vpop.f32.mrb[0].mxu0
      %v1707 = vadd.f32 0.0, %v1706
      %v1708 = vpop.f32.mrb[0].mxu0
      %v1709 = vadd.f32 0.0, %v1708
      %1710 = vmatprep.mubr.bf16.mxu0 0
      %1711 = vmatmul.mubr.bf16.gmra.mrb[0].mxu0 %v1043
      %v1712 = vpop.f32.mrb[0].mxu0
      %v1713 = vadd.f32 0.0, %v1712
      %v1714 = vpop.f32.mrb[0].mxu0
      %v1715 = vadd.f32 0.0, %v1714
      %v1716 = vpop.f32.mrb[0].mxu0
      %v1717 = vadd.f32 0.0, %v1716
      %v1718 = vpop.f32.mrb[0].mxu0
      %v1719 = vadd.f32 0.0, %v1718
      %1720 = vmatprep.mubr.bf16.mxu0 0
      %1721 = vmatmul.mubr.bf16.gmra.mrb[0].mxu0 %v1046
      %v1722 = vpop.f32.mrb[0].mxu0
      %v1723 = vadd.f32 0.0, %v1722
      %v1724 = vpop.f32.mrb[0].mxu0
      %v1725 = vadd.f32 0.0, %v1724
      %v1726 = vpop.f32.mrb[0].mxu0
      %v1727 = vadd.f32 0.0, %v1726
      %v1728 = vpop.f32.mrb[0].mxu0
      %v1729 = vadd.f32 0.0, %v1728
      %1730 = vmatprep.mubr.bf16.mxu0 0
      %1731 = vmatmul.mubr.bf16.gmra.mrb[0].mxu0 %v1049
      %v1732 = vpop.f32.mrb[0].mxu0
      %v1733 = vadd.f32 0.0, %v1732
      %v1734 = vpop.f32.mrb[0].mxu0
      %v1735 = vadd.f32 0.0, %v1734
      %v1736 = vpop.f32.mrb[0].mxu0
      %v1737 = vadd.f32 0.0, %v1736
      %v1738 = vpop.f32.mrb[0].mxu0
      %v1739 = vadd.f32 0.0, %v1738
      %1740 = vmatprep.mubr.bf16.mxu0 0
      %1741 = vmatmul.mubr.bf16.gmra.mrb[0].mxu0 %v1052
      %v1742 = vpop.f32.mrb[0].mxu0
      %v1743 = vadd.f32 0.0, %v1742
      %v1744 = vpop.f32.mrb[0].mxu0
      %v1745 = vadd.f32 0.0, %v1744
      %v1746 = vpop.f32.mrb[0].mxu0
      %v1747 = vadd.f32 0.0, %v1746
      %v1748 = vpop.f32.mrb[0].mxu0
      %v1749 = vadd.f32 0.0, %v1748
      %1750 = vmatprep.mubr.bf16.mxu0 0
      %1751 = vmatmul.mubr.bf16.gmra.mrb[0].mxu0 %v1055
      %v1752 = vpop.f32.mrb[0].mxu0
      %v1753 = vadd.f32 0.0, %v1752
      %v1754 = vpop.f32.mrb[0].mxu0
      %v1755 = vadd.f32 0.0, %v1754
      %v1756 = vpop.f32.mrb[0].mxu0
      %v1757 = vadd.f32 0.0, %v1756
      %v1758 = vpop.f32.mrb[0].mxu0
      %v1759 = vadd.f32 0.0, %v1758
      %1760 = vmatprep.mubr.bf16.mxu0 0
      %1761 = vmatmul.mubr.bf16.gmra.mrb[0].mxu0 %v1058
      %v1762 = vpop.f32.mrb[0].mxu0
      %v1763 = vadd.f32 0.0, %v1762
      %v1764 = vpop.f32.mrb[0].mxu0
      %v1765 = vadd.f32 0.0, %v1764
      %v1766 = vpop.f32.mrb[0].mxu0
      %v1767 = vadd.f32 0.0, %v1766
      %v1768 = vpop.f32.mrb[0].mxu0
      %v1769 = vadd.f32 0.0, %v1768
      %1770 = vmatprep.mubr.bf16.mxu0 0
      %1771 = vmatmul.mubr.bf16.gmra.mrb[0].mxu0 %v1061
      %v1772 = vpop.f32.mrb[0].mxu0
      %v1773 = vadd.f32 0.0, %v1772
      %v1774 = vpop.f32.mrb[0].mxu0
      %v1775 = vadd.f32 0.0, %v1774
      %v1776 = vpop.f32.mrb[0].mxu0
      %v1777 = vadd.f32 0.0, %v1776
      %v1778 = vpop.f32.mrb[0].mxu0
      %v1779 = vadd.f32 0.0, %v1778
      %1780 = vmatprep.mubr.bf16.mxu0 0
      %1781 = vmatmul.mubr.bf16.gmra.mrb[0].mxu0 %v1064
      %v1782 = vpop.f32.mrb[0].mxu0
      %v1783 = vadd.f32 0.0, %v1782
      %v1784 = vpop.f32.mrb[0].mxu0
      %v1785 = vadd.f32 0.0, %v1784
      %v1786 = vpop.f32.mrb[0].mxu0
      %v1787 = vadd.f32 0.0, %v1786
      %v1788 = vpop.f32.mrb[0].mxu0
      %v1789 = vadd.f32 0.0, %v1788
      %1790 = vmatprep.mubr.bf16.mxu0 0
      %1791 = vmatmul.mubr.bf16.gmra.mrb[0].mxu0 %v1067
      %v1792 = vpop.f32.mrb[0].mxu0
      %v1793 = vadd.f32 0.0, %v1792
      %v1794 = vpop.f32.mrb[0].mxu0
      %v1795 = vadd.f32 0.0, %v1794
      %v1796 = vpop.f32.mrb[0].mxu0
      %v1797 = vadd.f32 0.0, %v1796
      %v1798 = vpop.f32.mrb[0].mxu0
      %v1799 = vadd.f32 0.0, %v1798
      %1800 = vmatprep.mubr.bf16.mxu0 0
      %1801 = vmatmul.mubr.bf16.gmra.mrb[0].mxu0 %v1070
      %v1802 = vpop.f32.mrb[0].mxu0
      %v1803 = vadd.f32 0.0, %v1802
      %v1804 = vpop.f32.mrb[0].mxu0
      %v1805 = vadd.f32 0.0, %v1804
      %v1806 = vpop.f32.mrb[0].mxu0
      %v1807 = vadd.f32 0.0, %v1806
      %v1808 = vpop.f32.mrb[0].mxu0
      %v1809 = vadd.f32 0.0, %v1808
      %1810 = vmatprep.mubr.bf16.mxu0 0
      %1811 = vmatmul.mubr.bf16.gmra.mrb[0].mxu0 %v1073
      %v1812 = vpop.f32.mrb[0].mxu0
      %v1813 = vadd.f32 0.0, %v1812
      %v1814 = vpop.f32.mrb[0].mxu0
      %v1815 = vadd.f32 0.0, %v1814
      %v1816 = vpop.f32.mrb[0].mxu0
      %v1817 = vadd.f32 0.0, %v1816
      %v1818 = vpop.f32.mrb[0].mxu0
      %v1819 = vadd.f32 0.0, %v1818
      %1820 = vmatprep.mubr.bf16.mxu0 0
      %1821 = vmatmul.mubr.bf16.gmra.mrb[0].mxu0 %v1076
      %v1822 = vpop.f32.mrb[0].mxu0
      %v1823 = vadd.f32 0.0, %v1822
      %v1824 = vpop.f32.mrb[0].mxu0
      %v1825 = vadd.f32 0.0, %v1824
      %v1826 = vpop.f32.mrb[0].mxu0
      %v1827 = vadd.f32 0.0, %v1826
      %v1828 = vpop.f32.mrb[0].mxu0
      %v1829 = vadd.f32 0.0, %v1828
      %1830 = vmatprep.mubr.bf16.mxu0 0
      %1831 = vmatmul.mubr.bf16.gmra.mrb[0].mxu0 %v1079
      %v1832 = vpop.f32.mrb[0].mxu0
      %v1833 = vadd.f32 0.0, %v1832
      %v1834 = vpop.f32.mrb[0].mxu0
      %v1835 = vadd.f32 0.0, %v1834
      %v1836 = vpop.f32.mrb[0].mxu0
      %v1837 = vadd.f32 0.0, %v1836
      %v1838 = vpop.f32.mrb[0].mxu0
      %v1839 = vadd.f32 0.0, %v1838
      %1840 = vmatprep.mubr.bf16.mxu0 0
      %1841 = vmatmul.mubr.bf16.gmra.mrb[0].mxu0 %v1082
      %v1842 = vpop.f32.mrb[0].mxu0
      %v1843 = vadd.f32 0.0, %v1842
      %v1844 = vpop.f32.mrb[0].mxu0
      %v1845 = vadd.f32 0.0, %v1844
      %v1846 = vpop.f32.mrb[0].mxu0
      %v1847 = vadd.f32 0.0, %v1846
      %v1848 = vpop.f32.mrb[0].mxu0
      %v1849 = vadd.f32 0.0, %v1848
      %1850 = vmatprep.mubr.bf16.mxu0 0
      %1851 = vmatmul.mubr.bf16.gmra.mrb[0].mxu0 %v1085
      %v1852 = vpop.f32.mrb[0].mxu0
      %v1853 = vadd.f32 0.0, %v1852
      %v1854 = vpop.f32.mrb[0].mxu0
      %v1855 = vadd.f32 0.0, %v1854
      %v1856 = vpop.f32.mrb[0].mxu0
      %v1857 = vadd.f32 0.0, %v1856
      %v1858 = vpop.f32.mrb[0].mxu0
      %v1859 = vadd.f32 0.0, %v1858
      %1860 = vmatprep.mubr.bf16.mxu0 0
      %1861 = vmatmul.mubr.bf16.gmra.mrb[0].mxu0 %v1088
      %v1862 = vpop.f32.mrb[0].mxu0
      %v1863 = vadd.f32 0.0, %v1862
      %v1864 = vpop.f32.mrb[0].mxu0
      %v1865 = vadd.f32 0.0, %v1864
      %v1866 = vpop.f32.mrb[0].mxu0
      %v1867 = vadd.f32 0.0, %v1866
      %v1868 = vpop.f32.mrb[0].mxu0
      %v1869 = vadd.f32 0.0, %v1868
      %1870 = vmatprep.mubr.bf16.mxu0 0
      %1871 = vmatmul.mubr.bf16.gmra.mrb[0].mxu0 %v1091
      %v1872 = vpop.f32.mrb[0].mxu0
      %v1873 = vadd.f32 0.0, %v1872
      %v1874 = vpop.f32.mrb[0].mxu0
      %v1875 = vadd.f32 0.0, %v1874
      %v1876 = vpop.f32.mrb[0].mxu0
      %v1877 = vadd.f32 0.0, %v1876
      %v1878 = vpop.f32.mrb[0].mxu0
      %v1879 = vadd.f32 0.0, %v1878
      %1880 = vmatprep.mubr.bf16.mxu0 0
      %1881 = vmatmul.mubr.bf16.gmra.mrb[0].mxu0 %v1094
      %v1882 = vpop.f32.mrb[0].mxu0
      %v1883 = vadd.f32 0.0, %v1882
      %v1884 = vpop.f32.mrb[0].mxu0
      %v1885 = vadd.f32 0.0, %v1884
      %v1886 = vpop.f32.mrb[0].mxu0
      %v1887 = vadd.f32 0.0, %v1886
      %v1888 = vpop.f32.mrb[0].mxu0
      %v1889 = vadd.f32 0.0, %v1888
      %1890 = vmatprep.mubr.bf16.mxu0 0
      %1891 = vmatmul.mubr.bf16.gmra.mrb[0].mxu0 %v1097
      %v1892 = vpop.f32.mrb[0].mxu0
      %v1893 = vadd.f32 0.0, %v1892
      %v1894 = vpop.f32.mrb[0].mxu0
      %v1895 = vadd.f32 0.0, %v1894
      %v1896 = vpop.f32.mrb[0].mxu0
      %v1897 = vadd.f32 0.0, %v1896
      %v1898 = vpop.f32.mrb[0].mxu0
      %v1899 = vadd.f32 0.0, %v1898
      %1900 = vdwg.mxu0
      %v1901 = vld [vmem:[#allocation2] sm:$0xff]
      %v1902 = vld [vmem:[#allocation2 + $0x8] sm:$0xff]
      %v1903 = vld [vmem:[#allocation2 + $0x10] sm:$0xff]
      %v1904 = vld [vmem:[#allocation2 + $0x18] sm:$0xff]
      %v1905 = vld [vmem:[#allocation2 + $0x20] sm:$0xff]
      %v1906 = vld [vmem:[#allocation2 + $0x28] sm:$0xff]
      %v1907 = vld [vmem:[#allocation2 + $0x30] sm:$0xff]
      %v1908 = vld [vmem:[#allocation2 + $0x38] sm:$0xff]
      %v1909 = vld [vmem:[#allocation2 + $0x40] sm:$0xff]
      %v1910 = vld [vmem:[#allocation2 + $0x48] sm:$0xff]
      %v1911 = vld [vmem:[#allocation2 + $0x50] sm:$0xff]
      %v1912 = vld [vmem:[#allocation2 + $0x58] sm:$0xff]
      %v1913 = vld [vmem:[#allocation2 + $0x60] sm:$0xff]
      %v1914 = vld [vmem:[#allocation2 + $0x68] sm:$0xff]
      %v1915 = vld [vmem:[#allocation2 + $0x70] sm:$0xff]
      %v1916 = vld [vmem:[#allocation2 + $0x78] sm:$0xff]
      %v1917 = vld [vmem:[#allocation2 + $0x80] sm:$0xff]
      %v1918 = vld [vmem:[#allocation2 + $0x88] sm:$0xff]
      %v1919 = vld [vmem:[#allocation2 + $0x90] sm:$0xff]
      %v1920 = vld [vmem:[#allocation2 + $0x98] sm:$0xff]
      %v1921 = vld [vmem:[#allocation2 + $0xa0] sm:$0xff]
      %v1922 = vld [vmem:[#allocation2 + $0xa8] sm:$0xff]
      %v1923 = vld [vmem:[#allocation2 + $0xb0] sm:$0xff]
      %v1924 = vld [vmem:[#allocation2 + $0xb8] sm:$0xff]
      %v1925 = vld [vmem:[#allocation2 + $0xc0] sm:$0xff]
      %v1926 = vld [vmem:[#allocation2 + $0xc8] sm:$0xff]
      %v1927 = vld [vmem:[#allocation2 + $0xd0] sm:$0xff]
      %v1928 = vld [vmem:[#allocation2 + $0xd8] sm:$0xff]
      %v1929 = vld [vmem:[#allocation2 + $0xe0] sm:$0xff]
      %v1930 = vld [vmem:[#allocation2 + $0xe8] sm:$0xff]
      %v1931 = vld [vmem:[#allocation2 + $0xf0] sm:$0xff]
      %v1932 = vld [vmem:[#allocation2 + $0xf8] sm:$0xff]
      %v1933 = vld [vmem:[#allocation2 + $0x100] sm:$0xff]
      %v1934 = vld [vmem:[#allocation2 + $0x108] sm:$0xff]
      %v1935 = vld [vmem:[#allocation2 + $0x110] sm:$0xff]
      %v1936 = vld [vmem:[#allocation2 + $0x118] sm:$0xff]
      %v1937 = vld [vmem:[#allocation2 + $0x120] sm:$0xff]
      %v1938 = vld [vmem:[#allocation2 + $0x128] sm:$0xff]
      %v1939 = vld [vmem:[#allocation2 + $0x130] sm:$0xff]
      %v1940 = vld [vmem:[#allocation2 + $0x138] sm:$0xff]
      %v1941 = vld [vmem:[#allocation2 + $0x140] sm:$0xff]
      %v1942 = vld [vmem:[#allocation2 + $0x148] sm:$0xff]
      %v1943 = vld [vmem:[#allocation2 + $0x150] sm:$0xff]
      %v1944 = vld [vmem:[#allocation2 + $0x158] sm:$0xff]
      %v1945 = vld [vmem:[#allocation2 + $0x160] sm:$0xff]
      %v1946 = vld [vmem:[#allocation2 + $0x168] sm:$0xff]
      %v1947 = vld [vmem:[#allocation2 + $0x170] sm:$0xff]
      %v1948 = vld [vmem:[#allocation2 + $0x178] sm:$0xff]
      %v1949 = vld [vmem:[#allocation2 + $0x180] sm:$0xff]
      %v1950 = vld [vmem:[#allocation2 + $0x188] sm:$0xff]
      %v1951 = vld [vmem:[#allocation2 + $0x190] sm:$0xff]
      %v1952 = vld [vmem:[#allocation2 + $0x198] sm:$0xff]
      %v1953 = vld [vmem:[#allocation2 + $0x1a0] sm:$0xff]
      %v1954 = vld [vmem:[#allocation2 + $0x1a8] sm:$0xff]
      %v1955 = vld [vmem:[#allocation2 + $0x1b0] sm:$0xff]
      %v1956 = vld [vmem:[#allocation2 + $0x1b8] sm:$0xff]
      %v1957 = vld [vmem:[#allocation2 + $0x1c0] sm:$0xff]
      %v1958 = vld [vmem:[#allocation2 + $0x1c8] sm:$0xff]
      %v1959 = vld [vmem:[#allocation2 + $0x1d0] sm:$0xff]
      %v1960 = vld [vmem:[#allocation2 + $0x1d8] sm:$0xff]
      %v1961 = vld [vmem:[#allocation2 + $0x1e0] sm:$0xff]
      %v1962 = vld [vmem:[#allocation2 + $0x1e8] sm:$0xff]
      %v1963 = vld [vmem:[#allocation2 + $0x1f0] sm:$0xff]
      %v1964 = vld [vmem:[#allocation2 + $0x1f8] sm:$0xff]
      %v1965 = vmax.f32 %v1230, %v1232
      %v1966 = vmax.f32 %v1965, %v1583
      %v1967 = vmax.f32 %v1966, %v1585
      %1968 = vmax.xlane.f32.xlu0 %v1967
      %v1969 = vpop.xlane.xlu0 %1968
      %v1970 = vmax.f32 %v1234, %v1236
      %v1971 = vmax.f32 %v1970, %v1587
      %v1972 = vmax.f32 %v1971, %v1589
      %1973 = vmax.xlane.f32.xlu0 %v1972
      %v1974 = vpop.xlane.xlu0 %1973
      %v1975 = vmax.f32 %v1240, %v1242
      %v1976 = vmax.f32 %v1975, %v1593
      %v1977 = vmax.f32 %v1976, %v1595
      %1978 = vmax.xlane.f32.xlu0 %v1977
      %v1979 = vpop.xlane.xlu0 %1978
      %v1980 = vmax.f32 %v1244, %v1246
      %v1981 = vmax.f32 %v1980, %v1597
      %v1982 = vmax.f32 %v1981, %v1599
      %1983 = vmax.xlane.f32.xlu0 %v1982
      %v1984 = vpop.xlane.xlu0 %1983
      %v1985 = vmax.f32 %v1250, %v1252
      %v1986 = vmax.f32 %v1985, %v1603
      %v1987 = vmax.f32 %v1986, %v1605
      %1988 = vmax.xlane.f32.xlu0 %v1987
      %v1989 = vpop.xlane.xlu0 %1988
      %v1990 = vmax.f32 %v1254, %v1256
      %v1991 = vmax.f32 %v1990, %v1607
      %v1992 = vmax.f32 %v1991, %v1609
      %1993 = vmax.xlane.f32.xlu0 %v1992
      %v1994 = vpop.xlane.xlu0 %1993
      %v1995 = vmax.f32 %v1260, %v1262
      %v1996 = vmax.f32 %v1995, %v1613
      %v1997 = vmax.f32 %v1996, %v1615
      %1998 = vmax.xlane.f32.xlu0 %v1997
      %v1999 = vpop.xlane.xlu0 %1998
      %v2000 = vmax.f32 %v1264, %v1266
      %v2001 = vmax.f32 %v2000, %v1617
      %v2002 = vmax.f32 %v2001, %v1619
      %2003 = vmax.xlane.f32.xlu0 %v2002
      %v2004 = vpop.xlane.xlu0 %2003
      %v2005 = vmax.f32 %v1270, %v1272
      %v2006 = vmax.f32 %v2005, %v1623
      %v2007 = vmax.f32 %v2006, %v1625
      %2008 = vmax.xlane.f32.xlu0 %v2007
      %v2009 = vpop.xlane.xlu0 %2008
      %v2010 = vmax.f32 %v1274, %v1276
      %v2011 = vmax.f32 %v2010, %v1627
      %v2012 = vmax.f32 %v2011, %v1629
      %2013 = vmax.xlane.f32.xlu0 %v2012
      %v2014 = vpop.xlane.xlu0 %2013
      %v2015 = vmax.f32 %v1280, %v1282
      %v2016 = vmax.f32 %v2015, %v1633
      %v2017 = vmax.f32 %v2016, %v1635
      %2018 = vmax.xlane.f32.xlu0 %v2017
      %v2019 = vpop.xlane.xlu0 %2018
      %v2020 = vmax.f32 %v1284, %v1286
      %v2021 = vmax.f32 %v2020, %v1637
      %v2022 = vmax.f32 %v2021, %v1639
      %2023 = vmax.xlane.f32.xlu0 %v2022
      %v2024 = vpop.xlane.xlu0 %2023
      %v2025 = vmax.f32 %v1290, %v1292
      %v2026 = vmax.f32 %v2025, %v1643
      %v2027 = vmax.f32 %v2026, %v1645
      %2028 = vmax.xlane.f32.xlu0 %v2027
      %v2029 = vpop.xlane.xlu0 %2028
      %v2030 = vmax.f32 %v1294, %v1296
      %v2031 = vmax.f32 %v2030, %v1647
      %v2032 = vmax.f32 %v2031, %v1649
      %2033 = vmax.xlane.f32.xlu0 %v2032
      %v2034 = vpop.xlane.xlu0 %2033
      %v2035 = vmax.f32 %v1300, %v1302
      %v2036 = vmax.f32 %v2035, %v1653
      %v2037 = vmax.f32 %v2036, %v1655
      %2038 = vmax.xlane.f32.xlu0 %v2037
      %v2039 = vpop.xlane.xlu0 %2038
      %v2040 = vmax.f32 %v1304, %v1306
      %v2041 = vmax.f32 %v2040, %v1657
      %v2042 = vmax.f32 %v2041, %v1659
      %2043 = vmax.xlane.f32.xlu0 %v2042
      %v2044 = vpop.xlane.xlu0 %2043
      %v2045 = vmax.f32 %v1310, %v1312
      %v2046 = vmax.f32 %v2045, %v1663
      %v2047 = vmax.f32 %v2046, %v1665
      %2048 = vmax.xlane.f32.xlu0 %v2047
      %v2049 = vpop.xlane.xlu0 %2048
      %v2050 = vmax.f32 %v1314, %v1316
      %v2051 = vmax.f32 %v2050, %v1667
      %v2052 = vmax.f32 %v2051, %v1669
      %2053 = vmax.xlane.f32.xlu0 %v2052
      %v2054 = vpop.xlane.xlu0 %2053
      %v2055 = vmax.f32 %v1320, %v1322
      %v2056 = vmax.f32 %v2055, %v1673
      %v2057 = vmax.f32 %v2056, %v1675
      %2058 = vmax.xlane.f32.xlu0 %v2057
      %v2059 = vpop.xlane.xlu0 %2058
      %v2060 = vmax.f32 %v1324, %v1326
      %v2061 = vmax.f32 %v2060, %v1677
      %v2062 = vmax.f32 %v2061, %v1679
      %2063 = vmax.xlane.f32.xlu0 %v2062
      %v2064 = vpop.xlane.xlu0 %2063
      %v2065 = vmax.f32 %v1330, %v1332
      %v2066 = vmax.f32 %v2065, %v1683
      %v2067 = vmax.f32 %v2066, %v1685
      %2068 = vmax.xlane.f32.xlu0 %v2067
      %v2069 = vpop.xlane.xlu0 %2068
      %v2070 = vmax.f32 %v1334, %v1336
      %v2071 = vmax.f32 %v2070, %v1687
      %v2072 = vmax.f32 %v2071, %v1689
      %2073 = vmax.xlane.f32.xlu0 %v2072
      %v2074 = vpop.xlane.xlu0 %2073
      %v2075 = vmax.f32 %v1340, %v1342
      %v2076 = vmax.f32 %v2075, %v1693
      %v2077 = vmax.f32 %v2076, %v1695
      %2078 = vmax.xlane.f32.xlu0 %v2077
      %v2079 = vpop.xlane.xlu0 %2078
      %v2080 = vmax.f32 %v1344, %v1346
      %v2081 = vmax.f32 %v2080, %v1697
      %v2082 = vmax.f32 %v2081, %v1699
      %2083 = vmax.xlane.f32.xlu0 %v2082
      %v2084 = vpop.xlane.xlu0 %2083
      %v2085 = vmax.f32 %v1350, %v1352
      %v2086 = vmax.f32 %v2085, %v1703
      %v2087 = vmax.f32 %v2086, %v1705
      %2088 = vmax.xlane.f32.xlu0 %v2087
      %v2089 = vpop.xlane.xlu0 %2088
      %v2090 = vmax.f32 %v1354, %v1356
      %v2091 = vmax.f32 %v2090, %v1707
      %v2092 = vmax.f32 %v2091, %v1709
      %2093 = vmax.xlane.f32.xlu0 %v2092
      %v2094 = vpop.xlane.xlu0 %2093
      %v2095 = vmax.f32 %v1360, %v1362
      %v2096 = vmax.f32 %v2095, %v1713
      %v2097 = vmax.f32 %v2096, %v1715
      %2098 = vmax.xlane.f32.xlu0 %v2097
      %v2099 = vpop.xlane.xlu0 %2098
      %v2100 = vmax.f32 %v1364, %v1366
      %v2101 = vmax.f32 %v2100, %v1717
      %v2102 = vmax.f32 %v2101, %v1719
      %2103 = vmax.xlane.f32.xlu0 %v2102
      %v2104 = vpop.xlane.xlu0 %2103
      %v2105 = vmax.f32 %v1370, %v1372
      %v2106 = vmax.f32 %v2105, %v1723
      %v2107 = vmax.f32 %v2106, %v1725
      %2108 = vmax.xlane.f32.xlu0 %v2107
      %v2109 = vpop.xlane.xlu0 %2108
      %v2110 = vmax.f32 %v1374, %v1376
      %v2111 = vmax.f32 %v2110, %v1727
      %v2112 = vmax.f32 %v2111, %v1729
      %2113 = vmax.xlane.f32.xlu0 %v2112
      %v2114 = vpop.xlane.xlu0 %2113
      %v2115 = vmax.f32 %v1380, %v1382
      %v2116 = vmax.f32 %v2115, %v1733
      %v2117 = vmax.f32 %v2116, %v1735
      %2118 = vmax.xlane.f32.xlu0 %v2117
      %v2119 = vpop.xlane.xlu0 %2118
      %v2120 = vmax.f32 %v1384, %v1386
      %v2121 = vmax.f32 %v2120, %v1737
      %v2122 = vmax.f32 %v2121, %v1739
      %2123 = vmax.xlane.f32.xlu0 %v2122
      %v2124 = vpop.xlane.xlu0 %2123
      %v2125 = vmax.f32 %v1390, %v1392
      %v2126 = vmax.f32 %v2125, %v1743
      %v2127 = vmax.f32 %v2126, %v1745
      %2128 = vmax.xlane.f32.xlu0 %v2127
      %v2129 = vpop.xlane.xlu0 %2128
      %v2130 = vmax.f32 %v1394, %v1396
      %v2131 = vmax.f32 %v2130, %v1747
      %v2132 = vmax.f32 %v2131, %v1749
      %2133 = vmax.xlane.f32.xlu0 %v2132
      %v2134 = vpop.xlane.xlu0 %2133
      %v2135 = vmax.f32 %v1400, %v1402
      %v2136 = vmax.f32 %v2135, %v1753
      %v2137 = vmax.f32 %v2136, %v1755
      %2138 = vmax.xlane.f32.xlu0 %v2137
      %v2139 = vpop.xlane.xlu0 %2138
      %v2140 = vmax.f32 %v1404, %v1406
      %v2141 = vmax.f32 %v2140, %v1757
      %v2142 = vmax.f32 %v2141, %v1759
      %2143 = vmax.xlane.f32.xlu0 %v2142
      %v2144 = vpop.xlane.xlu0 %2143
      %v2145 = vmax.f32 %v1410, %v1412
      %v2146 = vmax.f32 %v2145, %v1763
      %v2147 = vmax.f32 %v2146, %v1765
      %2148 = vmax.xlane.f32.xlu0 %v2147
      %v2149 = vpop.xlane.xlu0 %2148
      %v2150 = vmax.f32 %v1414, %v1416
      %v2151 = vmax.f32 %v2150, %v1767
      %v2152 = vmax.f32 %v2151, %v1769
      %2153 = vmax.xlane.f32.xlu0 %v2152
      %v2154 = vpop.xlane.xlu0 %2153
      %v2155 = vmax.f32 %v1420, %v1422
      %v2156 = vmax.f32 %v2155, %v1773
      %v2157 = vmax.f32 %v2156, %v1775
      %2158 = vmax.xlane.f32.xlu0 %v2157
      %v2159 = vpop.xlane.xlu0 %2158
      %v2160 = vmax.f32 %v1424, %v1426
      %v2161 = vmax.f32 %v2160, %v1777
      %v2162 = vmax.f32 %v2161, %v1779
      %2163 = vmax.xlane.f32.xlu0 %v2162
      %v2164 = vpop.xlane.xlu0 %2163
      %v2165 = vmax.f32 %v1430, %v1432
      %v2166 = vmax.f32 %v2165, %v1783
      %v2167 = vmax.f32 %v2166, %v1785
      %2168 = vmax.xlane.f32.xlu0 %v2167
      %v2169 = vpop.xlane.xlu0 %2168
      %v2170 = vmax.f32 %v1434, %v1436
      %v2171 = vmax.f32 %v2170, %v1787
      %v2172 = vmax.f32 %v2171, %v1789
      %2173 = vmax.xlane.f32.xlu0 %v2172
      %v2174 = vpop.xlane.xlu0 %2173
      %v2175 = vmax.f32 %v1440, %v1442
      %v2176 = vmax.f32 %v2175, %v1793
      %v2177 = vmax.f32 %v2176, %v1795
      %2178 = vmax.xlane.f32.xlu0 %v2177
      %v2179 = vpop.xlane.xlu0 %2178
      %v2180 = vmax.f32 %v1444, %v1446
      %v2181 = vmax.f32 %v2180, %v1797
      %v2182 = vmax.f32 %v2181, %v1799
      %2183 = vmax.xlane.f32.xlu0 %v2182
      %v2184 = vpop.xlane.xlu0 %2183
      %v2185 = vmax.f32 %v1450, %v1452
      %v2186 = vmax.f32 %v2185, %v1803
      %v2187 = vmax.f32 %v2186, %v1805
      %2188 = vmax.xlane.f32.xlu0 %v2187
      %v2189 = vpop.xlane.xlu0 %2188
      %v2190 = vmax.f32 %v1454, %v1456
      %v2191 = vmax.f32 %v2190, %v1807
      %v2192 = vmax.f32 %v2191, %v1809
      %2193 = vmax.xlane.f32.xlu0 %v2192
      %v2194 = vpop.xlane.xlu0 %2193
      %v2195 = vmax.f32 %v1460, %v1462
      %v2196 = vmax.f32 %v2195, %v1813
      %v2197 = vmax.f32 %v2196, %v1815
      %2198 = vmax.xlane.f32.xlu0 %v2197
      %v2199 = vpop.xlane.xlu0 %2198
      %v2200 = vmax.f32 %v1464, %v1466
      %v2201 = vmax.f32 %v2200, %v1817
      %v2202 = vmax.f32 %v2201, %v1819
      %2203 = vmax.xlane.f32.xlu0 %v2202
      %v2204 = vpop.xlane.xlu0 %2203
      %v2205 = vmax.f32 %v1470, %v1472
      %v2206 = vmax.f32 %v2205, %v1823
      %v2207 = vmax.f32 %v2206, %v1825
      %2208 = vmax.xlane.f32.xlu0 %v2207
      %v2209 = vpop.xlane.xlu0 %2208
      %v2210 = vmax.f32 %v1474, %v1476
      %v2211 = vmax.f32 %v2210, %v1827
      %v2212 = vmax.f32 %v2211, %v1829
      %2213 = vmax.xlane.f32.xlu0 %v2212
      %v2214 = vpop.xlane.xlu0 %2213
      %v2215 = vmax.f32 %v1480, %v1482
      %v2216 = vmax.f32 %v2215, %v1833
      %v2217 = vmax.f32 %v2216, %v1835
      %2218 = vmax.xlane.f32.xlu0 %v2217
      %v2219 = vpop.xlane.xlu0 %2218
      %v2220 = vmax.f32 %v1484, %v1486
      %v2221 = vmax.f32 %v2220, %v1837
      %v2222 = vmax.f32 %v2221, %v1839
      %2223 = vmax.xlane.f32.xlu0 %v2222
      %v2224 = vpop.xlane.xlu0 %2223
      %v2225 = vmax.f32 %v1490, %v1492
      %v2226 = vmax.f32 %v2225, %v1843
      %v2227 = vmax.f32 %v2226, %v1845
      %2228 = vmax.xlane.f32.xlu0 %v2227
      %v2229 = vpop.xlane.xlu0 %2228
      %v2230 = vmax.f32 %v1494, %v1496
      %v2231 = vmax.f32 %v2230, %v1847
      %v2232 = vmax.f32 %v2231, %v1849
      %2233 = vmax.xlane.f32.xlu0 %v2232
      %v2234 = vpop.xlane.xlu0 %2233
      %v2235 = vmax.f32 %v1500, %v1502
      %v2236 = vmax.f32 %v2235, %v1853
      %v2237 = vmax.f32 %v2236, %v1855
      %2238 = vmax.xlane.f32.xlu0 %v2237
      %v2239 = vpop.xlane.xlu0 %2238
      %v2240 = vmax.f32 %v1504, %v1506
      %v2241 = vmax.f32 %v2240, %v1857
      %v2242 = vmax.f32 %v2241, %v1859
      %2243 = vmax.xlane.f32.xlu0 %v2242
      %v2244 = vpop.xlane.xlu0 %2243
      %v2245 = vmax.f32 %v1510, %v1512
      %v2246 = vmax.f32 %v2245, %v1863
      %v2247 = vmax.f32 %v2246, %v1865
      %2248 = vmax.xlane.f32.xlu0 %v2247
      %v2249 = vpop.xlane.xlu0 %2248
      %v2250 = vmax.f32 %v1514, %v1516
      %v2251 = vmax.f32 %v2250, %v1867
      %v2252 = vmax.f32 %v2251, %v1869
      %2253 = vmax.xlane.f32.xlu0 %v2252
      %v2254 = vpop.xlane.xlu0 %2253
      %v2255 = vmax.f32 %v1520, %v1522
      %v2256 = vmax.f32 %v2255, %v1873
      %v2257 = vmax.f32 %v2256, %v1875
      %2258 = vmax.xlane.f32.xlu0 %v2257
      %v2259 = vpop.xlane.xlu0 %2258
      %v2260 = vmax.f32 %v1524, %v1526
      %v2261 = vmax.f32 %v2260, %v1877
      %v2262 = vmax.f32 %v2261, %v1879
      %2263 = vmax.xlane.f32.xlu0 %v2262
      %v2264 = vpop.xlane.xlu0 %2263
      %v2265 = vmax.f32 %v1530, %v1532
      %v2266 = vmax.f32 %v2265, %v1883
      %v2267 = vmax.f32 %v2266, %v1885
      %2268 = vmax.xlane.f32.xlu0 %v2267
      %v2269 = vpop.xlane.xlu0 %2268
      %v2270 = vmax.f32 %v1534, %v1536
      %v2271 = vmax.f32 %v2270, %v1887
      %v2272 = vmax.f32 %v2271, %v1889
      %2273 = vmax.xlane.f32.xlu0 %v2272
      %v2274 = vpop.xlane.xlu0 %2273
      %v2275 = vmax.f32 %v1540, %v1542
      %v2276 = vmax.f32 %v2275, %v1893
      %v2277 = vmax.f32 %v2276, %v1895
      %2278 = vmax.xlane.f32.xlu0 %v2277
      %v2279 = vpop.xlane.xlu0 %2278
      %v2280 = vmax.f32 %v1544, %v1546
      %v2281 = vmax.f32 %v2280, %v1897
      %v2282 = vmax.f32 %v2281, %v1899
      %2283 = vmax.xlane.f32.xlu0 %v2282
      %v2284 = vpop.xlane.xlu0 %2283
      %v2285 = vmax.f32 %v1901, %v1969
      %v2286 = vmax.f32 %v1902, %v1974
      %v2287 = vmax.f32 %v1903, %v1979
      %v2288 = vmax.f32 %v1904, %v1984
      %v2289 = vmax.f32 %v1905, %v1989
      %v2290 = vmax.f32 %v1906, %v1994
      %v2291 = vmax.f32 %v1907, %v1999
      %v2292 = vmax.f32 %v1908, %v2004
      %v2293 = vmax.f32 %v1909, %v2009
      %v2294 = vmax.f32 %v1910, %v2014
      %v2295 = vmax.f32 %v1911, %v2019
      %v2296 = vmax.f32 %v1912, %v2024
      %v2297 = vmax.f32 %v1913, %v2029
      %v2298 = vmax.f32 %v1914, %v2034
      %v2299 = vmax.f32 %v1915, %v2039
      %v2300 = vmax.f32 %v1916, %v2044
      %v2301 = vmax.f32 %v1917, %v2049
      %v2302 = vmax.f32 %v1918, %v2054
      %v2303 = vmax.f32 %v1919, %v2059
      %v2304 = vmax.f32 %v1920, %v2064
      %v2305 = vmax.f32 %v1921, %v2069
      %v2306 = vmax.f32 %v1922, %v2074
      %v2307 = vmax.f32 %v1923, %v2079
      %v2308 = vmax.f32 %v1924, %v2084
      %v2309 = vmax.f32 %v1925, %v2089
      %v2310 = vmax.f32 %v1926, %v2094
      %v2311 = vmax.f32 %v1927, %v2099
      %v2312 = vmax.f32 %v1928, %v2104
      %v2313 = vmax.f32 %v1929, %v2109
      %v2314 = vmax.f32 %v1930, %v2114
      %v2315 = vmax.f32 %v1931, %v2119
      %v2316 = vmax.f32 %v1932, %v2124
      %v2317 = vmax.f32 %v1933, %v2129
      %v2318 = vmax.f32 %v1934, %v2134
      %v2319 = vmax.f32 %v1935, %v2139
      %v2320 = vmax.f32 %v1936, %v2144
      %v2321 = vmax.f32 %v1937, %v2149
      %v2322 = vmax.f32 %v1938, %v2154
      %v2323 = vmax.f32 %v1939, %v2159
      %v2324 = vmax.f32 %v1940, %v2164
      %v2325 = vmax.f32 %v1941, %v2169
      %v2326 = vmax.f32 %v1942, %v2174
      %v2327 = vmax.f32 %v1943, %v2179
      %v2328 = vmax.f32 %v1944, %v2184
      %v2329 = vmax.f32 %v1945, %v2189
      %v2330 = vmax.f32 %v1946, %v2194
      %v2331 = vmax.f32 %v1947, %v2199
      %v2332 = vmax.f32 %v1948, %v2204
      %v2333 = vmax.f32 %v1949, %v2209
      %v2334 = vmax.f32 %v1950, %v2214
      %v2335 = vmax.f32 %v1951, %v2219
      %v2336 = vmax.f32 %v1952, %v2224
      %v2337 = vmax.f32 %v1953, %v2229
      %v2338 = vmax.f32 %v1954, %v2234
      %v2339 = vmax.f32 %v1955, %v2239
      %v2340 = vmax.f32 %v1956, %v2244
      %v2341 = vmax.f32 %v1957, %v2249
      %v2342 = vmax.f32 %v1958, %v2254
      %v2343 = vmax.f32 %v1959, %v2259
      %v2344 = vmax.f32 %v1960, %v2264
      %v2345 = vmax.f32 %v1961, %v2269
      %v2346 = vmax.f32 %v1962, %v2274
      %v2347 = vmax.f32 %v1963, %v2279
      %v2348 = vmax.f32 %v1964, %v2284
      %v2349 = vsub.f32 %v1901, %v2285
      %v2350 = vsub.f32 %v1902, %v2286
      %v2351 = vsub.f32 %v1903, %v2287
      %v2352 = vsub.f32 %v1904, %v2288
      %v2353 = vsub.f32 %v1905, %v2289
      %v2354 = vsub.f32 %v1906, %v2290
      %v2355 = vsub.f32 %v1907, %v2291
      %v2356 = vsub.f32 %v1908, %v2292
      %v2357 = vsub.f32 %v1909, %v2293
      %v2358 = vsub.f32 %v1910, %v2294
      %v2359 = vsub.f32 %v1911, %v2295
      %v2360 = vsub.f32 %v1912, %v2296
      %v2361 = vsub.f32 %v1913, %v2297
      %v2362 = vsub.f32 %v1914, %v2298
      %v2363 = vsub.f32 %v1915, %v2299
      %v2364 = vsub.f32 %v1916, %v2300
      %v2365 = vsub.f32 %v1917, %v2301
      %v2366 = vsub.f32 %v1918, %v2302
      %v2367 = vsub.f32 %v1919, %v2303
      %v2368 = vsub.f32 %v1920, %v2304
      %v2369 = vsub.f32 %v1921, %v2305
      %v2370 = vsub.f32 %v1922, %v2306
      %v2371 = vsub.f32 %v1923, %v2307
      %v2372 = vsub.f32 %v1924, %v2308
      %v2373 = vsub.f32 %v1925, %v2309
      %v2374 = vsub.f32 %v1926, %v2310
      %v2375 = vsub.f32 %v1927, %v2311
      %v2376 = vsub.f32 %v1928, %v2312
      %v2377 = vsub.f32 %v1929, %v2313
      %v2378 = vsub.f32 %v1930, %v2314
      %v2379 = vsub.f32 %v1931, %v2315
      %v2380 = vsub.f32 %v1932, %v2316
      %v2381 = vsub.f32 %v1933, %v2317
      %v2382 = vsub.f32 %v1934, %v2318
      %v2383 = vsub.f32 %v1935, %v2319
      %v2384 = vsub.f32 %v1936, %v2320
      %v2385 = vsub.f32 %v1937, %v2321
      %v2386 = vsub.f32 %v1938, %v2322
      %v2387 = vsub.f32 %v1939, %v2323
      %v2388 = vsub.f32 %v1940, %v2324
      %v2389 = vsub.f32 %v1941, %v2325
      %v2390 = vsub.f32 %v1942, %v2326
      %v2391 = vsub.f32 %v1943, %v2327
      %v2392 = vsub.f32 %v1944, %v2328
      %v2393 = vsub.f32 %v1945, %v2329
      %v2394 = vsub.f32 %v1946, %v2330
      %v2395 = vsub.f32 %v1947, %v2331
      %v2396 = vsub.f32 %v1948, %v2332
      %v2397 = vsub.f32 %v1949, %v2333
      %v2398 = vsub.f32 %v1950, %v2334
      %v2399 = vsub.f32 %v1951, %v2335
      %v2400 = vsub.f32 %v1952, %v2336
      %v2401 = vsub.f32 %v1953, %v2337
      %v2402 = vsub.f32 %v1954, %v2338
      %v2403 = vsub.f32 %v1955, %v2339
      %v2404 = vsub.f32 %v1956, %v2340
      %v2405 = vsub.f32 %v1957, %v2341
      %v2406 = vsub.f32 %v1958, %v2342
      %v2407 = vsub.f32 %v1959, %v2343
      %v2408 = vsub.f32 %v1960, %v2344
      %v2409 = vsub.f32 %v1961, %v2345
      %v2410 = vsub.f32 %v1962, %v2346
      %v2411 = vsub.f32 %v1963, %v2347
      %v2412 = vsub.f32 %v1964, %v2348
      %v2413 = vmul.f32 %v2349, 1.442695
      %v2414 = vpow.pop %v2413
      %v2415 = vmul.f32 %v2350, 1.442695
      %v2416 = vpow.pop %v2415
      %v2417 = vmul.f32 %v2351, 1.442695
      %v2418 = vpow.pop %v2417
      %v2419 = vmul.f32 %v2352, 1.442695
      %v2420 = vpow.pop %v2419
      %v2421 = vmul.f32 %v2353, 1.442695
      %v2422 = vpow.pop %v2421
      %v2423 = vmul.f32 %v2354, 1.442695
      %v2424 = vpow.pop %v2423
      %v2425 = vmul.f32 %v2355, 1.442695
      %v2426 = vpow.pop %v2425
      %v2427 = vmul.f32 %v2356, 1.442695
      %v2428 = vpow.pop %v2427
      %v2429 = vmul.f32 %v2357, 1.442695
      %v2430 = vpow.pop %v2429
      %v2431 = vmul.f32 %v2358, 1.442695
      %v2432 = vpow.pop %v2431
      %v2433 = vmul.f32 %v2359, 1.442695
      %v2434 = vpow.pop %v2433
      %v2435 = vmul.f32 %v2360, 1.442695
      %v2436 = vpow.pop %v2435
      %v2437 = vmul.f32 %v2361, 1.442695
      %v2438 = vpow.pop %v2437
      %v2439 = vmul.f32 %v2362, 1.442695
      %v2440 = vpow.pop %v2439
      %v2441 = vmul.f32 %v2363, 1.442695
      %v2442 = vpow.pop %v2441
      %v2443 = vmul.f32 %v2364, 1.442695
      %v2444 = vpow.pop %v2443
      %v2445 = vmul.f32 %v2365, 1.442695
      %v2446 = vpow.pop %v2445
      %v2447 = vmul.f32 %v2366, 1.442695
      %v2448 = vpow.pop %v2447
      %v2449 = vmul.f32 %v2367, 1.442695
      %v2450 = vpow.pop %v2449
      %v2451 = vmul.f32 %v2368, 1.442695
      %v2452 = vpow.pop %v2451
      %v2453 = vmul.f32 %v2369, 1.442695
      %v2454 = vpow.pop %v2453
      %v2455 = vmul.f32 %v2370, 1.442695
      %v2456 = vpow.pop %v2455
      %v2457 = vmul.f32 %v2371, 1.442695
      %v2458 = vpow.pop %v2457
      %v2459 = vmul.f32 %v2372, 1.442695
      %v2460 = vpow.pop %v2459
      %v2461 = vmul.f32 %v2373, 1.442695
      %v2462 = vpow.pop %v2461
      %v2463 = vmul.f32 %v2374, 1.442695
      %v2464 = vpow.pop %v2463
      %v2465 = vmul.f32 %v2375, 1.442695
      %v2466 = vpow.pop %v2465
      %v2467 = vmul.f32 %v2376, 1.442695
      %v2468 = vpow.pop %v2467
      %v2469 = vmul.f32 %v2377, 1.442695
      %v2470 = vpow.pop %v2469
      %v2471 = vmul.f32 %v2378, 1.442695
      %v2472 = vpow.pop %v2471
      %v2473 = vmul.f32 %v2379, 1.442695
      %v2474 = vpow.pop %v2473
      %v2475 = vmul.f32 %v2380, 1.442695
      %v2476 = vpow.pop %v2475
      %v2477 = vmul.f32 %v2381, 1.442695
      %v2478 = vpow.pop %v2477
      %v2479 = vmul.f32 %v2382, 1.442695
      %v2480 = vpow.pop %v2479
      %v2481 = vmul.f32 %v2383, 1.442695
      %v2482 = vpow.pop %v2481
      %v2483 = vmul.f32 %v2384, 1.442695
      %v2484 = vpow.pop %v2483
      %v2485 = vmul.f32 %v2385, 1.442695
      %v2486 = vpow.pop %v2485
      %v2487 = vmul.f32 %v2386, 1.442695
      %v2488 = vpow.pop %v2487
      %v2489 = vmul.f32 %v2387, 1.442695
      %v2490 = vpow.pop %v2489
      %v2491 = vmul.f32 %v2388, 1.442695
      %v2492 = vpow.pop %v2491
      %v2493 = vmul.f32 %v2389, 1.442695
      %v2494 = vpow.pop %v2493
      %v2495 = vmul.f32 %v2390, 1.442695
      %v2496 = vpow.pop %v2495
      %v2497 = vmul.f32 %v2391, 1.442695
      %v2498 = vpow.pop %v2497
      %v2499 = vmul.f32 %v2392, 1.442695
      %v2500 = vpow.pop %v2499
      %v2501 = vmul.f32 %v2393, 1.442695
      %v2502 = vpow.pop %v2501
      %v2503 = vmul.f32 %v2394, 1.442695
      %v2504 = vpow.pop %v2503
      %v2505 = vmul.f32 %v2395, 1.442695
      %v2506 = vpow.pop %v2505
      %v2507 = vmul.f32 %v2396, 1.442695
      %v2508 = vpow.pop %v2507
      %v2509 = vmul.f32 %v2397, 1.442695
      %v2510 = vpow.pop %v2509
      %v2511 = vmul.f32 %v2398, 1.442695
      %v2512 = vpow.pop %v2511
      %v2513 = vmul.f32 %v2399, 1.442695
      %v2514 = vpow.pop %v2513
      %v2515 = vmul.f32 %v2400, 1.442695
      %v2516 = vpow.pop %v2515
      %v2517 = vmul.f32 %v2401, 1.442695
      %v2518 = vpow.pop %v2517
      %v2519 = vmul.f32 %v2402, 1.442695
      %v2520 = vpow.pop %v2519
      %v2521 = vmul.f32 %v2403, 1.442695
      %v2522 = vpow.pop %v2521
      %v2523 = vmul.f32 %v2404, 1.442695
      %v2524 = vpow.pop %v2523
      %v2525 = vmul.f32 %v2405, 1.442695
      %v2526 = vpow.pop %v2525
      %v2527 = vmul.f32 %v2406, 1.442695
      %v2528 = vpow.pop %v2527
      %v2529 = vmul.f32 %v2407, 1.442695
      %v2530 = vpow.pop %v2529
      %v2531 = vmul.f32 %v2408, 1.442695
      %v2532 = vpow.pop %v2531
      %v2533 = vmul.f32 %v2409, 1.442695
      %v2534 = vpow.pop %v2533
      %v2535 = vmul.f32 %v2410, 1.442695
      %v2536 = vpow.pop %v2535
      %v2537 = vmul.f32 %v2411, 1.442695
      %v2538 = vpow.pop %v2537
      %v2539 = vmul.f32 %v2412, 1.442695
      %v2540 = vpow.pop %v2539
      %2542 = vset.pattern.permute.xlu0 0
      %2543 = vperm.xlu0 %2542, %v2285
      %v2544 = vpop.permute.xlu0 %2543
      %2547 = vset.pattern.permute.xlu0 0
      %2548 = vperm.xlu0 %2547, %v2286
      %v2549 = vpop.permute.xlu0 %2548
      %2552 = vset.pattern.permute.xlu0 0
      %2553 = vperm.xlu0 %2552, %v2287
      %v2554 = vpop.permute.xlu0 %2553
      %2557 = vset.pattern.permute.xlu0 0
      %2558 = vperm.xlu0 %2557, %v2288
      %v2559 = vpop.permute.xlu0 %2558
      %2562 = vset.pattern.permute.xlu0 0
      %2563 = vperm.xlu0 %2562, %v2289
      %v2564 = vpop.permute.xlu0 %2563
      %2567 = vset.pattern.permute.xlu0 0
      %2568 = vperm.xlu0 %2567, %v2290
      %v2569 = vpop.permute.xlu0 %2568
      %2572 = vset.pattern.permute.xlu0 0
      %2573 = vperm.xlu0 %2572, %v2291
      %v2574 = vpop.permute.xlu0 %2573
      %2577 = vset.pattern.permute.xlu0 0
      %2578 = vperm.xlu0 %2577, %v2292
      %v2579 = vpop.permute.xlu0 %2578
      %2582 = vset.pattern.permute.xlu0 0
      %2583 = vperm.xlu0 %2582, %v2293
      %v2584 = vpop.permute.xlu0 %2583
      %2587 = vset.pattern.permute.xlu0 0
      %2588 = vperm.xlu0 %2587, %v2294
      %v2589 = vpop.permute.xlu0 %2588
      %2592 = vset.pattern.permute.xlu0 0
      %2593 = vperm.xlu0 %2592, %v2295
      %v2594 = vpop.permute.xlu0 %2593
      %2597 = vset.pattern.permute.xlu0 0
      %2598 = vperm.xlu0 %2597, %v2296
      %v2599 = vpop.permute.xlu0 %2598
      %2602 = vset.pattern.permute.xlu0 0
      %2603 = vperm.xlu0 %2602, %v2297
      %v2604 = vpop.permute.xlu0 %2603
      %2607 = vset.pattern.permute.xlu0 0
      %2608 = vperm.xlu0 %2607, %v2298
      %v2609 = vpop.permute.xlu0 %2608
      %2612 = vset.pattern.permute.xlu0 0
      %2613 = vperm.xlu0 %2612, %v2299
      %v2614 = vpop.permute.xlu0 %2613
      %2617 = vset.pattern.permute.xlu0 0
      %2618 = vperm.xlu0 %2617, %v2300
      %v2619 = vpop.permute.xlu0 %2618
      %2622 = vset.pattern.permute.xlu0 0
      %2623 = vperm.xlu0 %2622, %v2301
      %v2624 = vpop.permute.xlu0 %2623
      %2627 = vset.pattern.permute.xlu0 0
      %2628 = vperm.xlu0 %2627, %v2302
      %v2629 = vpop.permute.xlu0 %2628
      %2632 = vset.pattern.permute.xlu0 0
      %2633 = vperm.xlu0 %2632, %v2303
      %v2634 = vpop.permute.xlu0 %2633
      %2637 = vset.pattern.permute.xlu0 0
      %2638 = vperm.xlu0 %2637, %v2304
      %v2639 = vpop.permute.xlu0 %2638
      %2642 = vset.pattern.permute.xlu0 0
      %2643 = vperm.xlu0 %2642, %v2305
      %v2644 = vpop.permute.xlu0 %2643
      %2647 = vset.pattern.permute.xlu0 0
      %2648 = vperm.xlu0 %2647, %v2306
      %v2649 = vpop.permute.xlu0 %2648
      %2652 = vset.pattern.permute.xlu0 0
      %2653 = vperm.xlu0 %2652, %v2307
      %v2654 = vpop.permute.xlu0 %2653
      %2657 = vset.pattern.permute.xlu0 0
      %2658 = vperm.xlu0 %2657, %v2308
      %v2659 = vpop.permute.xlu0 %2658
      %2662 = vset.pattern.permute.xlu0 0
      %2663 = vperm.xlu0 %2662, %v2309
      %v2664 = vpop.permute.xlu0 %2663
      %2667 = vset.pattern.permute.xlu0 0
      %2668 = vperm.xlu0 %2667, %v2310
      %v2669 = vpop.permute.xlu0 %2668
      %2672 = vset.pattern.permute.xlu0 0
      %2673 = vperm.xlu0 %2672, %v2311
      %v2674 = vpop.permute.xlu0 %2673
      %2677 = vset.pattern.permute.xlu0 0
      %2678 = vperm.xlu0 %2677, %v2312
      %v2679 = vpop.permute.xlu0 %2678
      %2682 = vset.pattern.permute.xlu0 0
      %2683 = vperm.xlu0 %2682, %v2313
      %v2684 = vpop.permute.xlu0 %2683
      %2687 = vset.pattern.permute.xlu0 0
      %2688 = vperm.xlu0 %2687, %v2314
      %v2689 = vpop.permute.xlu0 %2688
      %2692 = vset.pattern.permute.xlu0 0
      %2693 = vperm.xlu0 %2692, %v2315
      %v2694 = vpop.permute.xlu0 %2693
      %2697 = vset.pattern.permute.xlu0 0
      %2698 = vperm.xlu0 %2697, %v2316
      %v2699 = vpop.permute.xlu0 %2698
      %2702 = vset.pattern.permute.xlu0 0
      %2703 = vperm.xlu0 %2702, %v2317
      %v2704 = vpop.permute.xlu0 %2703
      %2707 = vset.pattern.permute.xlu0 0
      %2708 = vperm.xlu0 %2707, %v2318
      %v2709 = vpop.permute.xlu0 %2708
      %2712 = vset.pattern.permute.xlu0 0
      %2713 = vperm.xlu0 %2712, %v2319
      %v2714 = vpop.permute.xlu0 %2713
      %2717 = vset.pattern.permute.xlu0 0
      %2718 = vperm.xlu0 %2717, %v2320
      %v2719 = vpop.permute.xlu0 %2718
      %2722 = vset.pattern.permute.xlu0 0
      %2723 = vperm.xlu0 %2722, %v2321
      %v2724 = vpop.permute.xlu0 %2723
      %2727 = vset.pattern.permute.xlu0 0
      %2728 = vperm.xlu0 %2727, %v2322
      %v2729 = vpop.permute.xlu0 %2728
      %2732 = vset.pattern.permute.xlu0 0
      %2733 = vperm.xlu0 %2732, %v2323
      %v2734 = vpop.permute.xlu0 %2733
      %2737 = vset.pattern.permute.xlu0 0
      %2738 = vperm.xlu0 %2737, %v2324
      %v2739 = vpop.permute.xlu0 %2738
      %2742 = vset.pattern.permute.xlu0 0
      %2743 = vperm.xlu0 %2742, %v2325
      %v2744 = vpop.permute.xlu0 %2743
      %2747 = vset.pattern.permute.xlu0 0
      %2748 = vperm.xlu0 %2747, %v2326
      %v2749 = vpop.permute.xlu0 %2748
      %2752 = vset.pattern.permute.xlu0 0
      %2753 = vperm.xlu0 %2752, %v2327
      %v2754 = vpop.permute.xlu0 %2753
      %2757 = vset.pattern.permute.xlu0 0
      %2758 = vperm.xlu0 %2757, %v2328
      %v2759 = vpop.permute.xlu0 %2758
      %2762 = vset.pattern.permute.xlu0 0
      %2763 = vperm.xlu0 %2762, %v2329
      %v2764 = vpop.permute.xlu0 %2763
      %2767 = vset.pattern.permute.xlu0 0
      %2768 = vperm.xlu0 %2767, %v2330
      %v2769 = vpop.permute.xlu0 %2768
      %2772 = vset.pattern.permute.xlu0 0
      %2773 = vperm.xlu0 %2772, %v2331
      %v2774 = vpop.permute.xlu0 %2773
      %2777 = vset.pattern.permute.xlu0 0
      %2778 = vperm.xlu0 %2777, %v2332
      %v2779 = vpop.permute.xlu0 %2778
      %2782 = vset.pattern.permute.xlu0 0
      %2783 = vperm.xlu0 %2782, %v2333
      %v2784 = vpop.permute.xlu0 %2783
      %2787 = vset.pattern.permute.xlu0 0
      %2788 = vperm.xlu0 %2787, %v2334
      %v2789 = vpop.permute.xlu0 %2788
      %2792 = vset.pattern.permute.xlu0 0
      %2793 = vperm.xlu0 %2792, %v2335
      %v2794 = vpop.permute.xlu0 %2793
      %2797 = vset.pattern.permute.xlu0 0
      %2798 = vperm.xlu0 %2797, %v2336
      %v2799 = vpop.permute.xlu0 %2798
      %2802 = vset.pattern.permute.xlu0 0
      %2803 = vperm.xlu0 %2802, %v2337
      %v2804 = vpop.permute.xlu0 %2803
      %2807 = vset.pattern.permute.xlu0 0
      %2808 = vperm.xlu0 %2807, %v2338
      %v2809 = vpop.permute.xlu0 %2808
      %2812 = vset.pattern.permute.xlu0 0
      %2813 = vperm.xlu0 %2812, %v2339
      %v2814 = vpop.permute.xlu0 %2813
      %2817 = vset.pattern.permute.xlu0 0
      %2818 = vperm.xlu0 %2817, %v2340
      %v2819 = vpop.permute.xlu0 %2818
      %2822 = vset.pattern.permute.xlu0 0
      %2823 = vperm.xlu0 %2822, %v2341
      %v2824 = vpop.permute.xlu0 %2823
      %2827 = vset.pattern.permute.xlu0 0
      %2828 = vperm.xlu0 %2827, %v2342
      %v2829 = vpop.permute.xlu0 %2828
      %2832 = vset.pattern.permute.xlu0 0
      %2833 = vperm.xlu0 %2832, %v2343
      %v2834 = vpop.permute.xlu0 %2833
      %2837 = vset.pattern.permute.xlu0 0
      %2838 = vperm.xlu0 %2837, %v2344
      %v2839 = vpop.permute.xlu0 %2838
      %2842 = vset.pattern.permute.xlu0 0
      %2843 = vperm.xlu0 %2842, %v2345
      %v2844 = vpop.permute.xlu0 %2843
      %2847 = vset.pattern.permute.xlu0 0
      %2848 = vperm.xlu0 %2847, %v2346
      %v2849 = vpop.permute.xlu0 %2848
      %2852 = vset.pattern.permute.xlu0 0
      %2853 = vperm.xlu0 %2852, %v2347
      %v2854 = vpop.permute.xlu0 %2853
      %2857 = vset.pattern.permute.xlu0 0
      %2858 = vperm.xlu0 %2857, %v2348
      %v2859 = vpop.permute.xlu0 %2858
      %v2861 = vsub.f32 %v1230, %v2544
      %v2862 = vsub.f32 %v1232, %v2544
      %v2863 = vsub.f32 %v1583, %v2544
      %v2864 = vsub.f32 %v1585, %v2544
      %v2865 = vsub.f32 %v1234, %v2549
      %v2866 = vsub.f32 %v1236, %v2549
      %v2867 = vsub.f32 %v1587, %v2549
      %v2868 = vsub.f32 %v1589, %v2549
      %v2869 = vsub.f32 %v1240, %v2554
      %v2870 = vsub.f32 %v1242, %v2554
      %v2871 = vsub.f32 %v1593, %v2554
      %v2872 = vsub.f32 %v1595, %v2554
      %v2873 = vsub.f32 %v1244, %v2559
      %v2874 = vsub.f32 %v1246, %v2559
      %v2875 = vsub.f32 %v1597, %v2559
      %v2876 = vsub.f32 %v1599, %v2559
      %v2877 = vsub.f32 %v1250, %v2564
      %v2878 = vsub.f32 %v1252, %v2564
      %v2879 = vsub.f32 %v1603, %v2564
      %v2880 = vsub.f32 %v1605, %v2564
      %v2881 = vsub.f32 %v1254, %v2569
      %v2882 = vsub.f32 %v1256, %v2569
      %v2883 = vsub.f32 %v1607, %v2569
      %v2884 = vsub.f32 %v1609, %v2569
      %v2885 = vsub.f32 %v1260, %v2574
      %v2886 = vsub.f32 %v1262, %v2574
      %v2887 = vsub.f32 %v1613, %v2574
      %v2888 = vsub.f32 %v1615, %v2574
      %v2889 = vsub.f32 %v1264, %v2579
      %v2890 = vsub.f32 %v1266, %v2579
      %v2891 = vsub.f32 %v1617, %v2579
      %v2892 = vsub.f32 %v1619, %v2579
      %v2893 = vsub.f32 %v1270, %v2584
      %v2894 = vsub.f32 %v1272, %v2584
      %v2895 = vsub.f32 %v1623, %v2584
      %v2896 = vsub.f32 %v1625, %v2584
      %v2897 = vsub.f32 %v1274, %v2589
      %v2898 = vsub.f32 %v1276, %v2589
      %v2899 = vsub.f32 %v1627, %v2589
      %v2900 = vsub.f32 %v1629, %v2589
      %v2901 = vsub.f32 %v1280, %v2594
      %v2902 = vsub.f32 %v1282, %v2594
      %v2903 = vsub.f32 %v1633, %v2594
      %v2904 = vsub.f32 %v1635, %v2594
      %v2905 = vsub.f32 %v1284, %v2599
      %v2906 = vsub.f32 %v1286, %v2599
      %v2907 = vsub.f32 %v1637, %v2599
      %v2908 = vsub.f32 %v1639, %v2599
      %v2909 = vsub.f32 %v1290, %v2604
      %v2910 = vsub.f32 %v1292, %v2604
      %v2911 = vsub.f32 %v1643, %v2604
      %v2912 = vsub.f32 %v1645, %v2604
      %v2913 = vsub.f32 %v1294, %v2609
      %v2914 = vsub.f32 %v1296, %v2609
      %v2915 = vsub.f32 %v1647, %v2609
      %v2916 = vsub.f32 %v1649, %v2609
      %v2917 = vsub.f32 %v1300, %v2614
      %v2918 = vsub.f32 %v1302, %v2614
      %v2919 = vsub.f32 %v1653, %v2614
      %v2920 = vsub.f32 %v1655, %v2614
      %v2921 = vsub.f32 %v1304, %v2619
      %v2922 = vsub.f32 %v1306, %v2619
      %v2923 = vsub.f32 %v1657, %v2619
      %v2924 = vsub.f32 %v1659, %v2619
      %v2925 = vsub.f32 %v1310, %v2624
      %v2926 = vsub.f32 %v1312, %v2624
      %v2927 = vsub.f32 %v1663, %v2624
      %v2928 = vsub.f32 %v1665, %v2624
      %v2929 = vsub.f32 %v1314, %v2629
      %v2930 = vsub.f32 %v1316, %v2629
      %v2931 = vsub.f32 %v1667, %v2629
      %v2932 = vsub.f32 %v1669, %v2629
      %v2933 = vsub.f32 %v1320, %v2634
      %v2934 = vsub.f32 %v1322, %v2634
      %v2935 = vsub.f32 %v1673, %v2634
      %v2936 = vsub.f32 %v1675, %v2634
      %v2937 = vsub.f32 %v1324, %v2639
      %v2938 = vsub.f32 %v1326, %v2639
      %v2939 = vsub.f32 %v1677, %v2639
      %v2940 = vsub.f32 %v1679, %v2639
      %v2941 = vsub.f32 %v1330, %v2644
      %v2942 = vsub.f32 %v1332, %v2644
      %v2943 = vsub.f32 %v1683, %v2644
      %v2944 = vsub.f32 %v1685, %v2644
      %v2945 = vsub.f32 %v1334, %v2649
      %v2946 = vsub.f32 %v1336, %v2649
      %v2947 = vsub.f32 %v1687, %v2649
      %v2948 = vsub.f32 %v1689, %v2649
      %v2949 = vsub.f32 %v1340, %v2654
      %v2950 = vsub.f32 %v1342, %v2654
      %v2951 = vsub.f32 %v1693, %v2654
      %v2952 = vsub.f32 %v1695, %v2654
      %v2953 = vsub.f32 %v1344, %v2659
      %v2954 = vsub.f32 %v1346, %v2659
      %v2955 = vsub.f32 %v1697, %v2659
      %v2956 = vsub.f32 %v1699, %v2659
      %v2957 = vsub.f32 %v1350, %v2664
      %v2958 = vsub.f32 %v1352, %v2664
      %v2959 = vsub.f32 %v1703, %v2664
      %v2960 = vsub.f32 %v1705, %v2664
      %v2961 = vsub.f32 %v1354, %v2669
      %v2962 = vsub.f32 %v1356, %v2669
      %v2963 = vsub.f32 %v1707, %v2669
      %v2964 = vsub.f32 %v1709, %v2669
      %v2965 = vsub.f32 %v1360, %v2674
      %v2966 = vsub.f32 %v1362, %v2674
      %v2967 = vsub.f32 %v1713, %v2674
      %v2968 = vsub.f32 %v1715, %v2674
      %v2969 = vsub.f32 %v1364, %v2679
      %v2970 = vsub.f32 %v1366, %v2679
      %v2971 = vsub.f32 %v1717, %v2679
      %v2972 = vsub.f32 %v1719, %v2679
      %v2973 = vsub.f32 %v1370, %v2684
      %v2974 = vsub.f32 %v1372, %v2684
      %v2975 = vsub.f32 %v1723, %v2684
      %v2976 = vsub.f32 %v1725, %v2684
      %v2977 = vsub.f32 %v1374, %v2689
      %v2978 = vsub.f32 %v1376, %v2689
      %v2979 = vsub.f32 %v1727, %v2689
      %v2980 = vsub.f32 %v1729, %v2689
      %v2981 = vsub.f32 %v1380, %v2694
      %v2982 = vsub.f32 %v1382, %v2694
      %v2983 = vsub.f32 %v1733, %v2694
      %v2984 = vsub.f32 %v1735, %v2694
      %v2985 = vsub.f32 %v1384, %v2699
      %v2986 = vsub.f32 %v1386, %v2699
      %v2987 = vsub.f32 %v1737, %v2699
      %v2988 = vsub.f32 %v1739, %v2699
      %v2989 = vsub.f32 %v1390, %v2704
      %v2990 = vsub.f32 %v1392, %v2704
      %v2991 = vsub.f32 %v1743, %v2704
      %v2992 = vsub.f32 %v1745, %v2704
      %v2993 = vsub.f32 %v1394, %v2709
      %v2994 = vsub.f32 %v1396, %v2709
      %v2995 = vsub.f32 %v1747, %v2709
      %v2996 = vsub.f32 %v1749, %v2709
      %v2997 = vsub.f32 %v1400, %v2714
      %v2998 = vsub.f32 %v1402, %v2714
      %v2999 = vsub.f32 %v1753, %v2714
      %v3000 = vsub.f32 %v1755, %v2714
      %v3001 = vsub.f32 %v1404, %v2719
      %v3002 = vsub.f32 %v1406, %v2719
      %v3003 = vsub.f32 %v1757, %v2719
      %v3004 = vsub.f32 %v1759, %v2719
      %v3005 = vsub.f32 %v1410, %v2724
      %v3006 = vsub.f32 %v1412, %v2724
      %v3007 = vsub.f32 %v1763, %v2724
      %v3008 = vsub.f32 %v1765, %v2724
      %v3009 = vsub.f32 %v1414, %v2729
      %v3010 = vsub.f32 %v1416, %v2729
      %v3011 = vsub.f32 %v1767, %v2729
      %v3012 = vsub.f32 %v1769, %v2729
      %v3013 = vsub.f32 %v1420, %v2734
      %v3014 = vsub.f32 %v1422, %v2734
      %v3015 = vsub.f32 %v1773, %v2734
      %v3016 = vsub.f32 %v1775, %v2734
      %v3017 = vsub.f32 %v1424, %v2739
      %v3018 = vsub.f32 %v1426, %v2739
      %v3019 = vsub.f32 %v1777, %v2739
      %v3020 = vsub.f32 %v1779, %v2739
      %v3021 = vsub.f32 %v1430, %v2744
      %v3022 = vsub.f32 %v1432, %v2744
      %v3023 = vsub.f32 %v1783, %v2744
      %v3024 = vsub.f32 %v1785, %v2744
      %v3025 = vsub.f32 %v1434, %v2749
      %v3026 = vsub.f32 %v1436, %v2749
      %v3027 = vsub.f32 %v1787, %v2749
      %v3028 = vsub.f32 %v1789, %v2749
      %v3029 = vsub.f32 %v1440, %v2754
      %v3030 = vsub.f32 %v1442, %v2754
      %v3031 = vsub.f32 %v1793, %v2754
      %v3032 = vsub.f32 %v1795, %v2754
      %v3033 = vsub.f32 %v1444, %v2759
      %v3034 = vsub.f32 %v1446, %v2759
      %v3035 = vsub.f32 %v1797, %v2759
      %v3036 = vsub.f32 %v1799, %v2759
      %v3037 = vsub.f32 %v1450, %v2764
      %v3038 = vsub.f32 %v1452, %v2764
      %v3039 = vsub.f32 %v1803, %v2764
      %v3040 = vsub.f32 %v1805, %v2764
      %v3041 = vsub.f32 %v1454, %v2769
      %v3042 = vsub.f32 %v1456, %v2769
      %v3043 = vsub.f32 %v1807, %v2769
      %v3044 = vsub.f32 %v1809, %v2769
      %v3045 = vsub.f32 %v1460, %v2774
      %v3046 = vsub.f32 %v1462, %v2774
      %v3047 = vsub.f32 %v1813, %v2774
      %v3048 = vsub.f32 %v1815, %v2774
      %v3049 = vsub.f32 %v1464, %v2779
      %v3050 = vsub.f32 %v1466, %v2779
      %v3051 = vsub.f32 %v1817, %v2779
      %v3052 = vsub.f32 %v1819, %v2779
      %v3053 = vsub.f32 %v1470, %v2784
      %v3054 = vsub.f32 %v1472, %v2784
      %v3055 = vsub.f32 %v1823, %v2784
      %v3056 = vsub.f32 %v1825, %v2784
      %v3057 = vsub.f32 %v1474, %v2789
      %v3058 = vsub.f32 %v1476, %v2789
      %v3059 = vsub.f32 %v1827, %v2789
      %v3060 = vsub.f32 %v1829, %v2789
      %v3061 = vsub.f32 %v1480, %v2794
      %v3062 = vsub.f32 %v1482, %v2794
      %v3063 = vsub.f32 %v1833, %v2794
      %v3064 = vsub.f32 %v1835, %v2794
      %v3065 = vsub.f32 %v1484, %v2799
      %v3066 = vsub.f32 %v1486, %v2799
      %v3067 = vsub.f32 %v1837, %v2799
      %v3068 = vsub.f32 %v1839, %v2799
      %v3069 = vsub.f32 %v1490, %v2804
      %v3070 = vsub.f32 %v1492, %v2804
      %v3071 = vsub.f32 %v1843, %v2804
      %v3072 = vsub.f32 %v1845, %v2804
      %v3073 = vsub.f32 %v1494, %v2809
      %v3074 = vsub.f32 %v1496, %v2809
      %v3075 = vsub.f32 %v1847, %v2809
      %v3076 = vsub.f32 %v1849, %v2809
      %v3077 = vsub.f32 %v1500, %v2814
      %v3078 = vsub.f32 %v1502, %v2814
      %v3079 = vsub.f32 %v1853, %v2814
      %v3080 = vsub.f32 %v1855, %v2814
      %v3081 = vsub.f32 %v1504, %v2819
      %v3082 = vsub.f32 %v1506, %v2819
      %v3083 = vsub.f32 %v1857, %v2819
      %v3084 = vsub.f32 %v1859, %v2819
      %v3085 = vsub.f32 %v1510, %v2824
      %v3086 = vsub.f32 %v1512, %v2824
      %v3087 = vsub.f32 %v1863, %v2824
      %v3088 = vsub.f32 %v1865, %v2824
      %v3089 = vsub.f32 %v1514, %v2829
      %v3090 = vsub.f32 %v1516, %v2829
      %v3091 = vsub.f32 %v1867, %v2829
      %v3092 = vsub.f32 %v1869, %v2829
      %v3093 = vsub.f32 %v1520, %v2834
      %v3094 = vsub.f32 %v1522, %v2834
      %v3095 = vsub.f32 %v1873, %v2834
      %v3096 = vsub.f32 %v1875, %v2834
      %v3097 = vsub.f32 %v1524, %v2839
      %v3098 = vsub.f32 %v1526, %v2839
      %v3099 = vsub.f32 %v1877, %v2839
      %v3100 = vsub.f32 %v1879, %v2839
      %v3101 = vsub.f32 %v1530, %v2844
      %v3102 = vsub.f32 %v1532, %v2844
      %v3103 = vsub.f32 %v1883, %v2844
      %v3104 = vsub.f32 %v1885, %v2844
      %v3105 = vsub.f32 %v1534, %v2849
      %v3106 = vsub.f32 %v1536, %v2849
      %v3107 = vsub.f32 %v1887, %v2849
      %v3108 = vsub.f32 %v1889, %v2849
      %v3109 = vsub.f32 %v1540, %v2854
      %v3110 = vsub.f32 %v1542, %v2854
      %v3111 = vsub.f32 %v1893, %v2854
      %v3112 = vsub.f32 %v1895, %v2854
      %v3113 = vsub.f32 %v1544, %v2859
      %v3114 = vsub.f32 %v1546, %v2859
      %v3115 = vsub.f32 %v1897, %v2859
      %v3116 = vsub.f32 %v1899, %v2859
      %v3117 = vpack.c.bf16 %v2865, %v2861
      %v3118 = vpack.c.bf16 %v2866, %v2862
      %v3119 = vpack.c.bf16 %v2867, %v2863
      %v3120 = vpack.c.bf16 %v2868, %v2864
      %v3121 = vpack.c.bf16 %v2873, %v2869
      %v3122 = vpack.c.bf16 %v2874, %v2870
      %v3123 = vpack.c.bf16 %v2875, %v2871
      %v3124 = vpack.c.bf16 %v2876, %v2872
      %v3125 = vpack.c.bf16 %v2881, %v2877
      %v3126 = vpack.c.bf16 %v2882, %v2878
      %v3127 = vpack.c.bf16 %v2883, %v2879
      %v3128 = vpack.c.bf16 %v2884, %v2880
      %v3129 = vpack.c.bf16 %v2889, %v2885
      %v3130 = vpack.c.bf16 %v2890, %v2886
      %v3131 = vpack.c.bf16 %v2891, %v2887
      %v3132 = vpack.c.bf16 %v2892, %v2888
      %v3133 = vpack.c.bf16 %v2897, %v2893
      %v3134 = vpack.c.bf16 %v2898, %v2894
      %v3135 = vpack.c.bf16 %v2899, %v2895
      %v3136 = vpack.c.bf16 %v2900, %v2896
      %v3137 = vpack.c.bf16 %v2905, %v2901
      %v3138 = vpack.c.bf16 %v2906, %v2902
      %v3139 = vpack.c.bf16 %v2907, %v2903
      %v3140 = vpack.c.bf16 %v2908, %v2904
      %v3141 = vpack.c.bf16 %v2913, %v2909
      %v3142 = vpack.c.bf16 %v2914, %v2910
      %v3143 = vpack.c.bf16 %v2915, %v2911
      %v3144 = vpack.c.bf16 %v2916, %v2912
      %v3145 = vpack.c.bf16 %v2921, %v2917
      %v3146 = vpack.c.bf16 %v2922, %v2918
      %v3147 = vpack.c.bf16 %v2923, %v2919
      %v3148 = vpack.c.bf16 %v2924, %v2920
      %v3149 = vpack.c.bf16 %v2929, %v2925
      %v3150 = vpack.c.bf16 %v2930, %v2926
      %v3151 = vpack.c.bf16 %v2931, %v2927
      %v3152 = vpack.c.bf16 %v2932, %v2928
      %v3153 = vpack.c.bf16 %v2937, %v2933
      %v3154 = vpack.c.bf16 %v2938, %v2934
      %v3155 = vpack.c.bf16 %v2939, %v2935
      %v3156 = vpack.c.bf16 %v2940, %v2936
      %v3157 = vpack.c.bf16 %v2945, %v2941
      %v3158 = vpack.c.bf16 %v2946, %v2942
      %v3159 = vpack.c.bf16 %v2947, %v2943
      %v3160 = vpack.c.bf16 %v2948, %v2944
      %v3161 = vpack.c.bf16 %v2953, %v2949
      %v3162 = vpack.c.bf16 %v2954, %v2950
      %v3163 = vpack.c.bf16 %v2955, %v2951
      %v3164 = vpack.c.bf16 %v2956, %v2952
      %v3165 = vpack.c.bf16 %v2961, %v2957
      %v3166 = vpack.c.bf16 %v2962, %v2958
      %v3167 = vpack.c.bf16 %v2963, %v2959
      %v3168 = vpack.c.bf16 %v2964, %v2960
      %v3169 = vpack.c.bf16 %v2969, %v2965
      %v3170 = vpack.c.bf16 %v2970, %v2966
      %v3171 = vpack.c.bf16 %v2971, %v2967
      %v3172 = vpack.c.bf16 %v2972, %v2968
      %v3173 = vpack.c.bf16 %v2977, %v2973
      %v3174 = vpack.c.bf16 %v2978, %v2974
      %v3175 = vpack.c.bf16 %v2979, %v2975
      %v3176 = vpack.c.bf16 %v2980, %v2976
      %v3177 = vpack.c.bf16 %v2985, %v2981
      %v3178 = vpack.c.bf16 %v2986, %v2982
      %v3179 = vpack.c.bf16 %v2987, %v2983
      %v3180 = vpack.c.bf16 %v2988, %v2984
      %v3181 = vpack.c.bf16 %v2993, %v2989
      %v3182 = vpack.c.bf16 %v2994, %v2990
      %v3183 = vpack.c.bf16 %v2995, %v2991
      %v3184 = vpack.c.bf16 %v2996, %v2992
      %v3185 = vpack.c.bf16 %v3001, %v2997
      %v3186 = vpack.c.bf16 %v3002, %v2998
      %v3187 = vpack.c.bf16 %v3003, %v2999
      %v3188 = vpack.c.bf16 %v3004, %v3000
      %v3189 = vpack.c.bf16 %v3009, %v3005
      %v3190 = vpack.c.bf16 %v3010, %v3006
      %v3191 = vpack.c.bf16 %v3011, %v3007
      %v3192 = vpack.c.bf16 %v3012, %v3008
      %v3193 = vpack.c.bf16 %v3017, %v3013
      %v3194 = vpack.c.bf16 %v3018, %v3014
      %v3195 = vpack.c.bf16 %v3019, %v3015
      %v3196 = vpack.c.bf16 %v3020, %v3016
      %v3197 = vpack.c.bf16 %v3025, %v3021
      %v3198 = vpack.c.bf16 %v3026, %v3022
      %v3199 = vpack.c.bf16 %v3027, %v3023
      %v3200 = vpack.c.bf16 %v3028, %v3024
      %v3201 = vpack.c.bf16 %v3033, %v3029
      %v3202 = vpack.c.bf16 %v3034, %v3030
      %v3203 = vpack.c.bf16 %v3035, %v3031
      %v3204 = vpack.c.bf16 %v3036, %v3032
      %v3205 = vpack.c.bf16 %v3041, %v3037
      %v3206 = vpack.c.bf16 %v3042, %v3038
      %v3207 = vpack.c.bf16 %v3043, %v3039
      %v3208 = vpack.c.bf16 %v3044, %v3040
      %v3209 = vpack.c.bf16 %v3049, %v3045
      %v3210 = vpack.c.bf16 %v3050, %v3046
      %v3211 = vpack.c.bf16 %v3051, %v3047
      %v3212 = vpack.c.bf16 %v3052, %v3048
      %v3213 = vpack.c.bf16 %v3057, %v3053
      %v3214 = vpack.c.bf16 %v3058, %v3054
      %v3215 = vpack.c.bf16 %v3059, %v3055
      %v3216 = vpack.c.bf16 %v3060, %v3056
      %v3217 = vpack.c.bf16 %v3065, %v3061
      %v3218 = vpack.c.bf16 %v3066, %v3062
      %v3219 = vpack.c.bf16 %v3067, %v3063
      %v3220 = vpack.c.bf16 %v3068, %v3064
      %v3221 = vpack.c.bf16 %v3073, %v3069
      %v3222 = vpack.c.bf16 %v3074, %v3070
      %v3223 = vpack.c.bf16 %v3075, %v3071
      %v3224 = vpack.c.bf16 %v3076, %v3072
      %v3225 = vpack.c.bf16 %v3081, %v3077
      %v3226 = vpack.c.bf16 %v3082, %v3078
      %v3227 = vpack.c.bf16 %v3083, %v3079
      %v3228 = vpack.c.bf16 %v3084, %v3080
      %v3229 = vpack.c.bf16 %v3089, %v3085
      %v3230 = vpack.c.bf16 %v3090, %v3086
      %v3231 = vpack.c.bf16 %v3091, %v3087
      %v3232 = vpack.c.bf16 %v3092, %v3088
      %v3233 = vpack.c.bf16 %v3097, %v3093
      %v3234 = vpack.c.bf16 %v3098, %v3094
      %v3235 = vpack.c.bf16 %v3099, %v3095
      %v3236 = vpack.c.bf16 %v3100, %v3096
      %v3237 = vpack.c.bf16 %v3105, %v3101
      %v3238 = vpack.c.bf16 %v3106, %v3102
      %v3239 = vpack.c.bf16 %v3107, %v3103
      %v3240 = vpack.c.bf16 %v3108, %v3104
      %v3241 = vpack.c.bf16 %v3113, %v3109
      %v3242 = vpack.c.bf16 %v3114, %v3110
      %v3243 = vpack.c.bf16 %v3115, %v3111
      %v3244 = vpack.c.bf16 %v3116, %v3112
      %v3246 = vmul.bf16 %v3117, 1069105081
      %v3247 = vpow.bf16.pop %v3246
      %v3249 = vmul.bf16 %v3118, 1069105081
      %v3250 = vpow.bf16.pop %v3249
      %v3252 = vmul.bf16 %v3119, 1069105081
      %v3253 = vpow.bf16.pop %v3252
      %v3255 = vmul.bf16 %v3120, 1069105081
      %v3256 = vpow.bf16.pop %v3255
      %v3258 = vmul.bf16 %v3121, 1069105081
      %v3259 = vpow.bf16.pop %v3258
      %v3261 = vmul.bf16 %v3122, 1069105081
      %v3262 = vpow.bf16.pop %v3261
      %v3264 = vmul.bf16 %v3123, 1069105081
      %v3265 = vpow.bf16.pop %v3264
      %v3267 = vmul.bf16 %v3124, 1069105081
      %v3268 = vpow.bf16.pop %v3267
      %v3270 = vmul.bf16 %v3125, 1069105081
      %v3271 = vpow.bf16.pop %v3270
      %v3273 = vmul.bf16 %v3126, 1069105081
      %v3274 = vpow.bf16.pop %v3273
      %v3276 = vmul.bf16 %v3127, 1069105081
      %v3277 = vpow.bf16.pop %v3276
      %v3279 = vmul.bf16 %v3128, 1069105081
      %v3280 = vpow.bf16.pop %v3279
      %v3282 = vmul.bf16 %v3129, 1069105081
      %v3283 = vpow.bf16.pop %v3282
      %v3285 = vmul.bf16 %v3130, 1069105081
      %v3286 = vpow.bf16.pop %v3285
      %v3288 = vmul.bf16 %v3131, 1069105081
      %v3289 = vpow.bf16.pop %v3288
      %v3291 = vmul.bf16 %v3132, 1069105081
      %v3292 = vpow.bf16.pop %v3291
      %v3294 = vmul.bf16 %v3133, 1069105081
      %v3295 = vpow.bf16.pop %v3294
      %v3297 = vmul.bf16 %v3134, 1069105081
      %v3298 = vpow.bf16.pop %v3297
      %v3300 = vmul.bf16 %v3135, 1069105081
      %v3301 = vpow.bf16.pop %v3300
      %v3303 = vmul.bf16 %v3136, 1069105081
      %v3304 = vpow.bf16.pop %v3303
      %v3306 = vmul.bf16 %v3137, 1069105081
      %v3307 = vpow.bf16.pop %v3306
      %v3309 = vmul.bf16 %v3138, 1069105081
      %v3310 = vpow.bf16.pop %v3309
      %v3312 = vmul.bf16 %v3139, 1069105081
      %v3313 = vpow.bf16.pop %v3312
      %v3315 = vmul.bf16 %v3140, 1069105081
      %v3316 = vpow.bf16.pop %v3315
      %v3318 = vmul.bf16 %v3141, 1069105081
      %v3319 = vpow.bf16.pop %v3318
      %v3321 = vmul.bf16 %v3142, 1069105081
      %v3322 = vpow.bf16.pop %v3321
      %v3324 = vmul.bf16 %v3143, 1069105081
      %v3325 = vpow.bf16.pop %v3324
      %v3327 = vmul.bf16 %v3144, 1069105081
      %v3328 = vpow.bf16.pop %v3327
      %v3330 = vmul.bf16 %v3145, 1069105081
      %v3331 = vpow.bf16.pop %v3330
      %v3333 = vmul.bf16 %v3146, 1069105081
      %v3334 = vpow.bf16.pop %v3333
      %v3336 = vmul.bf16 %v3147, 1069105081
      %v3337 = vpow.bf16.pop %v3336
      %v3339 = vmul.bf16 %v3148, 1069105081
      %v3340 = vpow.bf16.pop %v3339
      %v3342 = vmul.bf16 %v3149, 1069105081
      %v3343 = vpow.bf16.pop %v3342
      %v3345 = vmul.bf16 %v3150, 1069105081
      %v3346 = vpow.bf16.pop %v3345
      %v3348 = vmul.bf16 %v3151, 1069105081
      %v3349 = vpow.bf16.pop %v3348
      %v3351 = vmul.bf16 %v3152, 1069105081
      %v3352 = vpow.bf16.pop %v3351
      %v3354 = vmul.bf16 %v3153, 1069105081
      %v3355 = vpow.bf16.pop %v3354
      %v3357 = vmul.bf16 %v3154, 1069105081
      %v3358 = vpow.bf16.pop %v3357
      %v3360 = vmul.bf16 %v3155, 1069105081
      %v3361 = vpow.bf16.pop %v3360
      %v3363 = vmul.bf16 %v3156, 1069105081
      %v3364 = vpow.bf16.pop %v3363
      %v3366 = vmul.bf16 %v3157, 1069105081
      %v3367 = vpow.bf16.pop %v3366
      %v3369 = vmul.bf16 %v3158, 1069105081
      %v3370 = vpow.bf16.pop %v3369
      %v3372 = vmul.bf16 %v3159, 1069105081
      %v3373 = vpow.bf16.pop %v3372
      %v3375 = vmul.bf16 %v3160, 1069105081
      %v3376 = vpow.bf16.pop %v3375
      %v3378 = vmul.bf16 %v3161, 1069105081
      %v3379 = vpow.bf16.pop %v3378
      %v3381 = vmul.bf16 %v3162, 1069105081
      %v3382 = vpow.bf16.pop %v3381
      %v3384 = vmul.bf16 %v3163, 1069105081
      %v3385 = vpow.bf16.pop %v3384
      %v3387 = vmul.bf16 %v3164, 1069105081
      %v3388 = vpow.bf16.pop %v3387
      %v3390 = vmul.bf16 %v3165, 1069105081
      %v3391 = vpow.bf16.pop %v3390
      %v3393 = vmul.bf16 %v3166, 1069105081
      %v3394 = vpow.bf16.pop %v3393
      %v3396 = vmul.bf16 %v3167, 1069105081
      %v3397 = vpow.bf16.pop %v3396
      %v3399 = vmul.bf16 %v3168, 1069105081
      %v3400 = vpow.bf16.pop %v3399
      %v3402 = vmul.bf16 %v3169, 1069105081
      %v3403 = vpow.bf16.pop %v3402
      %v3405 = vmul.bf16 %v3170, 1069105081
      %v3406 = vpow.bf16.pop %v3405
      %v3408 = vmul.bf16 %v3171, 1069105081
      %v3409 = vpow.bf16.pop %v3408
      %v3411 = vmul.bf16 %v3172, 1069105081
      %v3412 = vpow.bf16.pop %v3411
      %v3414 = vmul.bf16 %v3173, 1069105081
      %v3415 = vpow.bf16.pop %v3414
      %v3417 = vmul.bf16 %v3174, 1069105081
      %v3418 = vpow.bf16.pop %v3417
      %v3420 = vmul.bf16 %v3175, 1069105081
      %v3421 = vpow.bf16.pop %v3420
      %v3423 = vmul.bf16 %v3176, 1069105081
      %v3424 = vpow.bf16.pop %v3423
      %v3426 = vmul.bf16 %v3177, 1069105081
      %v3427 = vpow.bf16.pop %v3426
      %v3429 = vmul.bf16 %v3178, 1069105081
      %v3430 = vpow.bf16.pop %v3429
      %v3432 = vmul.bf16 %v3179, 1069105081
      %v3433 = vpow.bf16.pop %v3432
      %v3435 = vmul.bf16 %v3180, 1069105081
      %v3436 = vpow.bf16.pop %v3435
      %v3438 = vmul.bf16 %v3181, 1069105081
      %v3439 = vpow.bf16.pop %v3438
      %v3441 = vmul.bf16 %v3182, 1069105081
      %v3442 = vpow.bf16.pop %v3441
      %v3444 = vmul.bf16 %v3183, 1069105081
      %v3445 = vpow.bf16.pop %v3444
      %v3447 = vmul.bf16 %v3184, 1069105081
      %v3448 = vpow.bf16.pop %v3447
      %v3450 = vmul.bf16 %v3185, 1069105081
      %v3451 = vpow.bf16.pop %v3450
      %v3453 = vmul.bf16 %v3186, 1069105081
      %v3454 = vpow.bf16.pop %v3453
      %v3456 = vmul.bf16 %v3187, 1069105081
      %v3457 = vpow.bf16.pop %v3456
      %v3459 = vmul.bf16 %v3188, 1069105081
      %v3460 = vpow.bf16.pop %v3459
      %v3462 = vmul.bf16 %v3189, 1069105081
      %v3463 = vpow.bf16.pop %v3462
      %v3465 = vmul.bf16 %v3190, 1069105081
      %v3466 = vpow.bf16.pop %v3465
      %v3468 = vmul.bf16 %v3191, 1069105081
      %v3469 = vpow.bf16.pop %v3468
      %v3471 = vmul.bf16 %v3192, 1069105081
      %v3472 = vpow.bf16.pop %v3471
      %v3474 = vmul.bf16 %v3193, 1069105081
      %v3475 = vpow.bf16.pop %v3474
      %v3477 = vmul.bf16 %v3194, 1069105081
      %v3478 = vpow.bf16.pop %v3477
      %v3480 = vmul.bf16 %v3195, 1069105081
      %v3481 = vpow.bf16.pop %v3480
      %v3483 = vmul.bf16 %v3196, 1069105081
      %v3484 = vpow.bf16.pop %v3483
      %v3486 = vmul.bf16 %v3197, 1069105081
      %v3487 = vpow.bf16.pop %v3486
      %v3489 = vmul.bf16 %v3198, 1069105081
      %v3490 = vpow.bf16.pop %v3489
      %v3492 = vmul.bf16 %v3199, 1069105081
      %v3493 = vpow.bf16.pop %v3492
      %v3495 = vmul.bf16 %v3200, 1069105081
      %v3496 = vpow.bf16.pop %v3495
      %v3498 = vmul.bf16 %v3201, 1069105081
      %v3499 = vpow.bf16.pop %v3498
      %v3501 = vmul.bf16 %v3202, 1069105081
      %v3502 = vpow.bf16.pop %v3501
      %v3504 = vmul.bf16 %v3203, 1069105081
      %v3505 = vpow.bf16.pop %v3504
      %v3507 = vmul.bf16 %v3204, 1069105081
      %v3508 = vpow.bf16.pop %v3507
      %v3510 = vmul.bf16 %v3205, 1069105081
      %v3511 = vpow.bf16.pop %v3510
      %v3513 = vmul.bf16 %v3206, 1069105081
      %v3514 = vpow.bf16.pop %v3513
      %v3516 = vmul.bf16 %v3207, 1069105081
      %v3517 = vpow.bf16.pop %v3516
      %v3519 = vmul.bf16 %v3208, 1069105081
      %v3520 = vpow.bf16.pop %v3519
      %v3522 = vmul.bf16 %v3209, 1069105081
      %v3523 = vpow.bf16.pop %v3522
      %v3525 = vmul.bf16 %v3210, 1069105081
      %v3526 = vpow.bf16.pop %v3525
      %v3528 = vmul.bf16 %v3211, 1069105081
      %v3529 = vpow.bf16.pop %v3528
      %v3531 = vmul.bf16 %v3212, 1069105081
      %v3532 = vpow.bf16.pop %v3531
      %v3534 = vmul.bf16 %v3213, 1069105081
      %v3535 = vpow.bf16.pop %v3534
      %v3537 = vmul.bf16 %v3214, 1069105081
      %v3538 = vpow.bf16.pop %v3537
      %v3540 = vmul.bf16 %v3215, 1069105081
      %v3541 = vpow.bf16.pop %v3540
      %v3543 = vmul.bf16 %v3216, 1069105081
      %v3544 = vpow.bf16.pop %v3543
      %v3546 = vmul.bf16 %v3217, 1069105081
      %v3547 = vpow.bf16.pop %v3546
      %v3549 = vmul.bf16 %v3218, 1069105081
      %v3550 = vpow.bf16.pop %v3549
      %v3552 = vmul.bf16 %v3219, 1069105081
      %v3553 = vpow.bf16.pop %v3552
      %v3555 = vmul.bf16 %v3220, 1069105081
      %v3556 = vpow.bf16.pop %v3555
      %v3558 = vmul.bf16 %v3221, 1069105081
      %v3559 = vpow.bf16.pop %v3558
      %v3561 = vmul.bf16 %v3222, 1069105081
      %v3562 = vpow.bf16.pop %v3561
      %v3564 = vmul.bf16 %v3223, 1069105081
      %v3565 = vpow.bf16.pop %v3564
      %v3567 = vmul.bf16 %v3224, 1069105081
      %v3568 = vpow.bf16.pop %v3567
      %v3570 = vmul.bf16 %v3225, 1069105081
      %v3571 = vpow.bf16.pop %v3570
      %v3573 = vmul.bf16 %v3226, 1069105081
      %v3574 = vpow.bf16.pop %v3573
      %v3576 = vmul.bf16 %v3227, 1069105081
      %v3577 = vpow.bf16.pop %v3576
      %v3579 = vmul.bf16 %v3228, 1069105081
      %v3580 = vpow.bf16.pop %v3579
      %v3582 = vmul.bf16 %v3229, 1069105081
      %v3583 = vpow.bf16.pop %v3582
      %v3585 = vmul.bf16 %v3230, 1069105081
      %v3586 = vpow.bf16.pop %v3585
      %v3588 = vmul.bf16 %v3231, 1069105081
      %v3589 = vpow.bf16.pop %v3588
      %v3591 = vmul.bf16 %v3232, 1069105081
      %v3592 = vpow.bf16.pop %v3591
      %v3594 = vmul.bf16 %v3233, 1069105081
      %v3595 = vpow.bf16.pop %v3594
      %v3597 = vmul.bf16 %v3234, 1069105081
      %v3598 = vpow.bf16.pop %v3597
      %v3600 = vmul.bf16 %v3235, 1069105081
      %v3601 = vpow.bf16.pop %v3600
      %v3603 = vmul.bf16 %v3236, 1069105081
      %v3604 = vpow.bf16.pop %v3603
      %v3606 = vmul.bf16 %v3237, 1069105081
      %v3607 = vpow.bf16.pop %v3606
      %v3609 = vmul.bf16 %v3238, 1069105081
      %v3610 = vpow.bf16.pop %v3609
      %v3612 = vmul.bf16 %v3239, 1069105081
      %v3613 = vpow.bf16.pop %v3612
      %v3615 = vmul.bf16 %v3240, 1069105081
      %v3616 = vpow.bf16.pop %v3615
      %v3618 = vmul.bf16 %v3241, 1069105081
      %v3619 = vpow.bf16.pop %v3618
      %v3621 = vmul.bf16 %v3242, 1069105081
      %v3622 = vpow.bf16.pop %v3621
      %v3624 = vmul.bf16 %v3243, 1069105081
      %v3625 = vpow.bf16.pop %v3624
      %v3627 = vmul.bf16 %v3244, 1069105081
      %v3628 = vpow.bf16.pop %v3627
      %v3629 = vld [vmem:[#allocation3] sm:$0xff]
      %v3630 = vld [vmem:[#allocation3 + $0x8] sm:$0xff]
      %v3631 = vld [vmem:[#allocation3 + $0x10] sm:$0xff]
      %v3632 = vld [vmem:[#allocation3 + $0x18] sm:$0xff]
      %v3633 = vld [vmem:[#allocation3 + $0x20] sm:$0xff]
      %v3634 = vld [vmem:[#allocation3 + $0x28] sm:$0xff]
      %v3635 = vld [vmem:[#allocation3 + $0x30] sm:$0xff]
      %v3636 = vld [vmem:[#allocation3 + $0x38] sm:$0xff]
      %v3637 = vld [vmem:[#allocation3 + $0x40] sm:$0xff]
      %v3638 = vld [vmem:[#allocation3 + $0x48] sm:$0xff]
      %v3639 = vld [vmem:[#allocation3 + $0x50] sm:$0xff]
      %v3640 = vld [vmem:[#allocation3 + $0x58] sm:$0xff]
      %v3641 = vld [vmem:[#allocation3 + $0x60] sm:$0xff]
      %v3642 = vld [vmem:[#allocation3 + $0x68] sm:$0xff]
      %v3643 = vld [vmem:[#allocation3 + $0x70] sm:$0xff]
      %v3644 = vld [vmem:[#allocation3 + $0x78] sm:$0xff]
      %v3645 = vld [vmem:[#allocation3 + $0x80] sm:$0xff]
      %v3646 = vld [vmem:[#allocation3 + $0x88] sm:$0xff]
      %v3647 = vld [vmem:[#allocation3 + $0x90] sm:$0xff]
      %v3648 = vld [vmem:[#allocation3 + $0x98] sm:$0xff]
      %v3649 = vld [vmem:[#allocation3 + $0xa0] sm:$0xff]
      %v3650 = vld [vmem:[#allocation3 + $0xa8] sm:$0xff]
      %v3651 = vld [vmem:[#allocation3 + $0xb0] sm:$0xff]
      %v3652 = vld [vmem:[#allocation3 + $0xb8] sm:$0xff]
      %v3653 = vld [vmem:[#allocation3 + $0xc0] sm:$0xff]
      %v3654 = vld [vmem:[#allocation3 + $0xc8] sm:$0xff]
      %v3655 = vld [vmem:[#allocation3 + $0xd0] sm:$0xff]
      %v3656 = vld [vmem:[#allocation3 + $0xd8] sm:$0xff]
      %v3657 = vld [vmem:[#allocation3 + $0xe0] sm:$0xff]
      %v3658 = vld [vmem:[#allocation3 + $0xe8] sm:$0xff]
      %v3659 = vld [vmem:[#allocation3 + $0xf0] sm:$0xff]
      %v3660 = vld [vmem:[#allocation3 + $0xf8] sm:$0xff]
      %v3661 = vld [vmem:[#allocation3 + $0x100] sm:$0xff]
      %v3662 = vld [vmem:[#allocation3 + $0x108] sm:$0xff]
      %v3663 = vld [vmem:[#allocation3 + $0x110] sm:$0xff]
      %v3664 = vld [vmem:[#allocation3 + $0x118] sm:$0xff]
      %v3665 = vld [vmem:[#allocation3 + $0x120] sm:$0xff]
      %v3666 = vld [vmem:[#allocation3 + $0x128] sm:$0xff]
      %v3667 = vld [vmem:[#allocation3 + $0x130] sm:$0xff]
      %v3668 = vld [vmem:[#allocation3 + $0x138] sm:$0xff]
      %v3669 = vld [vmem:[#allocation3 + $0x140] sm:$0xff]
      %v3670 = vld [vmem:[#allocation3 + $0x148] sm:$0xff]
      %v3671 = vld [vmem:[#allocation3 + $0x150] sm:$0xff]
      %v3672 = vld [vmem:[#allocation3 + $0x158] sm:$0xff]
      %v3673 = vld [vmem:[#allocation3 + $0x160] sm:$0xff]
      %v3674 = vld [vmem:[#allocation3 + $0x168] sm:$0xff]
      %v3675 = vld [vmem:[#allocation3 + $0x170] sm:$0xff]
      %v3676 = vld [vmem:[#allocation3 + $0x178] sm:$0xff]
      %v3677 = vld [vmem:[#allocation3 + $0x180] sm:$0xff]
      %v3678 = vld [vmem:[#allocation3 + $0x188] sm:$0xff]
      %v3679 = vld [vmem:[#allocation3 + $0x190] sm:$0xff]
      %v3680 = vld [vmem:[#allocation3 + $0x198] sm:$0xff]
      %v3681 = vld [vmem:[#allocation3 + $0x1a0] sm:$0xff]
      %v3682 = vld [vmem:[#allocation3 + $0x1a8] sm:$0xff]
      %v3683 = vld [vmem:[#allocation3 + $0x1b0] sm:$0xff]
      %v3684 = vld [vmem:[#allocation3 + $0x1b8] sm:$0xff]
      %v3685 = vld [vmem:[#allocation3 + $0x1c0] sm:$0xff]
      %v3686 = vld [vmem:[#allocation3 + $0x1c8] sm:$0xff]
      %v3687 = vld [vmem:[#allocation3 + $0x1d0] sm:$0xff]
      %v3688 = vld [vmem:[#allocation3 + $0x1d8] sm:$0xff]
      %v3689 = vld [vmem:[#allocation3 + $0x1e0] sm:$0xff]
      %v3690 = vld [vmem:[#allocation3 + $0x1e8] sm:$0xff]
      %v3691 = vld [vmem:[#allocation3 + $0x1f0] sm:$0xff]
      %v3692 = vld [vmem:[#allocation3 + $0x1f8] sm:$0xff]
      %3694 = vset.pattern.permute.xlu0 0
      %3695 = vperm.xlu0 %3694, %v2414
      %v3696 = vpop.permute.xlu0 %3695
      %3699 = vset.pattern.permute.xlu0 0
      %3700 = vperm.xlu0 %3699, %v2416
      %v3701 = vpop.permute.xlu0 %3700
      %3704 = vset.pattern.permute.xlu0 0
      %3705 = vperm.xlu0 %3704, %v2418
      %v3706 = vpop.permute.xlu0 %3705
      %3709 = vset.pattern.permute.xlu0 0
      %3710 = vperm.xlu0 %3709, %v2420
      %v3711 = vpop.permute.xlu0 %3710
      %3714 = vset.pattern.permute.xlu0 0
      %3715 = vperm.xlu0 %3714, %v2422
      %v3716 = vpop.permute.xlu0 %3715
      %3719 = vset.pattern.permute.xlu0 0
      %3720 = vperm.xlu0 %3719, %v2424
      %v3721 = vpop.permute.xlu0 %3720
      %3724 = vset.pattern.permute.xlu0 0
      %3725 = vperm.xlu0 %3724, %v2426
      %v3726 = vpop.permute.xlu0 %3725
      %3729 = vset.pattern.permute.xlu0 0
      %3730 = vperm.xlu0 %3729, %v2428
      %v3731 = vpop.permute.xlu0 %3730
      %3734 = vset.pattern.permute.xlu0 0
      %3735 = vperm.xlu0 %3734, %v2430
      %v3736 = vpop.permute.xlu0 %3735
      %3739 = vset.pattern.permute.xlu0 0
      %3740 = vperm.xlu0 %3739, %v2432
      %v3741 = vpop.permute.xlu0 %3740
      %3744 = vset.pattern.permute.xlu0 0
      %3745 = vperm.xlu0 %3744, %v2434
      %v3746 = vpop.permute.xlu0 %3745
      %3749 = vset.pattern.permute.xlu0 0
      %3750 = vperm.xlu0 %3749, %v2436
      %v3751 = vpop.permute.xlu0 %3750
      %3754 = vset.pattern.permute.xlu0 0
      %3755 = vperm.xlu0 %3754, %v2438
      %v3756 = vpop.permute.xlu0 %3755
      %3759 = vset.pattern.permute.xlu0 0
      %3760 = vperm.xlu0 %3759, %v2440
      %v3761 = vpop.permute.xlu0 %3760
      %3764 = vset.pattern.permute.xlu0 0
      %3765 = vperm.xlu0 %3764, %v2442
      %v3766 = vpop.permute.xlu0 %3765
      %3769 = vset.pattern.permute.xlu0 0
      %3770 = vperm.xlu0 %3769, %v2444
      %v3771 = vpop.permute.xlu0 %3770
      %3774 = vset.pattern.permute.xlu0 0
      %3775 = vperm.xlu0 %3774, %v2446
      %v3776 = vpop.permute.xlu0 %3775
      %3779 = vset.pattern.permute.xlu0 0
      %3780 = vperm.xlu0 %3779, %v2448
      %v3781 = vpop.permute.xlu0 %3780
      %3784 = vset.pattern.permute.xlu0 0
      %3785 = vperm.xlu0 %3784, %v2450
      %v3786 = vpop.permute.xlu0 %3785
      %3789 = vset.pattern.permute.xlu0 0
      %3790 = vperm.xlu0 %3789, %v2452
      %v3791 = vpop.permute.xlu0 %3790
      %3794 = vset.pattern.permute.xlu0 0
      %3795 = vperm.xlu0 %3794, %v2454
      %v3796 = vpop.permute.xlu0 %3795
      %3799 = vset.pattern.permute.xlu0 0
      %3800 = vperm.xlu0 %3799, %v2456
      %v3801 = vpop.permute.xlu0 %3800
      %3804 = vset.pattern.permute.xlu0 0
      %3805 = vperm.xlu0 %3804, %v2458
      %v3806 = vpop.permute.xlu0 %3805
      %3809 = vset.pattern.permute.xlu0 0
      %3810 = vperm.xlu0 %3809, %v2460
      %v3811 = vpop.permute.xlu0 %3810
      %3814 = vset.pattern.permute.xlu0 0
      %3815 = vperm.xlu0 %3814, %v2462
      %v3816 = vpop.permute.xlu0 %3815
      %3819 = vset.pattern.permute.xlu0 0
      %3820 = vperm.xlu0 %3819, %v2464
      %v3821 = vpop.permute.xlu0 %3820
      %3824 = vset.pattern.permute.xlu0 0
      %3825 = vperm.xlu0 %3824, %v2466
      %v3826 = vpop.permute.xlu0 %3825
      %3829 = vset.pattern.permute.xlu0 0
      %3830 = vperm.xlu0 %3829, %v2468
      %v3831 = vpop.permute.xlu0 %3830
      %3834 = vset.pattern.permute.xlu0 0
      %3835 = vperm.xlu0 %3834, %v2470
      %v3836 = vpop.permute.xlu0 %3835
      %3839 = vset.pattern.permute.xlu0 0
      %3840 = vperm.xlu0 %3839, %v2472
      %v3841 = vpop.permute.xlu0 %3840
      %3844 = vset.pattern.permute.xlu0 0
      %3845 = vperm.xlu0 %3844, %v2474
      %v3846 = vpop.permute.xlu0 %3845
      %3849 = vset.pattern.permute.xlu0 0
      %3850 = vperm.xlu0 %3849, %v2476
      %v3851 = vpop.permute.xlu0 %3850
      %3854 = vset.pattern.permute.xlu0 0
      %3855 = vperm.xlu0 %3854, %v2478
      %v3856 = vpop.permute.xlu0 %3855
      %3859 = vset.pattern.permute.xlu0 0
      %3860 = vperm.xlu0 %3859, %v2480
      %v3861 = vpop.permute.xlu0 %3860
      %3864 = vset.pattern.permute.xlu0 0
      %3865 = vperm.xlu0 %3864, %v2482
      %v3866 = vpop.permute.xlu0 %3865
      %3869 = vset.pattern.permute.xlu0 0
      %3870 = vperm.xlu0 %3869, %v2484
      %v3871 = vpop.permute.xlu0 %3870
      %3874 = vset.pattern.permute.xlu0 0
      %3875 = vperm.xlu0 %3874, %v2486
      %v3876 = vpop.permute.xlu0 %3875
      %3879 = vset.pattern.permute.xlu0 0
      %3880 = vperm.xlu0 %3879, %v2488
      %v3881 = vpop.permute.xlu0 %3880
      %3884 = vset.pattern.permute.xlu0 0
      %3885 = vperm.xlu0 %3884, %v2490
      %v3886 = vpop.permute.xlu0 %3885
      %3889 = vset.pattern.permute.xlu0 0
      %3890 = vperm.xlu0 %3889, %v2492
      %v3891 = vpop.permute.xlu0 %3890
      %3894 = vset.pattern.permute.xlu0 0
      %3895 = vperm.xlu0 %3894, %v2494
      %v3896 = vpop.permute.xlu0 %3895
      %3899 = vset.pattern.permute.xlu0 0
      %3900 = vperm.xlu0 %3899, %v2496
      %v3901 = vpop.permute.xlu0 %3900
      %3904 = vset.pattern.permute.xlu0 0
      %3905 = vperm.xlu0 %3904, %v2498
      %v3906 = vpop.permute.xlu0 %3905
      %3909 = vset.pattern.permute.xlu0 0
      %3910 = vperm.xlu0 %3909, %v2500
      %v3911 = vpop.permute.xlu0 %3910
      %3914 = vset.pattern.permute.xlu0 0
      %3915 = vperm.xlu0 %3914, %v2502
      %v3916 = vpop.permute.xlu0 %3915
      %3919 = vset.pattern.permute.xlu0 0
      %3920 = vperm.xlu0 %3919, %v2504
      %v3921 = vpop.permute.xlu0 %3920
      %3924 = vset.pattern.permute.xlu0 0
      %3925 = vperm.xlu0 %3924, %v2506
      %v3926 = vpop.permute.xlu0 %3925
      %3929 = vset.pattern.permute.xlu0 0
      %3930 = vperm.xlu0 %3929, %v2508
      %v3931 = vpop.permute.xlu0 %3930
      %3934 = vset.pattern.permute.xlu0 0
      %3935 = vperm.xlu0 %3934, %v2510
      %v3936 = vpop.permute.xlu0 %3935
      %3939 = vset.pattern.permute.xlu0 0
      %3940 = vperm.xlu0 %3939, %v2512
      %v3941 = vpop.permute.xlu0 %3940
      %3944 = vset.pattern.permute.xlu0 0
      %3945 = vperm.xlu0 %3944, %v2514
      %v3946 = vpop.permute.xlu0 %3945
      %3949 = vset.pattern.permute.xlu0 0
      %3950 = vperm.xlu0 %3949, %v2516
      %v3951 = vpop.permute.xlu0 %3950
      %3954 = vset.pattern.permute.xlu0 0
      %3955 = vperm.xlu0 %3954, %v2518
      %v3956 = vpop.permute.xlu0 %3955
      %3959 = vset.pattern.permute.xlu0 0
      %3960 = vperm.xlu0 %3959, %v2520
      %v3961 = vpop.permute.xlu0 %3960
      %3964 = vset.pattern.permute.xlu0 0
      %3965 = vperm.xlu0 %3964, %v2522
      %v3966 = vpop.permute.xlu0 %3965
      %3969 = vset.pattern.permute.xlu0 0
      %3970 = vperm.xlu0 %3969, %v2524
      %v3971 = vpop.permute.xlu0 %3970
      %3974 = vset.pattern.permute.xlu0 0
      %3975 = vperm.xlu0 %3974, %v2526
      %v3976 = vpop.permute.xlu0 %3975
      %3979 = vset.pattern.permute.xlu0 0
      %3980 = vperm.xlu0 %3979, %v2528
      %v3981 = vpop.permute.xlu0 %3980
      %3984 = vset.pattern.permute.xlu0 0
      %3985 = vperm.xlu0 %3984, %v2530
      %v3986 = vpop.permute.xlu0 %3985
      %3989 = vset.pattern.permute.xlu0 0
      %3990 = vperm.xlu0 %3989, %v2532
      %v3991 = vpop.permute.xlu0 %3990
      %3994 = vset.pattern.permute.xlu0 0
      %3995 = vperm.xlu0 %3994, %v2534
      %v3996 = vpop.permute.xlu0 %3995
      %3999 = vset.pattern.permute.xlu0 0
      %4000 = vperm.xlu0 %3999, %v2536
      %v4001 = vpop.permute.xlu0 %4000
      %4004 = vset.pattern.permute.xlu0 0
      %4005 = vperm.xlu0 %4004, %v2538
      %v4006 = vpop.permute.xlu0 %4005
      %4009 = vset.pattern.permute.xlu0 0
      %4010 = vperm.xlu0 %4009, %v2540
      %v4011 = vpop.permute.xlu0 %4010
      %v4013 = vmul.f32 %v3696, %v3629
      %v4014 = vmul.f32 %v3701, %v3630
      %v4015 = vmul.f32 %v3706, %v3631
      %v4016 = vmul.f32 %v3711, %v3632
      %v4017 = vmul.f32 %v3716, %v3633
      %v4018 = vmul.f32 %v3721, %v3634
      %v4019 = vmul.f32 %v3726, %v3635
      %v4020 = vmul.f32 %v3731, %v3636
      %v4021 = vmul.f32 %v3736, %v3637
      %v4022 = vmul.f32 %v3741, %v3638
      %v4023 = vmul.f32 %v3746, %v3639
      %v4024 = vmul.f32 %v3751, %v3640
      %v4025 = vmul.f32 %v3756, %v3641
      %v4026 = vmul.f32 %v3761, %v3642
      %v4027 = vmul.f32 %v3766, %v3643
      %v4028 = vmul.f32 %v3771, %v3644
      %v4029 = vmul.f32 %v3776, %v3645
      %v4030 = vmul.f32 %v3781, %v3646
      %v4031 = vmul.f32 %v3786, %v3647
      %v4032 = vmul.f32 %v3791, %v3648
      %v4033 = vmul.f32 %v3796, %v3649
      %v4034 = vmul.f32 %v3801, %v3650
      %v4035 = vmul.f32 %v3806, %v3651
      %v4036 = vmul.f32 %v3811, %v3652
      %v4037 = vmul.f32 %v3816, %v3653
      %v4038 = vmul.f32 %v3821, %v3654
      %v4039 = vmul.f32 %v3826, %v3655
      %v4040 = vmul.f32 %v3831, %v3656
      %v4041 = vmul.f32 %v3836, %v3657
      %v4042 = vmul.f32 %v3841, %v3658
      %v4043 = vmul.f32 %v3846, %v3659
      %v4044 = vmul.f32 %v3851, %v3660
      %v4045 = vmul.f32 %v3856, %v3661
      %v4046 = vmul.f32 %v3861, %v3662
      %v4047 = vmul.f32 %v3866, %v3663
      %v4048 = vmul.f32 %v3871, %v3664
      %v4049 = vmul.f32 %v3876, %v3665
      %v4050 = vmul.f32 %v3881, %v3666
      %v4051 = vmul.f32 %v3886, %v3667
      %v4052 = vmul.f32 %v3891, %v3668
      %v4053 = vmul.f32 %v3896, %v3669
      %v4054 = vmul.f32 %v3901, %v3670
      %v4055 = vmul.f32 %v3906, %v3671
      %v4056 = vmul.f32 %v3911, %v3672
      %v4057 = vmul.f32 %v3916, %v3673
      %v4058 = vmul.f32 %v3921, %v3674
      %v4059 = vmul.f32 %v3926, %v3675
      %v4060 = vmul.f32 %v3931, %v3676
      %v4061 = vmul.f32 %v3936, %v3677
      %v4062 = vmul.f32 %v3941, %v3678
      %v4063 = vmul.f32 %v3946, %v3679
      %v4064 = vmul.f32 %v3951, %v3680
      %v4065 = vmul.f32 %v3956, %v3681
      %v4066 = vmul.f32 %v3961, %v3682
      %v4067 = vmul.f32 %v3966, %v3683
      %v4068 = vmul.f32 %v3971, %v3684
      %v4069 = vmul.f32 %v3976, %v3685
      %v4070 = vmul.f32 %v3981, %v3686
      %v4071 = vmul.f32 %v3986, %v3687
      %v4072 = vmul.f32 %v3991, %v3688
      %v4073 = vmul.f32 %v3996, %v3689
      %v4074 = vmul.f32 %v4001, %v3690
      %v4075 = vmul.f32 %v4006, %v3691
      %v4076 = vmul.f32 %v4011, %v3692
      %v4141 = vunpack.c.l.b16 %v554
      %v4142 = vunpack.c.l.b16 %v555
      %v4143 = vunpack.c.l.b16 %v556
      %v4144 = vunpack.c.l.b16 %v557
      %v4145 = vunpack.c.l.b16 %v558
      %v4146 = vunpack.c.l.b16 %v559
      %v4147 = vunpack.c.l.b16 %v560
      %v4148 = vunpack.c.l.b16 %v561
      %v4149 = vunpack.c.l.b16 %v562
      %v4150 = vunpack.c.l.b16 %v563
      %v4151 = vunpack.c.l.b16 %v564
      %v4152 = vunpack.c.l.b16 %v565
      %v4153 = vunpack.c.l.b16 %v566
      %v4154 = vunpack.c.l.b16 %v567
      %v4155 = vunpack.c.l.b16 %v568
      %v4156 = vunpack.c.l.b16 %v569
      %v4157 = vunpack.c.l.b16 %v570
      %v4158 = vunpack.c.l.b16 %v571
      %v4159 = vunpack.c.l.b16 %v572
      %v4160 = vunpack.c.l.b16 %v573
      %v4161 = vunpack.c.l.b16 %v574
      %v4162 = vunpack.c.l.b16 %v575
      %v4163 = vunpack.c.l.b16 %v576
      %v4164 = vunpack.c.l.b16 %v577
      %v4165 = vunpack.c.l.b16 %v578
      %v4166 = vunpack.c.l.b16 %v579
      %v4167 = vunpack.c.l.b16 %v580
      %v4168 = vunpack.c.l.b16 %v581
      %v4169 = vunpack.c.l.b16 %v582
      %v4170 = vunpack.c.l.b16 %v583
      %v4171 = vunpack.c.l.b16 %v584
      %v4172 = vunpack.c.l.b16 %v585
      %v4173 = vunpack.c.l.b16 %v586
      %v4174 = vunpack.c.l.b16 %v587
      %v4175 = vunpack.c.l.b16 %v588
      %v4176 = vunpack.c.l.b16 %v589
      %v4177 = vunpack.c.l.b16 %v590
      %v4178 = vunpack.c.l.b16 %v591
      %v4179 = vunpack.c.l.b16 %v592
      %v4180 = vunpack.c.l.b16 %v593
      %v4181 = vunpack.c.l.b16 %v594
      %v4182 = vunpack.c.l.b16 %v595
      %v4183 = vunpack.c.l.b16 %v596
      %v4184 = vunpack.c.l.b16 %v597
      %v4185 = vunpack.c.l.b16 %v598
      %v4186 = vunpack.c.l.b16 %v599
      %v4187 = vunpack.c.l.b16 %v600
      %v4188 = vunpack.c.l.b16 %v601
      %v4189 = vunpack.c.l.b16 %v602
      %v4190 = vunpack.c.l.b16 %v603
      %v4191 = vunpack.c.l.b16 %v604
      %v4192 = vunpack.c.l.b16 %v605
      %v4193 = vunpack.c.l.b16 %v606
      %v4194 = vunpack.c.l.b16 %v607
      %v4195 = vunpack.c.l.b16 %v608
      %v4196 = vunpack.c.l.b16 %v609
      %v4197 = vunpack.c.l.b16 %v610
      %v4198 = vunpack.c.l.b16 %v611
      %v4199 = vunpack.c.l.b16 %v612
      %v4200 = vunpack.c.l.b16 %v613
      %v4201 = vunpack.c.l.b16 %v614
      %v4202 = vunpack.c.l.b16 %v615
      %v4203 = vunpack.c.l.b16 %v616
      %v4204 = vunpack.c.l.b16 %v617
      %v4205 = vpack.c.b16 %v4142, %v4141
      %v4206 = vpack.c.b16 %v4144, %v4143
      %v4207 = vpack.c.b16 %v4146, %v4145
      %v4208 = vpack.c.b16 %v4148, %v4147
      %v4209 = vpack.c.b16 %v4150, %v4149
      %v4210 = vpack.c.b16 %v4152, %v4151
      %v4211 = vpack.c.b16 %v4154, %v4153
      %v4212 = vpack.c.b16 %v4156, %v4155
      %v4213 = vpack.c.b16 %v4158, %v4157
      %v4214 = vpack.c.b16 %v4160, %v4159
      %v4215 = vpack.c.b16 %v4162, %v4161
      %v4216 = vpack.c.b16 %v4164, %v4163
      %v4217 = vpack.c.b16 %v4166, %v4165
      %v4218 = vpack.c.b16 %v4168, %v4167
      %v4219 = vpack.c.b16 %v4170, %v4169
      %v4220 = vpack.c.b16 %v4172, %v4171
      %v4221 = vpack.c.b16 %v4174, %v4173
      %v4222 = vpack.c.b16 %v4176, %v4175
      %v4223 = vpack.c.b16 %v4178, %v4177
      %v4224 = vpack.c.b16 %v4180, %v4179
      %v4225 = vpack.c.b16 %v4182, %v4181
      %v4226 = vpack.c.b16 %v4184, %v4183
      %v4227 = vpack.c.b16 %v4186, %v4185
      %v4228 = vpack.c.b16 %v4188, %v4187
      %v4229 = vpack.c.b16 %v4190, %v4189
      %v4230 = vpack.c.b16 %v4192, %v4191
      %v4231 = vpack.c.b16 %v4194, %v4193
      %v4232 = vpack.c.b16 %v4196, %v4195
      %v4233 = vpack.c.b16 %v4198, %v4197
      %v4234 = vpack.c.b16 %v4200, %v4199
      %v4235 = vpack.c.b16 %v4202, %v4201
      %v4236 = vpack.c.b16 %v4204, %v4203
      %4269 = vmatprep.subr.bf16.mxu0 0
      %4270 = vmatpush1.bf16.msra.mxu0 %v4205
      %4271 = vmatprep.subr.bf16.mxu0 0
      %4272 = vmatpush1.bf16.msra.mxu0 %v4206
      %4273 = vmatprep.subr.bf16.mxu0 0
      %4274 = vmatpush1.bf16.msra.mxu0 %v4207
      %4275 = vmatprep.subr.bf16.mxu0 0
      %4276 = vmatpush1.bf16.msra.mxu0 %v4208
      %4277 = vmatprep.subr.bf16.mxu0 0
      %4278 = vmatpush1.bf16.msra.mxu0 %v4209
      %4279 = vmatprep.subr.bf16.mxu0 0
      %4280 = vmatpush1.bf16.msra.mxu0 %v4210
      %4281 = vmatprep.subr.bf16.mxu0 0
      %4282 = vmatpush1.bf16.msra.mxu0 %v4211
      %4283 = vmatprep.subr.bf16.mxu0 0
      %4284 = vmatpush1.bf16.msra.mxu0 %v4212
      %4285 = vmatprep.subr.bf16.mxu0 0
      %4286 = vmatpush1.bf16.msra.mxu0 %v4213
      %4287 = vmatprep.subr.bf16.mxu0 0
      %4288 = vmatpush1.bf16.msra.mxu0 %v4214
      %4289 = vmatprep.subr.bf16.mxu0 0
      %4290 = vmatpush1.bf16.msra.mxu0 %v4215
      %4291 = vmatprep.subr.bf16.mxu0 0
      %4292 = vmatpush1.bf16.msra.mxu0 %v4216
      %4293 = vmatprep.subr.bf16.mxu0 0
      %4294 = vmatpush1.bf16.msra.mxu0 %v4217
      %4295 = vmatprep.subr.bf16.mxu0 0
      %4296 = vmatpush1.bf16.msra.mxu0 %v4218
      %4297 = vmatprep.subr.bf16.mxu0 0
      %4298 = vmatpush1.bf16.msra.mxu0 %v4219
      %4299 = vmatprep.subr.bf16.mxu0 0
      %4300 = vmatpush1.bf16.msra.mxu0 %v4220
      %4301 = vmatprep.mubr.bf16.mxu0 %v3250
      %4302 = vmatmul.mubr.bf16.gmra.mrb[0].mxu0 %v3247
      %v4303 = vpop.f32.mrb[0].mxu0
      %v4304 = vadd.f32 0.0, %v4303
      %v4305 = vpop.f32.mrb[0].mxu0
      %v4306 = vpop.f32.mrb[0].mxu0
      %v4307 = vadd.f32 0.0, %v4306
      %v4308 = vpop.f32.mrb[0].mxu0
      %4309 = vmatprep.mubr.bf16.mxu0 %v3262
      %4310 = vmatmul.mubr.bf16.gmra.mrb[0].mxu0 %v3259
      %v4311 = vpop.f32.mrb[0].mxu0
      %v4312 = vadd.f32 0.0, %v4311
      %v4313 = vpop.f32.mrb[0].mxu0
      %v4314 = vpop.f32.mrb[0].mxu0
      %v4315 = vadd.f32 0.0, %v4314
      %v4316 = vpop.f32.mrb[0].mxu0
      %4317 = vmatprep.mubr.bf16.mxu0 %v3274
      %4318 = vmatmul.mubr.bf16.gmra.mrb[0].mxu0 %v3271
      %v4319 = vpop.f32.mrb[0].mxu0
      %v4320 = vadd.f32 0.0, %v4319
      %v4321 = vpop.f32.mrb[0].mxu0
      %v4322 = vpop.f32.mrb[0].mxu0
      %v4323 = vadd.f32 0.0, %v4322
      %v4324 = vpop.f32.mrb[0].mxu0
      %4325 = vmatprep.mubr.bf16.mxu0 %v3286
      %4326 = vmatmul.mubr.bf16.gmra.mrb[0].mxu0 %v3283
      %v4327 = vpop.f32.mrb[0].mxu0
      %v4328 = vadd.f32 0.0, %v4327
      %v4329 = vpop.f32.mrb[0].mxu0
      %v4330 = vpop.f32.mrb[0].mxu0
      %v4331 = vadd.f32 0.0, %v4330
      %v4332 = vpop.f32.mrb[0].mxu0
      %4333 = vmatprep.mubr.bf16.mxu0 %v3298
      %4334 = vmatmul.mubr.bf16.gmra.mrb[0].mxu0 %v3295
      %v4335 = vpop.f32.mrb[0].mxu0
      %v4336 = vadd.f32 0.0, %v4335
      %v4337 = vpop.f32.mrb[0].mxu0
      %v4338 = vpop.f32.mrb[0].mxu0
      %v4339 = vadd.f32 0.0, %v4338
      %v4340 = vpop.f32.mrb[0].mxu0
      %4341 = vmatprep.mubr.bf16.mxu0 %v3310
      %4342 = vmatmul.mubr.bf16.gmra.mrb[0].mxu0 %v3307
      %v4343 = vpop.f32.mrb[0].mxu0
      %v4344 = vadd.f32 0.0, %v4343
      %v4345 = vpop.f32.mrb[0].mxu0
      %v4346 = vpop.f32.mrb[0].mxu0
      %v4347 = vadd.f32 0.0, %v4346
      %v4348 = vpop.f32.mrb[0].mxu0
      %4349 = vmatprep.mubr.bf16.mxu0 %v3322
      %4350 = vmatmul.mubr.bf16.gmra.mrb[0].mxu0 %v3319
      %v4351 = vpop.f32.mrb[0].mxu0
      %v4352 = vadd.f32 0.0, %v4351
      %v4353 = vpop.f32.mrb[0].mxu0
      %v4354 = vpop.f32.mrb[0].mxu0
      %v4355 = vadd.f32 0.0, %v4354
      %v4356 = vpop.f32.mrb[0].mxu0
      %4357 = vmatprep.mubr.bf16.mxu0 %v3334
      %4358 = vmatmul.mubr.bf16.gmra.mrb[0].mxu0 %v3331
      %v4359 = vpop.f32.mrb[0].mxu0
      %v4360 = vadd.f32 0.0, %v4359
      %v4361 = vpop.f32.mrb[0].mxu0
      %v4362 = vpop.f32.mrb[0].mxu0
      %v4363 = vadd.f32 0.0, %v4362
      %v4364 = vpop.f32.mrb[0].mxu0
      %4365 = vmatprep.mubr.bf16.mxu0 %v3346
      %4366 = vmatmul.mubr.bf16.gmra.mrb[0].mxu0 %v3343
      %v4367 = vpop.f32.mrb[0].mxu0
      %v4368 = vadd.f32 0.0, %v4367
      %v4369 = vpop.f32.mrb[0].mxu0
      %v4370 = vpop.f32.mrb[0].mxu0
      %v4371 = vadd.f32 0.0, %v4370
      %v4372 = vpop.f32.mrb[0].mxu0
      %4373 = vmatprep.mubr.bf16.mxu0 %v3358
      %4374 = vmatmul.mubr.bf16.gmra.mrb[0].mxu0 %v3355
      %v4375 = vpop.f32.mrb[0].mxu0
      %v4376 = vadd.f32 0.0, %v4375
      %v4377 = vpop.f32.mrb[0].mxu0
      %v4378 = vpop.f32.mrb[0].mxu0
      %v4379 = vadd.f32 0.0, %v4378
      %v4380 = vpop.f32.mrb[0].mxu0
      %4381 = vmatprep.mubr.bf16.mxu0 %v3370
      %4382 = vmatmul.mubr.bf16.gmra.mrb[0].mxu0 %v3367
      %v4383 = vpop.f32.mrb[0].mxu0
      %v4384 = vadd.f32 0.0, %v4383
      %v4385 = vpop.f32.mrb[0].mxu0
      %v4386 = vpop.f32.mrb[0].mxu0
      %v4387 = vadd.f32 0.0, %v4386
      %v4388 = vpop.f32.mrb[0].mxu0
      %4389 = vmatprep.mubr.bf16.mxu0 %v3382
      %4390 = vmatmul.mubr.bf16.gmra.mrb[0].mxu0 %v3379
      %v4391 = vpop.f32.mrb[0].mxu0
      %v4392 = vadd.f32 0.0, %v4391
      %v4393 = vpop.f32.mrb[0].mxu0
      %v4394 = vpop.f32.mrb[0].mxu0
      %v4395 = vadd.f32 0.0, %v4394
      %v4396 = vpop.f32.mrb[0].mxu0
      %4397 = vmatprep.mubr.bf16.mxu0 %v3394
      %4398 = vmatmul.mubr.bf16.gmra.mrb[0].mxu0 %v3391
      %v4399 = vpop.f32.mrb[0].mxu0
      %v4400 = vadd.f32 0.0, %v4399
      %v4401 = vpop.f32.mrb[0].mxu0
      %v4402 = vpop.f32.mrb[0].mxu0
      %v4403 = vadd.f32 0.0, %v4402
      %v4404 = vpop.f32.mrb[0].mxu0
      %4405 = vmatprep.mubr.bf16.mxu0 %v3406
      %4406 = vmatmul.mubr.bf16.gmra.mrb[0].mxu0 %v3403
      %v4407 = vpop.f32.mrb[0].mxu0
      %v4408 = vadd.f32 0.0, %v4407
      %v4409 = vpop.f32.mrb[0].mxu0
      %v4410 = vpop.f32.mrb[0].mxu0
      %v4411 = vadd.f32 0.0, %v4410
      %v4412 = vpop.f32.mrb[0].mxu0
      %4413 = vmatprep.mubr.bf16.mxu0 %v3418
      %4414 = vmatmul.mubr.bf16.gmra.mrb[0].mxu0 %v3415
      %v4415 = vpop.f32.mrb[0].mxu0
      %v4416 = vadd.f32 0.0, %v4415
      %v4417 = vpop.f32.mrb[0].mxu0
      %v4418 = vpop.f32.mrb[0].mxu0
      %v4419 = vadd.f32 0.0, %v4418
      %v4420 = vpop.f32.mrb[0].mxu0
      %4421 = vmatprep.mubr.bf16.mxu0 %v3430
      %4422 = vmatmul.mubr.bf16.gmra.mrb[0].mxu0 %v3427
      %v4423 = vpop.f32.mrb[0].mxu0
      %v4424 = vadd.f32 0.0, %v4423
      %v4425 = vpop.f32.mrb[0].mxu0
      %v4426 = vpop.f32.mrb[0].mxu0
      %v4427 = vadd.f32 0.0, %v4426
      %v4428 = vpop.f32.mrb[0].mxu0
      %4429 = vmatprep.mubr.bf16.mxu0 %v3442
      %4430 = vmatmul.mubr.bf16.gmra.mrb[0].mxu0 %v3439
      %v4431 = vpop.f32.mrb[0].mxu0
      %v4432 = vadd.f32 0.0, %v4431
      %v4433 = vpop.f32.mrb[0].mxu0
      %v4434 = vpop.f32.mrb[0].mxu0
      %v4435 = vadd.f32 0.0, %v4434
      %v4436 = vpop.f32.mrb[0].mxu0
      %4437 = vmatprep.mubr.bf16.mxu0 %v3454
      %4438 = vmatmul.mubr.bf16.gmra.mrb[0].mxu0 %v3451
      %v4439 = vpop.f32.mrb[0].mxu0
      %v4440 = vadd.f32 0.0, %v4439
      %v4441 = vpop.f32.mrb[0].mxu0
      %v4442 = vpop.f32.mrb[0].mxu0
      %v4443 = vadd.f32 0.0, %v4442
      %v4444 = vpop.f32.mrb[0].mxu0
      %4445 = vmatprep.mubr.bf16.mxu0 %v3466
      %4446 = vmatmul.mubr.bf16.gmra.mrb[0].mxu0 %v3463
      %v4447 = vpop.f32.mrb[0].mxu0
      %v4448 = vadd.f32 0.0, %v4447
      %v4449 = vpop.f32.mrb[0].mxu0
      %v4450 = vpop.f32.mrb[0].mxu0
      %v4451 = vadd.f32 0.0, %v4450
      %v4452 = vpop.f32.mrb[0].mxu0
      %4453 = vmatprep.mubr.bf16.mxu0 %v3478
      %4454 = vmatmul.mubr.bf16.gmra.mrb[0].mxu0 %v3475
      %v4455 = vpop.f32.mrb[0].mxu0
      %v4456 = vadd.f32 0.0, %v4455
      %v4457 = vpop.f32.mrb[0].mxu0
      %v4458 = vpop.f32.mrb[0].mxu0
      %v4459 = vadd.f32 0.0, %v4458
      %v4460 = vpop.f32.mrb[0].mxu0
      %4461 = vmatprep.mubr.bf16.mxu0 %v3490
      %4462 = vmatmul.mubr.bf16.gmra.mrb[0].mxu0 %v3487
      %v4463 = vpop.f32.mrb[0].mxu0
      %v4464 = vadd.f32 0.0, %v4463
      %v4465 = vpop.f32.mrb[0].mxu0
      %v4466 = vpop.f32.mrb[0].mxu0
      %v4467 = vadd.f32 0.0, %v4466
      %v4468 = vpop.f32.mrb[0].mxu0
      %4469 = vmatprep.mubr.bf16.mxu0 %v3502
      %4470 = vmatmul.mubr.bf16.gmra.mrb[0].mxu0 %v3499
      %v4471 = vpop.f32.mrb[0].mxu0
      %v4472 = vadd.f32 0.0, %v4471
      %v4473 = vpop.f32.mrb[0].mxu0
      %v4474 = vpop.f32.mrb[0].mxu0
      %v4475 = vadd.f32 0.0, %v4474
      %v4476 = vpop.f32.mrb[0].mxu0
      %4477 = vmatprep.mubr.bf16.mxu0 %v3514
      %4478 = vmatmul.mubr.bf16.gmra.mrb[0].mxu0 %v3511
      %v4479 = vpop.f32.mrb[0].mxu0
      %v4480 = vadd.f32 0.0, %v4479
      %v4481 = vpop.f32.mrb[0].mxu0
      %v4482 = vpop.f32.mrb[0].mxu0
      %v4483 = vadd.f32 0.0, %v4482
      %v4484 = vpop.f32.mrb[0].mxu0
      %4485 = vmatprep.mubr.bf16.mxu0 %v3526
      %4486 = vmatmul.mubr.bf16.gmra.mrb[0].mxu0 %v3523
      %v4487 = vpop.f32.mrb[0].mxu0
      %v4488 = vadd.f32 0.0, %v4487
      %v4489 = vpop.f32.mrb[0].mxu0
      %v4490 = vpop.f32.mrb[0].mxu0
      %v4491 = vadd.f32 0.0, %v4490
      %v4492 = vpop.f32.mrb[0].mxu0
      %4493 = vmatprep.mubr.bf16.mxu0 %v3538
      %4494 = vmatmul.mubr.bf16.gmra.mrb[0].mxu0 %v3535
      %v4495 = vpop.f32.mrb[0].mxu0
      %v4496 = vadd.f32 0.0, %v4495
      %v4497 = vpop.f32.mrb[0].mxu0
      %v4498 = vpop.f32.mrb[0].mxu0
      %v4499 = vadd.f32 0.0, %v4498
      %v4500 = vpop.f32.mrb[0].mxu0
      %4501 = vmatprep.mubr.bf16.mxu0 %v3550
      %4502 = vmatmul.mubr.bf16.gmra.mrb[0].mxu0 %v3547
      %v4503 = vpop.f32.mrb[0].mxu0
      %v4504 = vadd.f32 0.0, %v4503
      %v4505 = vpop.f32.mrb[0].mxu0
      %v4506 = vpop.f32.mrb[0].mxu0
      %v4507 = vadd.f32 0.0, %v4506
      %v4508 = vpop.f32.mrb[0].mxu0
      %4509 = vmatprep.mubr.bf16.mxu0 %v3562
      %4510 = vmatmul.mubr.bf16.gmra.mrb[0].mxu0 %v3559
      %v4511 = vpop.f32.mrb[0].mxu0
      %v4512 = vadd.f32 0.0, %v4511
      %v4513 = vpop.f32.mrb[0].mxu0
      %v4514 = vpop.f32.mrb[0].mxu0
      %v4515 = vadd.f32 0.0, %v4514
      %v4516 = vpop.f32.mrb[0].mxu0
      %4517 = vmatprep.mubr.bf16.mxu0 %v3574
      %4518 = vmatmul.mubr.bf16.gmra.mrb[0].mxu0 %v3571
      %v4519 = vpop.f32.mrb[0].mxu0
      %v4520 = vadd.f32 0.0, %v4519
      %v4521 = vpop.f32.mrb[0].mxu0
      %v4522 = vpop.f32.mrb[0].mxu0
      %v4523 = vadd.f32 0.0, %v4522
      %v4524 = vpop.f32.mrb[0].mxu0
      %4525 = vmatprep.mubr.bf16.mxu0 %v3586
      %4526 = vmatmul.mubr.bf16.gmra.mrb[0].mxu0 %v3583
      %v4527 = vpop.f32.mrb[0].mxu0
      %v4528 = vadd.f32 0.0, %v4527
      %v4529 = vpop.f32.mrb[0].mxu0
      %v4530 = vpop.f32.mrb[0].mxu0
      %v4531 = vadd.f32 0.0, %v4530
      %v4532 = vpop.f32.mrb[0].mxu0
      %4533 = vmatprep.mubr.bf16.mxu0 %v3598
      %4534 = vmatmul.mubr.bf16.gmra.mrb[0].mxu0 %v3595
      %v4535 = vpop.f32.mrb[0].mxu0
      %v4536 = vadd.f32 0.0, %v4535
      %v4537 = vpop.f32.mrb[0].mxu0
      %v4538 = vpop.f32.mrb[0].mxu0
      %v4539 = vadd.f32 0.0, %v4538
      %v4540 = vpop.f32.mrb[0].mxu0
      %4541 = vmatprep.mubr.bf16.mxu0 %v3610
      %4542 = vmatmul.mubr.bf16.gmra.mrb[0].mxu0 %v3607
      %v4543 = vpop.f32.mrb[0].mxu0
      %v4544 = vadd.f32 0.0, %v4543
      %v4545 = vpop.f32.mrb[0].mxu0
      %v4546 = vpop.f32.mrb[0].mxu0
      %v4547 = vadd.f32 0.0, %v4546
      %v4548 = vpop.f32.mrb[0].mxu0
      %4549 = vmatprep.mubr.bf16.mxu0 %v3622
      %4550 = vmatmul.mubr.bf16.gmra.mrb[0].mxu0 %v3619
      %v4551 = vpop.f32.mrb[0].mxu0
      %v4552 = vadd.f32 0.0, %v4551
      %v4553 = vpop.f32.mrb[0].mxu0
      %v4554 = vpop.f32.mrb[0].mxu0
      %v4555 = vadd.f32 0.0, %v4554
      %v4556 = vpop.f32.mrb[0].mxu0
      %4557 = vdwg.mxu0
      %4558 = vmatprep.subr.bf16.mxu0 0
      %4559 = vmatpush1.bf16.msra.mxu0 %v4221
      %4560 = vmatprep.subr.bf16.mxu0 0
      %4561 = vmatpush1.bf16.msra.mxu0 %v4222
      %4562 = vmatprep.subr.bf16.mxu0 0
      %4563 = vmatpush1.bf16.msra.mxu0 %v4223
      %4564 = vmatprep.subr.bf16.mxu0 0
      %4565 = vmatpush1.bf16.msra.mxu0 %v4224
      %4566 = vmatprep.subr.bf16.mxu0 0
      %4567 = vmatpush1.bf16.msra.mxu0 %v4225
      %4568 = vmatprep.subr.bf16.mxu0 0
      %4569 = vmatpush1.bf16.msra.mxu0 %v4226
      %4570 = vmatprep.subr.bf16.mxu0 0
      %4571 = vmatpush1.bf16.msra.mxu0 %v4227
      %4572 = vmatprep.subr.bf16.mxu0 0
      %4573 = vmatpush1.bf16.msra.mxu0 %v4228
      %4574 = vmatprep.subr.bf16.mxu0 0
      %4575 = vmatpush1.bf16.msra.mxu0 %v4229
      %4576 = vmatprep.subr.bf16.mxu0 0
      %4577 = vmatpush1.bf16.msra.mxu0 %v4230
      %4578 = vmatprep.subr.bf16.mxu0 0
      %4579 = vmatpush1.bf16.msra.mxu0 %v4231
      %4580 = vmatprep.subr.bf16.mxu0 0
      %4581 = vmatpush1.bf16.msra.mxu0 %v4232
      %4582 = vmatprep.subr.bf16.mxu0 0
      %4583 = vmatpush1.bf16.msra.mxu0 %v4233
      %4584 = vmatprep.subr.bf16.mxu0 0
      %4585 = vmatpush1.bf16.msra.mxu0 %v4234
      %4586 = vmatprep.subr.bf16.mxu0 0
      %4587 = vmatpush1.bf16.msra.mxu0 %v4235
      %4588 = vmatprep.subr.bf16.mxu0 0
      %4589 = vmatpush1.bf16.msra.mxu0 %v4236
      %4590 = vmatprep.mubr.bf16.mxu0 %v3256
      %4591 = vmatmul.mubr.bf16.gmra.mrb[0].mxu0 %v3253
      %v4592 = vpop.f32.mrb[0].mxu0
      %v4593 = vadd.f32 %v4304, %v4592
      %v4594 = vpop.f32.mrb[0].mxu0
      %v4595 = vpop.f32.mrb[0].mxu0
      %v4596 = vadd.f32 %v4307, %v4595
      %v4597 = vpop.f32.mrb[0].mxu0
      %4598 = vmatprep.mubr.bf16.mxu0 %v3268
      %4599 = vmatmul.mubr.bf16.gmra.mrb[0].mxu0 %v3265
      %v4600 = vpop.f32.mrb[0].mxu0
      %v4601 = vadd.f32 %v4312, %v4600
      %v4602 = vpop.f32.mrb[0].mxu0
      %v4603 = vpop.f32.mrb[0].mxu0
      %v4604 = vadd.f32 %v4315, %v4603
      %v4605 = vpop.f32.mrb[0].mxu0
      %4606 = vmatprep.mubr.bf16.mxu0 %v3280
      %4607 = vmatmul.mubr.bf16.gmra.mrb[0].mxu0 %v3277
      %v4608 = vpop.f32.mrb[0].mxu0
      %v4609 = vadd.f32 %v4320, %v4608
      %v4610 = vpop.f32.mrb[0].mxu0
      %v4611 = vpop.f32.mrb[0].mxu0
      %v4612 = vadd.f32 %v4323, %v4611
      %v4613 = vpop.f32.mrb[0].mxu0
      %4614 = vmatprep.mubr.bf16.mxu0 %v3292
      %4615 = vmatmul.mubr.bf16.gmra.mrb[0].mxu0 %v3289
      %v4616 = vpop.f32.mrb[0].mxu0
      %v4617 = vadd.f32 %v4328, %v4616
      %v4618 = vpop.f32.mrb[0].mxu0
      %v4619 = vpop.f32.mrb[0].mxu0
      %v4620 = vadd.f32 %v4331, %v4619
      %v4621 = vpop.f32.mrb[0].mxu0
      %4622 = vmatprep.mubr.bf16.mxu0 %v3304
      %4623 = vmatmul.mubr.bf16.gmra.mrb[0].mxu0 %v3301
      %v4624 = vpop.f32.mrb[0].mxu0
      %v4625 = vadd.f32 %v4336, %v4624
      %v4626 = vpop.f32.mrb[0].mxu0
      %v4627 = vpop.f32.mrb[0].mxu0
      %v4628 = vadd.f32 %v4339, %v4627
      %v4629 = vpop.f32.mrb[0].mxu0
      %4630 = vmatprep.mubr.bf16.mxu0 %v3316
      %4631 = vmatmul.mubr.bf16.gmra.mrb[0].mxu0 %v3313
      %v4632 = vpop.f32.mrb[0].mxu0
      %v4633 = vadd.f32 %v4344, %v4632
      %v4634 = vpop.f32.mrb[0].mxu0
      %v4635 = vpop.f32.mrb[0].mxu0
      %v4636 = vadd.f32 %v4347, %v4635
      %v4637 = vpop.f32.mrb[0].mxu0
      %4638 = vmatprep.mubr.bf16.mxu0 %v3328
      %4639 = vmatmul.mubr.bf16.gmra.mrb[0].mxu0 %v3325
      %v4640 = vpop.f32.mrb[0].mxu0
      %v4641 = vadd.f32 %v4352, %v4640
      %v4642 = vpop.f32.mrb[0].mxu0
      %v4643 = vpop.f32.mrb[0].mxu0
      %v4644 = vadd.f32 %v4355, %v4643
      %v4645 = vpop.f32.mrb[0].mxu0
      %4646 = vmatprep.mubr.bf16.mxu0 %v3340
      %4647 = vmatmul.mubr.bf16.gmra.mrb[0].mxu0 %v3337
      %v4648 = vpop.f32.mrb[0].mxu0
      %v4649 = vadd.f32 %v4360, %v4648
      %v4650 = vpop.f32.mrb[0].mxu0
      %v4651 = vpop.f32.mrb[0].mxu0
      %v4652 = vadd.f32 %v4363, %v4651
      %v4653 = vpop.f32.mrb[0].mxu0
      %4654 = vmatprep.mubr.bf16.mxu0 %v3352
      %4655 = vmatmul.mubr.bf16.gmra.mrb[0].mxu0 %v3349
      %v4656 = vpop.f32.mrb[0].mxu0
      %v4657 = vadd.f32 %v4368, %v4656
      %v4658 = vpop.f32.mrb[0].mxu0
      %v4659 = vpop.f32.mrb[0].mxu0
      %v4660 = vadd.f32 %v4371, %v4659
      %v4661 = vpop.f32.mrb[0].mxu0
      %4662 = vmatprep.mubr.bf16.mxu0 %v3364
      %4663 = vmatmul.mubr.bf16.gmra.mrb[0].mxu0 %v3361
      %v4664 = vpop.f32.mrb[0].mxu0
      %v4665 = vadd.f32 %v4376, %v4664
      %v4666 = vpop.f32.mrb[0].mxu0
      %v4667 = vpop.f32.mrb[0].mxu0
      %v4668 = vadd.f32 %v4379, %v4667
      %v4669 = vpop.f32.mrb[0].mxu0
      %4670 = vmatprep.mubr.bf16.mxu0 %v3376
      %4671 = vmatmul.mubr.bf16.gmra.mrb[0].mxu0 %v3373
      %v4672 = vpop.f32.mrb[0].mxu0
      %v4673 = vadd.f32 %v4384, %v4672
      %v4674 = vpop.f32.mrb[0].mxu0
      %v4675 = vpop.f32.mrb[0].mxu0
      %v4676 = vadd.f32 %v4387, %v4675
      %v4677 = vpop.f32.mrb[0].mxu0
      %4678 = vmatprep.mubr.bf16.mxu0 %v3388
      %4679 = vmatmul.mubr.bf16.gmra.mrb[0].mxu0 %v3385
      %v4680 = vpop.f32.mrb[0].mxu0
      %v4681 = vadd.f32 %v4392, %v4680
      %v4682 = vpop.f32.mrb[0].mxu0
      %v4683 = vpop.f32.mrb[0].mxu0
      %v4684 = vadd.f32 %v4395, %v4683
      %v4685 = vpop.f32.mrb[0].mxu0
      %4686 = vmatprep.mubr.bf16.mxu0 %v3400
      %4687 = vmatmul.mubr.bf16.gmra.mrb[0].mxu0 %v3397
      %v4688 = vpop.f32.mrb[0].mxu0
      %v4689 = vadd.f32 %v4400, %v4688
      %v4690 = vpop.f32.mrb[0].mxu0
      %v4691 = vpop.f32.mrb[0].mxu0
      %v4692 = vadd.f32 %v4403, %v4691
      %v4693 = vpop.f32.mrb[0].mxu0
      %4694 = vmatprep.mubr.bf16.mxu0 %v3412
      %4695 = vmatmul.mubr.bf16.gmra.mrb[0].mxu0 %v3409
      %v4696 = vpop.f32.mrb[0].mxu0
      %v4697 = vadd.f32 %v4408, %v4696
      %v4698 = vpop.f32.mrb[0].mxu0
      %v4699 = vpop.f32.mrb[0].mxu0
      %v4700 = vadd.f32 %v4411, %v4699
      %v4701 = vpop.f32.mrb[0].mxu0
      %4702 = vmatprep.mubr.bf16.mxu0 %v3424
      %4703 = vmatmul.mubr.bf16.gmra.mrb[0].mxu0 %v3421
      %v4704 = vpop.f32.mrb[0].mxu0
      %v4705 = vadd.f32 %v4416, %v4704
      %v4706 = vpop.f32.mrb[0].mxu0
      %v4707 = vpop.f32.mrb[0].mxu0
      %v4708 = vadd.f32 %v4419, %v4707
      %v4709 = vpop.f32.mrb[0].mxu0
      %4710 = vmatprep.mubr.bf16.mxu0 %v3436
      %4711 = vmatmul.mubr.bf16.gmra.mrb[0].mxu0 %v3433
      %v4712 = vpop.f32.mrb[0].mxu0
      %v4713 = vadd.f32 %v4424, %v4712
      %v4714 = vpop.f32.mrb[0].mxu0
      %v4715 = vpop.f32.mrb[0].mxu0
      %v4716 = vadd.f32 %v4427, %v4715
      %v4717 = vpop.f32.mrb[0].mxu0
      %4718 = vmatprep.mubr.bf16.mxu0 %v3448
      %4719 = vmatmul.mubr.bf16.gmra.mrb[0].mxu0 %v3445
      %v4720 = vpop.f32.mrb[0].mxu0
      %v4721 = vadd.f32 %v4432, %v4720
      %v4722 = vpop.f32.mrb[0].mxu0
      %v4723 = vpop.f32.mrb[0].mxu0
      %v4724 = vadd.f32 %v4435, %v4723
      %v4725 = vpop.f32.mrb[0].mxu0
      %4726 = vmatprep.mubr.bf16.mxu0 %v3460
      %4727 = vmatmul.mubr.bf16.gmra.mrb[0].mxu0 %v3457
      %v4728 = vpop.f32.mrb[0].mxu0
      %v4729 = vadd.f32 %v4440, %v4728
      %v4730 = vpop.f32.mrb[0].mxu0
      %v4731 = vpop.f32.mrb[0].mxu0
      %v4732 = vadd.f32 %v4443, %v4731
      %v4733 = vpop.f32.mrb[0].mxu0
      %4734 = vmatprep.mubr.bf16.mxu0 %v3472
      %4735 = vmatmul.mubr.bf16.gmra.mrb[0].mxu0 %v3469
      %v4736 = vpop.f32.mrb[0].mxu0
      %v4737 = vadd.f32 %v4448, %v4736
      %v4738 = vpop.f32.mrb[0].mxu0
      %v4739 = vpop.f32.mrb[0].mxu0
      %v4740 = vadd.f32 %v4451, %v4739
      %v4741 = vpop.f32.mrb[0].mxu0
      %4742 = vmatprep.mubr.bf16.mxu0 %v3484
      %4743 = vmatmul.mubr.bf16.gmra.mrb[0].mxu0 %v3481
      %v4744 = vpop.f32.mrb[0].mxu0
      %v4745 = vadd.f32 %v4456, %v4744
      %v4746 = vpop.f32.mrb[0].mxu0
      %v4747 = vpop.f32.mrb[0].mxu0
      %v4748 = vadd.f32 %v4459, %v4747
      %v4749 = vpop.f32.mrb[0].mxu0
      %4750 = vmatprep.mubr.bf16.mxu0 %v3496
      %4751 = vmatmul.mubr.bf16.gmra.mrb[0].mxu0 %v3493
      %v4752 = vpop.f32.mrb[0].mxu0
      %v4753 = vadd.f32 %v4464, %v4752
      %v4754 = vpop.f32.mrb[0].mxu0
      %v4755 = vpop.f32.mrb[0].mxu0
      %v4756 = vadd.f32 %v4467, %v4755
      %v4757 = vpop.f32.mrb[0].mxu0
      %4758 = vmatprep.mubr.bf16.mxu0 %v3508
      %4759 = vmatmul.mubr.bf16.gmra.mrb[0].mxu0 %v3505
      %v4760 = vpop.f32.mrb[0].mxu0
      %v4761 = vadd.f32 %v4472, %v4760
      %v4762 = vpop.f32.mrb[0].mxu0
      %v4763 = vpop.f32.mrb[0].mxu0
      %v4764 = vadd.f32 %v4475, %v4763
      %v4765 = vpop.f32.mrb[0].mxu0
      %4766 = vmatprep.mubr.bf16.mxu0 %v3520
      %4767 = vmatmul.mubr.bf16.gmra.mrb[0].mxu0 %v3517
      %v4768 = vpop.f32.mrb[0].mxu0
      %v4769 = vadd.f32 %v4480, %v4768
      %v4770 = vpop.f32.mrb[0].mxu0
      %v4771 = vpop.f32.mrb[0].mxu0
      %v4772 = vadd.f32 %v4483, %v4771
      %v4773 = vpop.f32.mrb[0].mxu0
      %4774 = vmatprep.mubr.bf16.mxu0 %v3532
      %4775 = vmatmul.mubr.bf16.gmra.mrb[0].mxu0 %v3529
      %v4776 = vpop.f32.mrb[0].mxu0
      %v4777 = vadd.f32 %v4488, %v4776
      %v4778 = vpop.f32.mrb[0].mxu0
      %v4779 = vpop.f32.mrb[0].mxu0
      %v4780 = vadd.f32 %v4491, %v4779
      %v4781 = vpop.f32.mrb[0].mxu0
      %4782 = vmatprep.mubr.bf16.mxu0 %v3544
      %4783 = vmatmul.mubr.bf16.gmra.mrb[0].mxu0 %v3541
      %v4784 = vpop.f32.mrb[0].mxu0
      %v4785 = vadd.f32 %v4496, %v4784
      %v4786 = vpop.f32.mrb[0].mxu0
      %v4787 = vpop.f32.mrb[0].mxu0
      %v4788 = vadd.f32 %v4499, %v4787
      %v4789 = vpop.f32.mrb[0].mxu0
      %4790 = vmatprep.mubr.bf16.mxu0 %v3556
      %4791 = vmatmul.mubr.bf16.gmra.mrb[0].mxu0 %v3553
      %v4792 = vpop.f32.mrb[0].mxu0
      %v4793 = vadd.f32 %v4504, %v4792
      %v4794 = vpop.f32.mrb[0].mxu0
      %v4795 = vpop.f32.mrb[0].mxu0
      %v4796 = vadd.f32 %v4507, %v4795
      %v4797 = vpop.f32.mrb[0].mxu0
      %4798 = vmatprep.mubr.bf16.mxu0 %v3568
      %4799 = vmatmul.mubr.bf16.gmra.mrb[0].mxu0 %v3565
      %v4800 = vpop.f32.mrb[0].mxu0
      %v4801 = vadd.f32 %v4512, %v4800
      %v4802 = vpop.f32.mrb[0].mxu0
      %v4803 = vpop.f32.mrb[0].mxu0
      %v4804 = vadd.f32 %v4515, %v4803
      %v4805 = vpop.f32.mrb[0].mxu0
      %4806 = vmatprep.mubr.bf16.mxu0 %v3580
      %4807 = vmatmul.mubr.bf16.gmra.mrb[0].mxu0 %v3577
      %v4808 = vpop.f32.mrb[0].mxu0
      %v4809 = vadd.f32 %v4520, %v4808
      %v4810 = vpop.f32.mrb[0].mxu0
      %v4811 = vpop.f32.mrb[0].mxu0
      %v4812 = vadd.f32 %v4523, %v4811
      %v4813 = vpop.f32.mrb[0].mxu0
      %4814 = vmatprep.mubr.bf16.mxu0 %v3592
      %4815 = vmatmul.mubr.bf16.gmra.mrb[0].mxu0 %v3589
      %v4816 = vpop.f32.mrb[0].mxu0
      %v4817 = vadd.f32 %v4528, %v4816
      %v4818 = vpop.f32.mrb[0].mxu0
      %v4819 = vpop.f32.mrb[0].mxu0
      %v4820 = vadd.f32 %v4531, %v4819
      %v4821 = vpop.f32.mrb[0].mxu0
      %4822 = vmatprep.mubr.bf16.mxu0 %v3604
      %4823 = vmatmul.mubr.bf16.gmra.mrb[0].mxu0 %v3601
      %v4824 = vpop.f32.mrb[0].mxu0
      %v4825 = vadd.f32 %v4536, %v4824
      %v4826 = vpop.f32.mrb[0].mxu0
      %v4827 = vpop.f32.mrb[0].mxu0
      %v4828 = vadd.f32 %v4539, %v4827
      %v4829 = vpop.f32.mrb[0].mxu0
      %4830 = vmatprep.mubr.bf16.mxu0 %v3616
      %4831 = vmatmul.mubr.bf16.gmra.mrb[0].mxu0 %v3613
      %v4832 = vpop.f32.mrb[0].mxu0
      %v4833 = vadd.f32 %v4544, %v4832
      %v4834 = vpop.f32.mrb[0].mxu0
      %v4835 = vpop.f32.mrb[0].mxu0
      %v4836 = vadd.f32 %v4547, %v4835
      %v4837 = vpop.f32.mrb[0].mxu0
      %4838 = vmatprep.mubr.bf16.mxu0 %v3628
      %4839 = vmatmul.mubr.bf16.gmra.mrb[0].mxu0 %v3625
      %v4840 = vpop.f32.mrb[0].mxu0
      %v4841 = vadd.f32 %v4552, %v4840
      %v4842 = vpop.f32.mrb[0].mxu0
      %v4843 = vpop.f32.mrb[0].mxu0
      %v4844 = vadd.f32 %v4555, %v4843
      %v4845 = vpop.f32.mrb[0].mxu0
      %4846 = vdwg.mxu0
      %v4847 = vadd.f32 %v4013, %v4593
      %v4848 = vadd.f32 %v4014, %v4596
      %v4849 = vadd.f32 %v4015, %v4601
      %v4850 = vadd.f32 %v4016, %v4604
      %v4851 = vadd.f32 %v4017, %v4609
      %v4852 = vadd.f32 %v4018, %v4612
      %v4853 = vadd.f32 %v4019, %v4617
      %v4854 = vadd.f32 %v4020, %v4620
      %v4855 = vadd.f32 %v4021, %v4625
      %v4856 = vadd.f32 %v4022, %v4628
      %v4857 = vadd.f32 %v4023, %v4633
      %v4858 = vadd.f32 %v4024, %v4636
      %v4859 = vadd.f32 %v4025, %v4641
      %v4860 = vadd.f32 %v4026, %v4644
      %v4861 = vadd.f32 %v4027, %v4649
      %v4862 = vadd.f32 %v4028, %v4652
      %v4863 = vadd.f32 %v4029, %v4657
      %v4864 = vadd.f32 %v4030, %v4660
      %v4865 = vadd.f32 %v4031, %v4665
      %v4866 = vadd.f32 %v4032, %v4668
      %v4867 = vadd.f32 %v4033, %v4673
      %v4868 = vadd.f32 %v4034, %v4676
      %v4869 = vadd.f32 %v4035, %v4681
      %v4870 = vadd.f32 %v4036, %v4684
      %v4871 = vadd.f32 %v4037, %v4689
      %v4872 = vadd.f32 %v4038, %v4692
      %v4873 = vadd.f32 %v4039, %v4697
      %v4874 = vadd.f32 %v4040, %v4700
      %v4875 = vadd.f32 %v4041, %v4705
      %v4876 = vadd.f32 %v4042, %v4708
      %v4877 = vadd.f32 %v4043, %v4713
      %v4878 = vadd.f32 %v4044, %v4716
      %v4879 = vadd.f32 %v4045, %v4721
      %v4880 = vadd.f32 %v4046, %v4724
      %v4881 = vadd.f32 %v4047, %v4729
      %v4882 = vadd.f32 %v4048, %v4732
      %v4883 = vadd.f32 %v4049, %v4737
      %v4884 = vadd.f32 %v4050, %v4740
      %v4885 = vadd.f32 %v4051, %v4745
      %v4886 = vadd.f32 %v4052, %v4748
      %v4887 = vadd.f32 %v4053, %v4753
      %v4888 = vadd.f32 %v4054, %v4756
      %v4889 = vadd.f32 %v4055, %v4761
      %v4890 = vadd.f32 %v4056, %v4764
      %v4891 = vadd.f32 %v4057, %v4769
      %v4892 = vadd.f32 %v4058, %v4772
      %v4893 = vadd.f32 %v4059, %v4777
      %v4894 = vadd.f32 %v4060, %v4780
      %v4895 = vadd.f32 %v4061, %v4785
      %v4896 = vadd.f32 %v4062, %v4788
      %v4897 = vadd.f32 %v4063, %v4793
      %v4898 = vadd.f32 %v4064, %v4796
      %v4899 = vadd.f32 %v4065, %v4801
      %v4900 = vadd.f32 %v4066, %v4804
      %v4901 = vadd.f32 %v4067, %v4809
      %v4902 = vadd.f32 %v4068, %v4812
      %v4903 = vadd.f32 %v4069, %v4817
      %v4904 = vadd.f32 %v4070, %v4820
      %v4905 = vadd.f32 %v4071, %v4825
      %v4906 = vadd.f32 %v4072, %v4828
      %v4907 = vadd.f32 %v4073, %v4833
      %v4908 = vadd.f32 %v4074, %v4836
      %v4909 = vadd.f32 %v4075, %v4841
      %v4910 = vadd.f32 %v4076, %v4844
      %vm4911 = vcmask 269312
      %4912 = vst.msk [vmem:[#allocation3] sm:$0xff] %vm4911, %v4847
      %4913 = vst.msk [vmem:[#allocation3 + $0x8] sm:$0xff] %vm4911, %v4848
      %4914 = vst.msk [vmem:[#allocation3 + $0x10] sm:$0xff] %vm4911, %v4849
      %4915 = vst.msk [vmem:[#allocation3 + $0x18] sm:$0xff] %vm4911, %v4850
      %4916 = vst.msk [vmem:[#allocation3 + $0x20] sm:$0xff] %vm4911, %v4851
      %4917 = vst.msk [vmem:[#allocation3 + $0x28] sm:$0xff] %vm4911, %v4852
      %4918 = vst.msk [vmem:[#allocation3 + $0x30] sm:$0xff] %vm4911, %v4853
      %4919 = vst.msk [vmem:[#allocation3 + $0x38] sm:$0xff] %vm4911, %v4854
      %4920 = vst.msk [vmem:[#allocation3 + $0x40] sm:$0xff] %vm4911, %v4855
      %4921 = vst.msk [vmem:[#allocation3 + $0x48] sm:$0xff] %vm4911, %v4856
      %4922 = vst.msk [vmem:[#allocation3 + $0x50] sm:$0xff] %vm4911, %v4857
      %4923 = vst.msk [vmem:[#allocation3 + $0x58] sm:$0xff] %vm4911, %v4858
      %4924 = vst.msk [vmem:[#allocation3 + $0x60] sm:$0xff] %vm4911, %v4859
      %4925 = vst.msk [vmem:[#allocation3 + $0x68] sm:$0xff] %vm4911, %v4860
      %4926 = vst.msk [vmem:[#allocation3 + $0x70] sm:$0xff] %vm4911, %v4861
      %4927 = vst.msk [vmem:[#allocation3 + $0x78] sm:$0xff] %vm4911, %v4862
      %4928 = vst.msk [vmem:[#allocation3 + $0x80] sm:$0xff] %vm4911, %v4863
      %4929 = vst.msk [vmem:[#allocation3 + $0x88] sm:$0xff] %vm4911, %v4864
      %4930 = vst.msk [vmem:[#allocation3 + $0x90] sm:$0xff] %vm4911, %v4865
      %4931 = vst.msk [vmem:[#allocation3 + $0x98] sm:$0xff] %vm4911, %v4866
      %4932 = vst.msk [vmem:[#allocation3 + $0xa0] sm:$0xff] %vm4911, %v4867
      %4933 = vst.msk [vmem:[#allocation3 + $0xa8] sm:$0xff] %vm4911, %v4868
      %4934 = vst.msk [vmem:[#allocation3 + $0xb0] sm:$0xff] %vm4911, %v4869
      %4935 = vst.msk [vmem:[#allocation3 + $0xb8] sm:$0xff] %vm4911, %v4870
      %4936 = vst.msk [vmem:[#allocation3 + $0xc0] sm:$0xff] %vm4911, %v4871
      %4937 = vst.msk [vmem:[#allocation3 + $0xc8] sm:$0xff] %vm4911, %v4872
      %4938 = vst.msk [vmem:[#allocation3 + $0xd0] sm:$0xff] %vm4911, %v4873
      %4939 = vst.msk [vmem:[#allocation3 + $0xd8] sm:$0xff] %vm4911, %v4874
      %4940 = vst.msk [vmem:[#allocation3 + $0xe0] sm:$0xff] %vm4911, %v4875
      %4941 = vst.msk [vmem:[#allocation3 + $0xe8] sm:$0xff] %vm4911, %v4876
      %4942 = vst.msk [vmem:[#allocation3 + $0xf0] sm:$0xff] %vm4911, %v4877
      %4943 = vst.msk [vmem:[#allocation3 + $0xf8] sm:$0xff] %vm4911, %v4878
      %4944 = vst.msk [vmem:[#allocation3 + $0x100] sm:$0xff] %vm4911, %v4879
      %4945 = vst.msk [vmem:[#allocation3 + $0x108] sm:$0xff] %vm4911, %v4880
      %4946 = vst.msk [vmem:[#allocation3 + $0x110] sm:$0xff] %vm4911, %v4881
      %4947 = vst.msk [vmem:[#allocation3 + $0x118] sm:$0xff] %vm4911, %v4882
      %4948 = vst.msk [vmem:[#allocation3 + $0x120] sm:$0xff] %vm4911, %v4883
      %4949 = vst.msk [vmem:[#allocation3 + $0x128] sm:$0xff] %vm4911, %v4884
      %4950 = vst.msk [vmem:[#allocation3 + $0x130] sm:$0xff] %vm4911, %v4885
      %4951 = vst.msk [vmem:[#allocation3 + $0x138] sm:$0xff] %vm4911, %v4886
      %4952 = vst.msk [vmem:[#allocation3 + $0x140] sm:$0xff] %vm4911, %v4887
      %4953 = vst.msk [vmem:[#allocation3 + $0x148] sm:$0xff] %vm4911, %v4888
      %4954 = vst.msk [vmem:[#allocation3 + $0x150] sm:$0xff] %vm4911, %v4889
      %4955 = vst.msk [vmem:[#allocation3 + $0x158] sm:$0xff] %vm4911, %v4890
      %4956 = vst.msk [vmem:[#allocation3 + $0x160] sm:$0xff] %vm4911, %v4891
      %4957 = vst.msk [vmem:[#allocation3 + $0x168] sm:$0xff] %vm4911, %v4892
      %4958 = vst.msk [vmem:[#allocation3 + $0x170] sm:$0xff] %vm4911, %v4893
      %4959 = vst.msk [vmem:[#allocation3 + $0x178] sm:$0xff] %vm4911, %v4894
      %4960 = vst.msk [vmem:[#allocation3 + $0x180] sm:$0xff] %vm4911, %v4895
      %4961 = vst.msk [vmem:[#allocation3 + $0x188] sm:$0xff] %vm4911, %v4896
      %4962 = vst.msk [vmem:[#allocation3 + $0x190] sm:$0xff] %vm4911, %v4897
      %4963 = vst.msk [vmem:[#allocation3 + $0x198] sm:$0xff] %vm4911, %v4898
      %4964 = vst.msk [vmem:[#allocation3 + $0x1a0] sm:$0xff] %vm4911, %v4899
      %4965 = vst.msk [vmem:[#allocation3 + $0x1a8] sm:$0xff] %vm4911, %v4900
      %4966 = vst.msk [vmem:[#allocation3 + $0x1b0] sm:$0xff] %vm4911, %v4901
      %4967 = vst.msk [vmem:[#allocation3 + $0x1b8] sm:$0xff] %vm4911, %v4902
      %4968 = vst.msk [vmem:[#allocation3 + $0x1c0] sm:$0xff] %vm4911, %v4903
      %4969 = vst.msk [vmem:[#allocation3 + $0x1c8] sm:$0xff] %vm4911, %v4904
      %4970 = vst.msk [vmem:[#allocation3 + $0x1d0] sm:$0xff] %vm4911, %v4905
      %4971 = vst.msk [vmem:[#allocation3 + $0x1d8] sm:$0xff] %vm4911, %v4906
      %4972 = vst.msk [vmem:[#allocation3 + $0x1e0] sm:$0xff] %vm4911, %v4907
      %4973 = vst.msk [vmem:[#allocation3 + $0x1e8] sm:$0xff] %vm4911, %v4908
      %4974 = vst.msk [vmem:[#allocation3 + $0x1f0] sm:$0xff] %vm4911, %v4909
      %4975 = vst.msk [vmem:[#allocation3 + $0x1f8] sm:$0xff] %vm4911, %v4910
      %vm4976 = vcmask 7168
      %4977 = vst.msk [vmem:[#allocation2] sm:$0xff] %vm4976, %v2285
      %4978 = vst.msk [vmem:[#allocation2 + $0x8] sm:$0xff] %vm4976, %v2286
      %4979 = vst.msk [vmem:[#allocation2 + $0x10] sm:$0xff] %vm4976, %v2287
      %4980 = vst.msk [vmem:[#allocation2 + $0x18] sm:$0xff] %vm4976, %v2288
      %4981 = vst.msk [vmem:[#allocation2 + $0x20] sm:$0xff] %vm4976, %v2289
      %4982 = vst.msk [vmem:[#allocation2 + $0x28] sm:$0xff] %vm4976, %v2290
      %4983 = vst.msk [vmem:[#allocation2 + $0x30] sm:$0xff] %vm4976, %v2291
      %4984 = vst.msk [vmem:[#allocation2 + $0x38] sm:$0xff] %vm4976, %v2292
      %4985 = vst.msk [vmem:[#allocation2 + $0x40] sm:$0xff] %vm4976, %v2293
      %4986 = vst.msk [vmem:[#allocation2 + $0x48] sm:$0xff] %vm4976, %v2294
      %4987 = vst.msk [vmem:[#allocation2 + $0x50] sm:$0xff] %vm4976, %v2295
      %4988 = vst.msk [vmem:[#allocation2 + $0x58] sm:$0xff] %vm4976, %v2296
      %4989 = vst.msk [vmem:[#allocation2 + $0x60] sm:$0xff] %vm4976, %v2297
      %4990 = vst.msk [vmem:[#allocation2 + $0x68] sm:$0xff] %vm4976, %v2298
      %4991 = vst.msk [vmem:[#allocation2 + $0x70] sm:$0xff] %vm4976, %v2299
      %4992 = vst.msk [vmem:[#allocation2 + $0x78] sm:$0xff] %vm4976, %v2300
      %4993 = vst.msk [vmem:[#allocation2 + $0x80] sm:$0xff] %vm4976, %v2301
      %4994 = vst.msk [vmem:[#allocation2 + $0x88] sm:$0xff] %vm4976, %v2302
      %4995 = vst.msk [vmem:[#allocation2 + $0x90] sm:$0xff] %vm4976, %v2303
      %4996 = vst.msk [vmem:[#allocation2 + $0x98] sm:$0xff] %vm4976, %v2304
      %4997 = vst.msk [vmem:[#allocation2 + $0xa0] sm:$0xff] %vm4976, %v2305
      %4998 = vst.msk [vmem:[#allocation2 + $0xa8] sm:$0xff] %vm4976, %v2306
      %4999 = vst.msk [vmem:[#allocation2 + $0xb0] sm:$0xff] %vm4976, %v2307
      %5000 = vst.msk [vmem:[#allocation2 + $0xb8] sm:$0xff] %vm4976, %v2308
      %5001 = vst.msk [vmem:[#allocation2 + $0xc0] sm:$0xff] %vm4976, %v2309
      %5002 = vst.msk [vmem:[#allocation2 + $0xc8] sm:$0xff] %vm4976, %v2310
      %5003 = vst.msk [vmem:[#allocation2 + $0xd0] sm:$0xff] %vm4976, %v2311
      %5004 = vst.msk [vmem:[#allocation2 + $0xd8] sm:$0xff] %vm4976, %v2312
      %5005 = vst.msk [vmem:[#allocation2 + $0xe0] sm:$0xff] %vm4976, %v2313
      %5006 = vst.msk [vmem:[#allocation2 + $0xe8] sm:$0xff] %vm4976, %v2314
      %5007 = vst.msk [vmem:[#allocation2 + $0xf0] sm:$0xff] %vm4976, %v2315
      %5008 = vst.msk [vmem:[#allocation2 + $0xf8] sm:$0xff] %vm4976, %v2316
      %5009 = vst.msk [vmem:[#allocation2 + $0x100] sm:$0xff] %vm4976, %v2317
      %5010 = vst.msk [vmem:[#allocation2 + $0x108] sm:$0xff] %vm4976, %v2318
      %5011 = vst.msk [vmem:[#allocation2 + $0x110] sm:$0xff] %vm4976, %v2319
      %5012 = vst.msk [vmem:[#allocation2 + $0x118] sm:$0xff] %vm4976, %v2320
      %5013 = vst.msk [vmem:[#allocation2 + $0x120] sm:$0xff] %vm4976, %v2321
      %5014 = vst.msk [vmem:[#allocation2 + $0x128] sm:$0xff] %vm4976, %v2322
      %5015 = vst.msk [vmem:[#allocation2 + $0x130] sm:$0xff] %vm4976, %v2323
      %5016 = vst.msk [vmem:[#allocation2 + $0x138] sm:$0xff] %vm4976, %v2324
      %5017 = vst.msk [vmem:[#allocation2 + $0x140] sm:$0xff] %vm4976, %v2325
      %5018 = vst.msk [vmem:[#allocation2 + $0x148] sm:$0xff] %vm4976, %v2326
      %5019 = vst.msk [vmem:[#allocation2 + $0x150] sm:$0xff] %vm4976, %v2327
      %5020 = vst.msk [vmem:[#allocation2 + $0x158] sm:$0xff] %vm4976, %v2328
      %5021 = vst.msk [vmem:[#allocation2 + $0x160] sm:$0xff] %vm4976, %v2329
      %5022 = vst.msk [vmem:[#allocation2 + $0x168] sm:$0xff] %vm4976, %v2330
      %5023 = vst.msk [vmem:[#allocation2 + $0x170] sm:$0xff] %vm4976, %v2331
      %5024 = vst.msk [vmem:[#allocation2 + $0x178] sm:$0xff] %vm4976, %v2332
      %5025 = vst.msk [vmem:[#allocation2 + $0x180] sm:$0xff] %vm4976, %v2333
      %5026 = vst.msk [vmem:[#allocation2 + $0x188] sm:$0xff] %vm4976, %v2334
      %5027 = vst.msk [vmem:[#allocation2 + $0x190] sm:$0xff] %vm4976, %v2335
      %5028 = vst.msk [vmem:[#allocation2 + $0x198] sm:$0xff] %vm4976, %v2336
      %5029 = vst.msk [vmem:[#allocation2 + $0x1a0] sm:$0xff] %vm4976, %v2337
      %5030 = vst.msk [vmem:[#allocation2 + $0x1a8] sm:$0xff] %vm4976, %v2338
      %5031 = vst.msk [vmem:[#allocation2 + $0x1b0] sm:$0xff] %vm4976, %v2339
      %5032 = vst.msk [vmem:[#allocation2 + $0x1b8] sm:$0xff] %vm4976, %v2340
      %5033 = vst.msk [vmem:[#allocation2 + $0x1c0] sm:$0xff] %vm4976, %v2341
      %5034 = vst.msk [vmem:[#allocation2 + $0x1c8] sm:$0xff] %vm4976, %v2342
      %5035 = vst.msk [vmem:[#allocation2 + $0x1d0] sm:$0xff] %vm4976, %v2343
      %5036 = vst.msk [vmem:[#allocation2 + $0x1d8] sm:$0xff] %vm4976, %v2344
      %5037 = vst.msk [vmem:[#allocation2 + $0x1e0] sm:$0xff] %vm4976, %v2345
      %5038 = vst.msk [vmem:[#allocation2 + $0x1e8] sm:$0xff] %vm4976, %v2346
      %5039 = vst.msk [vmem:[#allocation2 + $0x1f0] sm:$0xff] %vm4976, %v2347
      %5040 = vst.msk [vmem:[#allocation2 + $0x1f8] sm:$0xff] %vm4976, %v2348
      // Predicated region
      $region45: #{tpu_custom_call.1} parent=39 // pred_check
        %p5041 = pneg %p349
      $region46: #{tpu_custom_call.1} parent=39 // pred_check_branch
        %5043 = sbr.rel (%p5041) target = $region48
      $region47: #{tpu_custom_call.1} parent=39 // pred_region
        %v5044 = vld [vmem:[#allocation3] sm:$0xff]
        %v5045 = vld [vmem:[#allocation3 + $0x8] sm:$0xff]
        %v5046 = vld [vmem:[#allocation3 + $0x10] sm:$0xff]
        %v5047 = vld [vmem:[#allocation3 + $0x18] sm:$0xff]
        %v5048 = vld [vmem:[#allocation3 + $0x20] sm:$0xff]
        %v5049 = vld [vmem:[#allocation3 + $0x28] sm:$0xff]
        %v5050 = vld [vmem:[#allocation3 + $0x30] sm:$0xff]
        %v5051 = vld [vmem:[#allocation3 + $0x38] sm:$0xff]
        %v5052 = vld [vmem:[#allocation3 + $0x40] sm:$0xff]
        %v5053 = vld [vmem:[#allocation3 + $0x48] sm:$0xff]
        %v5054 = vld [vmem:[#allocation3 + $0x50] sm:$0xff]
        %v5055 = vld [vmem:[#allocation3 + $0x58] sm:$0xff]
        %v5056 = vld [vmem:[#allocation3 + $0x60] sm:$0xff]
        %v5057 = vld [vmem:[#allocation3 + $0x68] sm:$0xff]
        %v5058 = vld [vmem:[#allocation3 + $0x70] sm:$0xff]
        %v5059 = vld [vmem:[#allocation3 + $0x78] sm:$0xff]
        %v5060 = vld [vmem:[#allocation3 + $0x80] sm:$0xff]
        %v5061 = vld [vmem:[#allocation3 + $0x88] sm:$0xff]
        %v5062 = vld [vmem:[#allocation3 + $0x90] sm:$0xff]
        %v5063 = vld [vmem:[#allocation3 + $0x98] sm:$0xff]
        %v5064 = vld [vmem:[#allocation3 + $0xa0] sm:$0xff]
        %v5065 = vld [vmem:[#allocation3 + $0xa8] sm:$0xff]
        %v5066 = vld [vmem:[#allocation3 + $0xb0] sm:$0xff]
        %v5067 = vld [vmem:[#allocation3 + $0xb8] sm:$0xff]
        %v5068 = vld [vmem:[#allocation3 + $0xc0] sm:$0xff]
        %v5069 = vld [vmem:[#allocation3 + $0xc8] sm:$0xff]
        %v5070 = vld [vmem:[#allocation3 + $0xd0] sm:$0xff]
        %v5071 = vld [vmem:[#allocation3 + $0xd8] sm:$0xff]
        %v5072 = vld [vmem:[#allocation3 + $0xe0] sm:$0xff]
        %v5073 = vld [vmem:[#allocation3 + $0xe8] sm:$0xff]
        %v5074 = vld [vmem:[#allocation3 + $0xf0] sm:$0xff]
        %v5075 = vld [vmem:[#allocation3 + $0xf8] sm:$0xff]
        %v5076 = vld [vmem:[#allocation3 + $0x100] sm:$0xff]
        %v5077 = vld [vmem:[#allocation3 + $0x108] sm:$0xff]
        %v5078 = vld [vmem:[#allocation3 + $0x110] sm:$0xff]
        %v5079 = vld [vmem:[#allocation3 + $0x118] sm:$0xff]
        %v5080 = vld [vmem:[#allocation3 + $0x120] sm:$0xff]
        %v5081 = vld [vmem:[#allocation3 + $0x128] sm:$0xff]
        %v5082 = vld [vmem:[#allocation3 + $0x130] sm:$0xff]
        %v5083 = vld [vmem:[#allocation3 + $0x138] sm:$0xff]
        %v5084 = vld [vmem:[#allocation3 + $0x140] sm:$0xff]
        %v5085 = vld [vmem:[#allocation3 + $0x148] sm:$0xff]
        %v5086 = vld [vmem:[#allocation3 + $0x150] sm:$0xff]
        %v5087 = vld [vmem:[#allocation3 + $0x158] sm:$0xff]
        %v5088 = vld [vmem:[#allocation3 + $0x160] sm:$0xff]
        %v5089 = vld [vmem:[#allocation3 + $0x168] sm:$0xff]
        %v5090 = vld [vmem:[#allocation3 + $0x170] sm:$0xff]
        %v5091 = vld [vmem:[#allocation3 + $0x178] sm:$0xff]
        %v5092 = vld [vmem:[#allocation3 + $0x180] sm:$0xff]
        %v5093 = vld [vmem:[#allocation3 + $0x188] sm:$0xff]
        %v5094 = vld [vmem:[#allocation3 + $0x190] sm:$0xff]
        %v5095 = vld [vmem:[#allocation3 + $0x198] sm:$0xff]
        %v5096 = vld [vmem:[#allocation3 + $0x1a0] sm:$0xff]
        %v5097 = vld [vmem:[#allocation3 + $0x1a8] sm:$0xff]
        %v5098 = vld [vmem:[#allocation3 + $0x1b0] sm:$0xff]
        %v5099 = vld [vmem:[#allocation3 + $0x1b8] sm:$0xff]
        %v5100 = vld [vmem:[#allocation3 + $0x1c0] sm:$0xff]
        %v5101 = vld [vmem:[#allocation3 + $0x1c8] sm:$0xff]
        %v5102 = vld [vmem:[#allocation3 + $0x1d0] sm:$0xff]
        %v5103 = vld [vmem:[#allocation3 + $0x1d8] sm:$0xff]
        %v5104 = vld [vmem:[#allocation3 + $0x1e0] sm:$0xff]
        %v5105 = vld [vmem:[#allocation3 + $0x1e8] sm:$0xff]
        %v5106 = vld [vmem:[#allocation3 + $0x1f0] sm:$0xff]
        %v5107 = vld [vmem:[#allocation3 + $0x1f8] sm:$0xff]
        %5109 = vset.pattern.permute.xlu0 32
        %5110 = vperm.xlu0 %5109, %v5044
        %v5111 = vpop.permute.xlu0 %5110
        %5114 = vset.pattern.permute.xlu0 32
        %5115 = vperm.xlu0 %5114, %v5045
        %v5116 = vpop.permute.xlu0 %5115
        %5119 = vset.pattern.permute.xlu0 32
        %5120 = vperm.xlu0 %5119, %v5046
        %v5121 = vpop.permute.xlu0 %5120
        %5124 = vset.pattern.permute.xlu0 32
        %5125 = vperm.xlu0 %5124, %v5047
        %v5126 = vpop.permute.xlu0 %5125
        %5129 = vset.pattern.permute.xlu0 32
        %5130 = vperm.xlu0 %5129, %v5048
        %v5131 = vpop.permute.xlu0 %5130
        %5134 = vset.pattern.permute.xlu0 32
        %5135 = vperm.xlu0 %5134, %v5049
        %v5136 = vpop.permute.xlu0 %5135
        %5139 = vset.pattern.permute.xlu0 32
        %5140 = vperm.xlu0 %5139, %v5050
        %v5141 = vpop.permute.xlu0 %5140
        %5144 = vset.pattern.permute.xlu0 32
        %5145 = vperm.xlu0 %5144, %v5051
        %v5146 = vpop.permute.xlu0 %5145
        %5149 = vset.pattern.permute.xlu0 32
        %5150 = vperm.xlu0 %5149, %v5052
        %v5151 = vpop.permute.xlu0 %5150
        %5154 = vset.pattern.permute.xlu0 32
        %5155 = vperm.xlu0 %5154, %v5053
        %v5156 = vpop.permute.xlu0 %5155
        %5159 = vset.pattern.permute.xlu0 32
        %5160 = vperm.xlu0 %5159, %v5054
        %v5161 = vpop.permute.xlu0 %5160
        %5164 = vset.pattern.permute.xlu0 32
        %5165 = vperm.xlu0 %5164, %v5055
        %v5166 = vpop.permute.xlu0 %5165
        %5169 = vset.pattern.permute.xlu0 32
        %5170 = vperm.xlu0 %5169, %v5056
        %v5171 = vpop.permute.xlu0 %5170
        %5174 = vset.pattern.permute.xlu0 32
        %5175 = vperm.xlu0 %5174, %v5057
        %v5176 = vpop.permute.xlu0 %5175
        %5179 = vset.pattern.permute.xlu0 32
        %5180 = vperm.xlu0 %5179, %v5058
        %v5181 = vpop.permute.xlu0 %5180
        %5184 = vset.pattern.permute.xlu0 32
        %5185 = vperm.xlu0 %5184, %v5059
        %v5186 = vpop.permute.xlu0 %5185
        %5189 = vset.pattern.permute.xlu0 32
        %5190 = vperm.xlu0 %5189, %v5060
        %v5191 = vpop.permute.xlu0 %5190
        %5194 = vset.pattern.permute.xlu0 32
        %5195 = vperm.xlu0 %5194, %v5061
        %v5196 = vpop.permute.xlu0 %5195
        %5199 = vset.pattern.permute.xlu0 32
        %5200 = vperm.xlu0 %5199, %v5062
        %v5201 = vpop.permute.xlu0 %5200
        %5204 = vset.pattern.permute.xlu0 32
        %5205 = vperm.xlu0 %5204, %v5063
        %v5206 = vpop.permute.xlu0 %5205
        %5209 = vset.pattern.permute.xlu0 32
        %5210 = vperm.xlu0 %5209, %v5064
        %v5211 = vpop.permute.xlu0 %5210
        %5214 = vset.pattern.permute.xlu0 32
        %5215 = vperm.xlu0 %5214, %v5065
        %v5216 = vpop.permute.xlu0 %5215
        %5219 = vset.pattern.permute.xlu0 32
        %5220 = vperm.xlu0 %5219, %v5066
        %v5221 = vpop.permute.xlu0 %5220
        %5224 = vset.pattern.permute.xlu0 32
        %5225 = vperm.xlu0 %5224, %v5067
        %v5226 = vpop.permute.xlu0 %5225
        %5229 = vset.pattern.permute.xlu0 32
        %5230 = vperm.xlu0 %5229, %v5068
        %v5231 = vpop.permute.xlu0 %5230
        %5234 = vset.pattern.permute.xlu0 32
        %5235 = vperm.xlu0 %5234, %v5069
        %v5236 = vpop.permute.xlu0 %5235
        %5239 = vset.pattern.permute.xlu0 32
        %5240 = vperm.xlu0 %5239, %v5070
        %v5241 = vpop.permute.xlu0 %5240
        %5244 = vset.pattern.permute.xlu0 32
        %5245 = vperm.xlu0 %5244, %v5071
        %v5246 = vpop.permute.xlu0 %5245
        %5249 = vset.pattern.permute.xlu0 32
        %5250 = vperm.xlu0 %5249, %v5072
        %v5251 = vpop.permute.xlu0 %5250
        %5254 = vset.pattern.permute.xlu0 32
        %5255 = vperm.xlu0 %5254, %v5073
        %v5256 = vpop.permute.xlu0 %5255
        %5259 = vset.pattern.permute.xlu0 32
        %5260 = vperm.xlu0 %5259, %v5074
        %v5261 = vpop.permute.xlu0 %5260
        %5264 = vset.pattern.permute.xlu0 32
        %5265 = vperm.xlu0 %5264, %v5075
        %v5266 = vpop.permute.xlu0 %5265
        %5269 = vset.pattern.permute.xlu0 32
        %5270 = vperm.xlu0 %5269, %v5076
        %v5271 = vpop.permute.xlu0 %5270
        %5274 = vset.pattern.permute.xlu0 32
        %5275 = vperm.xlu0 %5274, %v5077
        %v5276 = vpop.permute.xlu0 %5275
        %5279 = vset.pattern.permute.xlu0 32
        %5280 = vperm.xlu0 %5279, %v5078
        %v5281 = vpop.permute.xlu0 %5280
        %5284 = vset.pattern.permute.xlu0 32
        %5285 = vperm.xlu0 %5284, %v5079
        %v5286 = vpop.permute.xlu0 %5285
        %5289 = vset.pattern.permute.xlu0 32
        %5290 = vperm.xlu0 %5289, %v5080
        %v5291 = vpop.permute.xlu0 %5290
        %5294 = vset.pattern.permute.xlu0 32
        %5295 = vperm.xlu0 %5294, %v5081
        %v5296 = vpop.permute.xlu0 %5295
        %5299 = vset.pattern.permute.xlu0 32
        %5300 = vperm.xlu0 %5299, %v5082
        %v5301 = vpop.permute.xlu0 %5300
        %5304 = vset.pattern.permute.xlu0 32
        %5305 = vperm.xlu0 %5304, %v5083
        %v5306 = vpop.permute.xlu0 %5305
        %5309 = vset.pattern.permute.xlu0 32
        %5310 = vperm.xlu0 %5309, %v5084
        %v5311 = vpop.permute.xlu0 %5310
        %5314 = vset.pattern.permute.xlu0 32
        %5315 = vperm.xlu0 %5314, %v5085
        %v5316 = vpop.permute.xlu0 %5315
        %5319 = vset.pattern.permute.xlu0 32
        %5320 = vperm.xlu0 %5319, %v5086
        %v5321 = vpop.permute.xlu0 %5320
        %5324 = vset.pattern.permute.xlu0 32
        %5325 = vperm.xlu0 %5324, %v5087
        %v5326 = vpop.permute.xlu0 %5325
        %5329 = vset.pattern.permute.xlu0 32
        %5330 = vperm.xlu0 %5329, %v5088
        %v5331 = vpop.permute.xlu0 %5330
        %5334 = vset.pattern.permute.xlu0 32
        %5335 = vperm.xlu0 %5334, %v5089
        %v5336 = vpop.permute.xlu0 %5335
        %5339 = vset.pattern.permute.xlu0 32
        %5340 = vperm.xlu0 %5339, %v5090
        %v5341 = vpop.permute.xlu0 %5340
        %5344 = vset.pattern.permute.xlu0 32
        %5345 = vperm.xlu0 %5344, %v5091
        %v5346 = vpop.permute.xlu0 %5345
        %5349 = vset.pattern.permute.xlu0 32
        %5350 = vperm.xlu0 %5349, %v5092
        %v5351 = vpop.permute.xlu0 %5350
        %5354 = vset.pattern.permute.xlu0 32
        %5355 = vperm.xlu0 %5354, %v5093
        %v5356 = vpop.permute.xlu0 %5355
        %5359 = vset.pattern.permute.xlu0 32
        %5360 = vperm.xlu0 %5359, %v5094
        %v5361 = vpop.permute.xlu0 %5360
        %5364 = vset.pattern.permute.xlu0 32
        %5365 = vperm.xlu0 %5364, %v5095
        %v5366 = vpop.permute.xlu0 %5365
        %5369 = vset.pattern.permute.xlu0 32
        %5370 = vperm.xlu0 %5369, %v5096
        %v5371 = vpop.permute.xlu0 %5370
        %5374 = vset.pattern.permute.xlu0 32
        %5375 = vperm.xlu0 %5374, %v5097
        %v5376 = vpop.permute.xlu0 %5375
        %5379 = vset.pattern.permute.xlu0 32
        %5380 = vperm.xlu0 %5379, %v5098
        %v5381 = vpop.permute.xlu0 %5380
        %5384 = vset.pattern.permute.xlu0 32
        %5385 = vperm.xlu0 %5384, %v5099
        %v5386 = vpop.permute.xlu0 %5385
        %5389 = vset.pattern.permute.xlu0 32
        %5390 = vperm.xlu0 %5389, %v5100
        %v5391 = vpop.permute.xlu0 %5390
        %5394 = vset.pattern.permute.xlu0 32
        %5395 = vperm.xlu0 %5394, %v5101
        %v5396 = vpop.permute.xlu0 %5395
        %5399 = vset.pattern.permute.xlu0 32
        %5400 = vperm.xlu0 %5399, %v5102
        %v5401 = vpop.permute.xlu0 %5400
        %5404 = vset.pattern.permute.xlu0 32
        %5405 = vperm.xlu0 %5404, %v5103
        %v5406 = vpop.permute.xlu0 %5405
        %5409 = vset.pattern.permute.xlu0 32
        %5410 = vperm.xlu0 %5409, %v5104
        %v5411 = vpop.permute.xlu0 %5410
        %5414 = vset.pattern.permute.xlu0 32
        %5415 = vperm.xlu0 %5414, %v5105
        %v5416 = vpop.permute.xlu0 %5415
        %5419 = vset.pattern.permute.xlu0 32
        %5420 = vperm.xlu0 %5419, %v5106
        %v5421 = vpop.permute.xlu0 %5420
        %5424 = vset.pattern.permute.xlu0 32
        %5425 = vperm.xlu0 %5424, %v5107
        %v5426 = vpop.permute.xlu0 %5425
        %v5428 = vrcp.pop %v5111
        %v5429 = vmul.f32 %v5044, %v5428
        %v5430 = vrcp.pop %v5116
        %v5431 = vmul.f32 %v5045, %v5430
        %v5432 = vrcp.pop %v5121
        %v5433 = vmul.f32 %v5046, %v5432
        %v5434 = vrcp.pop %v5126
        %v5435 = vmul.f32 %v5047, %v5434
        %v5436 = vrcp.pop %v5131
        %v5437 = vmul.f32 %v5048, %v5436
        %v5438 = vrcp.pop %v5136
        %v5439 = vmul.f32 %v5049, %v5438
        %v5440 = vrcp.pop %v5141
        %v5441 = vmul.f32 %v5050, %v5440
        %v5442 = vrcp.pop %v5146
        %v5443 = vmul.f32 %v5051, %v5442
        %v5444 = vrcp.pop %v5151
        %v5445 = vmul.f32 %v5052, %v5444
        %v5446 = vrcp.pop %v5156
        %v5447 = vmul.f32 %v5053, %v5446
        %v5448 = vrcp.pop %v5161
        %v5449 = vmul.f32 %v5054, %v5448
        %v5450 = vrcp.pop %v5166
        %v5451 = vmul.f32 %v5055, %v5450
        %v5452 = vrcp.pop %v5171
        %v5453 = vmul.f32 %v5056, %v5452
        %v5454 = vrcp.pop %v5176
        %v5455 = vmul.f32 %v5057, %v5454
        %v5456 = vrcp.pop %v5181
        %v5457 = vmul.f32 %v5058, %v5456
        %v5458 = vrcp.pop %v5186
        %v5459 = vmul.f32 %v5059, %v5458
        %v5460 = vrcp.pop %v5191
        %v5461 = vmul.f32 %v5060, %v5460
        %v5462 = vrcp.pop %v5196
        %v5463 = vmul.f32 %v5061, %v5462
        %v5464 = vrcp.pop %v5201
        %v5465 = vmul.f32 %v5062, %v5464
        %v5466 = vrcp.pop %v5206
        %v5467 = vmul.f32 %v5063, %v5466
        %v5468 = vrcp.pop %v5211
        %v5469 = vmul.f32 %v5064, %v5468
        %v5470 = vrcp.pop %v5216
        %v5471 = vmul.f32 %v5065, %v5470
        %v5472 = vrcp.pop %v5221
        %v5473 = vmul.f32 %v5066, %v5472
        %v5474 = vrcp.pop %v5226
        %v5475 = vmul.f32 %v5067, %v5474
        %v5476 = vrcp.pop %v5231
        %v5477 = vmul.f32 %v5068, %v5476
        %v5478 = vrcp.pop %v5236
        %v5479 = vmul.f32 %v5069, %v5478
        %v5480 = vrcp.pop %v5241
        %v5481 = vmul.f32 %v5070, %v5480
        %v5482 = vrcp.pop %v5246
        %v5483 = vmul.f32 %v5071, %v5482
        %v5484 = vrcp.pop %v5251
        %v5485 = vmul.f32 %v5072, %v5484
        %v5486 = vrcp.pop %v5256
        %v5487 = vmul.f32 %v5073, %v5486
        %v5488 = vrcp.pop %v5261
        %v5489 = vmul.f32 %v5074, %v5488
        %v5490 = vrcp.pop %v5266
        %v5491 = vmul.f32 %v5075, %v5490
        %v5492 = vrcp.pop %v5271
        %v5493 = vmul.f32 %v5076, %v5492
        %v5494 = vrcp.pop %v5276
        %v5495 = vmul.f32 %v5077, %v5494
        %v5496 = vrcp.pop %v5281
        %v5497 = vmul.f32 %v5078, %v5496
        %v5498 = vrcp.pop %v5286
        %v5499 = vmul.f32 %v5079, %v5498
        %v5500 = vrcp.pop %v5291
        %v5501 = vmul.f32 %v5080, %v5500
        %v5502 = vrcp.pop %v5296
        %v5503 = vmul.f32 %v5081, %v5502
        %v5504 = vrcp.pop %v5301
        %v5505 = vmul.f32 %v5082, %v5504
        %v5506 = vrcp.pop %v5306
        %v5507 = vmul.f32 %v5083, %v5506
        %v5508 = vrcp.pop %v5311
        %v5509 = vmul.f32 %v5084, %v5508
        %v5510 = vrcp.pop %v5316
        %v5511 = vmul.f32 %v5085, %v5510
        %v5512 = vrcp.pop %v5321
        %v5513 = vmul.f32 %v5086, %v5512
        %v5514 = vrcp.pop %v5326
        %v5515 = vmul.f32 %v5087, %v5514
        %v5516 = vrcp.pop %v5331
        %v5517 = vmul.f32 %v5088, %v5516
        %v5518 = vrcp.pop %v5336
        %v5519 = vmul.f32 %v5089, %v5518
        %v5520 = vrcp.pop %v5341
        %v5521 = vmul.f32 %v5090, %v5520
        %v5522 = vrcp.pop %v5346
        %v5523 = vmul.f32 %v5091, %v5522
        %v5524 = vrcp.pop %v5351
        %v5525 = vmul.f32 %v5092, %v5524
        %v5526 = vrcp.pop %v5356
        %v5527 = vmul.f32 %v5093, %v5526
        %v5528 = vrcp.pop %v5361
        %v5529 = vmul.f32 %v5094, %v5528
        %v5530 = vrcp.pop %v5366
        %v5531 = vmul.f32 %v5095, %v5530
        %v5532 = vrcp.pop %v5371
        %v5533 = vmul.f32 %v5096, %v5532
        %v5534 = vrcp.pop %v5376
        %v5535 = vmul.f32 %v5097, %v5534
        %v5536 = vrcp.pop %v5381
        %v5537 = vmul.f32 %v5098, %v5536
        %v5538 = vrcp.pop %v5386
        %v5539 = vmul.f32 %v5099, %v5538
        %v5540 = vrcp.pop %v5391
        %v5541 = vmul.f32 %v5100, %v5540
        %v5542 = vrcp.pop %v5396
        %v5543 = vmul.f32 %v5101, %v5542
        %v5544 = vrcp.pop %v5401
        %v5545 = vmul.f32 %v5102, %v5544
        %v5546 = vrcp.pop %v5406
        %v5547 = vmul.f32 %v5103, %v5546
        %v5548 = vrcp.pop %v5411
        %v5549 = vmul.f32 %v5104, %v5548
        %v5550 = vrcp.pop %v5416
        %v5551 = vmul.f32 %v5105, %v5550
        %v5552 = vrcp.pop %v5421
        %v5553 = vmul.f32 %v5106, %v5552
        %v5554 = vrcp.pop %v5426
        %v5555 = vmul.f32 %v5107, %v5554
        %s5556 = sld [smem:[#allocation4]]
        %v5557 = vstv %s5556
        %v5558 = vmul.f32 %v5557, %v5429
        %v5559 = vmul.f32 %v5557, %v5431
        %v5560 = vmul.f32 %v5557, %v5433
        %v5561 = vmul.f32 %v5557, %v5435
        %v5562 = vmul.f32 %v5557, %v5437
        %v5563 = vmul.f32 %v5557, %v5439
        %v5564 = vmul.f32 %v5557, %v5441
        %v5565 = vmul.f32 %v5557, %v5443
        %v5566 = vmul.f32 %v5557, %v5445
        %v5567 = vmul.f32 %v5557, %v5447
        %v5568 = vmul.f32 %v5557, %v5449
        %v5569 = vmul.f32 %v5557, %v5451
        %v5570 = vmul.f32 %v5557, %v5453
        %v5571 = vmul.f32 %v5557, %v5455
        %v5572 = vmul.f32 %v5557, %v5457
        %v5573 = vmul.f32 %v5557, %v5459
        %v5574 = vmul.f32 %v5557, %v5461
        %v5575 = vmul.f32 %v5557, %v5463
        %v5576 = vmul.f32 %v5557, %v5465
        %v5577 = vmul.f32 %v5557, %v5467
        %v5578 = vmul.f32 %v5557, %v5469
        %v5579 = vmul.f32 %v5557, %v5471
        %v5580 = vmul.f32 %v5557, %v5473
        %v5581 = vmul.f32 %v5557, %v5475
        %v5582 = vmul.f32 %v5557, %v5477
        %v5583 = vmul.f32 %v5557, %v5479
        %v5584 = vmul.f32 %v5557, %v5481
        %v5585 = vmul.f32 %v5557, %v5483
        %v5586 = vmul.f32 %v5557, %v5485
        %v5587 = vmul.f32 %v5557, %v5487
        %v5588 = vmul.f32 %v5557, %v5489
        %v5589 = vmul.f32 %v5557, %v5491
        %v5590 = vmul.f32 %v5557, %v5493
        %v5591 = vmul.f32 %v5557, %v5495
        %v5592 = vmul.f32 %v5557, %v5497
        %v5593 = vmul.f32 %v5557, %v5499
        %v5594 = vmul.f32 %v5557, %v5501
        %v5595 = vmul.f32 %v5557, %v5503
        %v5596 = vmul.f32 %v5557, %v5505
        %v5597 = vmul.f32 %v5557, %v5507
        %v5598 = vmul.f32 %v5557, %v5509
        %v5599 = vmul.f32 %v5557, %v5511
        %v5600 = vmul.f32 %v5557, %v5513
        %v5601 = vmul.f32 %v5557, %v5515
        %v5602 = vmul.f32 %v5557, %v5517
        %v5603 = vmul.f32 %v5557, %v5519
        %v5604 = vmul.f32 %v5557, %v5521
        %v5605 = vmul.f32 %v5557, %v5523
        %v5606 = vmul.f32 %v5557, %v5525
        %v5607 = vmul.f32 %v5557, %v5527
        %v5608 = vmul.f32 %v5557, %v5529
        %v5609 = vmul.f32 %v5557, %v5531
        %v5610 = vmul.f32 %v5557, %v5533
        %v5611 = vmul.f32 %v5557, %v5535
        %v5612 = vmul.f32 %v5557, %v5537
        %v5613 = vmul.f32 %v5557, %v5539
        %v5614 = vmul.f32 %v5557, %v5541
        %v5615 = vmul.f32 %v5557, %v5543
        %v5616 = vmul.f32 %v5557, %v5545
        %v5617 = vmul.f32 %v5557, %v5547
        %v5618 = vmul.f32 %v5557, %v5549
        %v5619 = vmul.f32 %v5557, %v5551
        %v5620 = vmul.f32 %v5557, %v5553
        %v5621 = vmul.f32 %v5557, %v5555
        %v5622 = vld [vmem:[%s316] sm:$0xff]
        %v5623 = vld [vmem:[%s316 + $0x8] sm:$0xff]
        %v5624 = vld [vmem:[%s316 + $0x10] sm:$0xff]
        %v5625 = vld [vmem:[%s316 + $0x18] sm:$0xff]
        %v5626 = vld [vmem:[%s316 + $0x20] sm:$0xff]
        %v5627 = vld [vmem:[%s316 + $0x28] sm:$0xff]
        %v5628 = vld [vmem:[%s316 + $0x30] sm:$0xff]
        %v5629 = vld [vmem:[%s316 + $0x38] sm:$0xff]
        %v5630 = vld [vmem:[%s316 + $0x40] sm:$0xff]
        %v5631 = vld [vmem:[%s316 + $0x48] sm:$0xff]
        %v5632 = vld [vmem:[%s316 + $0x50] sm:$0xff]
        %v5633 = vld [vmem:[%s316 + $0x58] sm:$0xff]
        %v5634 = vld [vmem:[%s316 + $0x60] sm:$0xff]
        %v5635 = vld [vmem:[%s316 + $0x68] sm:$0xff]
        %v5636 = vld [vmem:[%s316 + $0x70] sm:$0xff]
        %v5637 = vld [vmem:[%s316 + $0x78] sm:$0xff]
        %v5638 = vld [vmem:[%s316 + $0x80] sm:$0xff]
        %v5639 = vld [vmem:[%s316 + $0x88] sm:$0xff]
        %v5640 = vld [vmem:[%s316 + $0x90] sm:$0xff]
        %v5641 = vld [vmem:[%s316 + $0x98] sm:$0xff]
        %v5642 = vld [vmem:[%s316 + $0xa0] sm:$0xff]
        %v5643 = vld [vmem:[%s316 + $0xa8] sm:$0xff]
        %v5644 = vld [vmem:[%s316 + $0xb0] sm:$0xff]
        %v5645 = vld [vmem:[%s316 + $0xb8] sm:$0xff]
        %v5646 = vld [vmem:[%s316 + $0xc0] sm:$0xff]
        %v5647 = vld [vmem:[%s316 + $0xc8] sm:$0xff]
        %v5648 = vld [vmem:[%s316 + $0xd0] sm:$0xff]
        %v5649 = vld [vmem:[%s316 + $0xd8] sm:$0xff]
        %v5650 = vld [vmem:[%s316 + $0xe0] sm:$0xff]
        %v5651 = vld [vmem:[%s316 + $0xe8] sm:$0xff]
        %v5652 = vld [vmem:[%s316 + $0xf0] sm:$0xff]
        %v5653 = vld [vmem:[%s316 + $0xf8] sm:$0xff]
        %v5654 = vld [vmem:[%s316 + $0x100] sm:$0xff]
        %v5655 = vld [vmem:[%s316 + $0x108] sm:$0xff]
        %v5656 = vld [vmem:[%s316 + $0x110] sm:$0xff]
        %v5657 = vld [vmem:[%s316 + $0x118] sm:$0xff]
        %v5658 = vld [vmem:[%s316 + $0x120] sm:$0xff]
        %v5659 = vld [vmem:[%s316 + $0x128] sm:$0xff]
        %v5660 = vld [vmem:[%s316 + $0x130] sm:$0xff]
        %v5661 = vld [vmem:[%s316 + $0x138] sm:$0xff]
        %v5662 = vld [vmem:[%s316 + $0x140] sm:$0xff]
        %v5663 = vld [vmem:[%s316 + $0x148] sm:$0xff]
        %v5664 = vld [vmem:[%s316 + $0x150] sm:$0xff]
        %v5665 = vld [vmem:[%s316 + $0x158] sm:$0xff]
        %v5666 = vld [vmem:[%s316 + $0x160] sm:$0xff]
        %v5667 = vld [vmem:[%s316 + $0x168] sm:$0xff]
        %v5668 = vld [vmem:[%s316 + $0x170] sm:$0xff]
        %v5669 = vld [vmem:[%s316 + $0x178] sm:$0xff]
        %v5670 = vld [vmem:[%s316 + $0x180] sm:$0xff]
        %v5671 = vld [vmem:[%s316 + $0x188] sm:$0xff]
        %v5672 = vld [vmem:[%s316 + $0x190] sm:$0xff]
        %v5673 = vld [vmem:[%s316 + $0x198] sm:$0xff]
        %v5674 = vld [vmem:[%s316 + $0x1a0] sm:$0xff]
        %v5675 = vld [vmem:[%s316 + $0x1a8] sm:$0xff]
        %v5676 = vld [vmem:[%s316 + $0x1b0] sm:$0xff]
        %v5677 = vld [vmem:[%s316 + $0x1b8] sm:$0xff]
        %v5678 = vld [vmem:[%s316 + $0x1c0] sm:$0xff]
        %v5679 = vld [vmem:[%s316 + $0x1c8] sm:$0xff]
        %v5680 = vld [vmem:[%s316 + $0x1d0] sm:$0xff]
        %v5681 = vld [vmem:[%s316 + $0x1d8] sm:$0xff]
        %v5682 = vld [vmem:[%s316 + $0x1e0] sm:$0xff]
        %v5683 = vld [vmem:[%s316 + $0x1e8] sm:$0xff]
        %v5684 = vld [vmem:[%s316 + $0x1f0] sm:$0xff]
        %v5685 = vld [vmem:[%s316 + $0x1f8] sm:$0xff]
        %v5686 = vadd.f32 %v5558, %v5622
        %v5687 = vadd.f32 %v5559, %v5623
        %v5688 = vadd.f32 %v5560, %v5624
        %v5689 = vadd.f32 %v5561, %v5625
        %v5690 = vadd.f32 %v5562, %v5626
        %v5691 = vadd.f32 %v5563, %v5627
        %v5692 = vadd.f32 %v5564, %v5628
        %v5693 = vadd.f32 %v5565, %v5629
        %v5694 = vadd.f32 %v5566, %v5630
        %v5695 = vadd.f32 %v5567, %v5631
        %v5696 = vadd.f32 %v5568, %v5632
        %v5697 = vadd.f32 %v5569, %v5633
        %v5698 = vadd.f32 %v5570, %v5634
        %v5699 = vadd.f32 %v5571, %v5635
        %v5700 = vadd.f32 %v5572, %v5636
        %v5701 = vadd.f32 %v5573, %v5637
        %v5702 = vadd.f32 %v5574, %v5638
        %v5703 = vadd.f32 %v5575, %v5639
        %v5704 = vadd.f32 %v5576, %v5640
        %v5705 = vadd.f32 %v5577, %v5641
        %v5706 = vadd.f32 %v5578, %v5642
        %v5707 = vadd.f32 %v5579, %v5643
        %v5708 = vadd.f32 %v5580, %v5644
        %v5709 = vadd.f32 %v5581, %v5645
        %v5710 = vadd.f32 %v5582, %v5646
        %v5711 = vadd.f32 %v5583, %v5647
        %v5712 = vadd.f32 %v5584, %v5648
        %v5713 = vadd.f32 %v5585, %v5649
        %v5714 = vadd.f32 %v5586, %v5650
        %v5715 = vadd.f32 %v5587, %v5651
        %v5716 = vadd.f32 %v5588, %v5652
        %v5717 = vadd.f32 %v5589, %v5653
        %v5718 = vadd.f32 %v5590, %v5654
        %v5719 = vadd.f32 %v5591, %v5655
        %v5720 = vadd.f32 %v5592, %v5656
        %v5721 = vadd.f32 %v5593, %v5657
        %v5722 = vadd.f32 %v5594, %v5658
        %v5723 = vadd.f32 %v5595, %v5659
        %v5724 = vadd.f32 %v5596, %v5660
        %v5725 = vadd.f32 %v5597, %v5661
        %v5726 = vadd.f32 %v5598, %v5662
        %v5727 = vadd.f32 %v5599, %v5663
        %v5728 = vadd.f32 %v5600, %v5664
        %v5729 = vadd.f32 %v5601, %v5665
        %v5730 = vadd.f32 %v5602, %v5666
        %v5731 = vadd.f32 %v5603, %v5667
        %v5732 = vadd.f32 %v5604, %v5668
        %v5733 = vadd.f32 %v5605, %v5669
        %v5734 = vadd.f32 %v5606, %v5670
        %v5735 = vadd.f32 %v5607, %v5671
        %v5736 = vadd.f32 %v5608, %v5672
        %v5737 = vadd.f32 %v5609, %v5673
        %v5738 = vadd.f32 %v5610, %v5674
        %v5739 = vadd.f32 %v5611, %v5675
        %v5740 = vadd.f32 %v5612, %v5676
        %v5741 = vadd.f32 %v5613, %v5677
        %v5742 = vadd.f32 %v5614, %v5678
        %v5743 = vadd.f32 %v5615, %v5679
        %v5744 = vadd.f32 %v5616, %v5680
        %v5745 = vadd.f32 %v5617, %v5681
        %v5746 = vadd.f32 %v5618, %v5682
        %v5747 = vadd.f32 %v5619, %v5683
        %v5748 = vadd.f32 %v5620, %v5684
        %v5749 = vadd.f32 %v5621, %v5685
        %vm5750 = vcmask 261120
        %5751 = vst.msk [vmem:[%s346] sm:$0xff] %vm5750, %v5686
        %5752 = vst.msk [vmem:[%s346 + $0x8] sm:$0xff] %vm5750, %v5687
        %5753 = vst.msk [vmem:[%s346 + $0x10] sm:$0xff] %vm5750, %v5688
        %5754 = vst.msk [vmem:[%s346 + $0x18] sm:$0xff] %vm5750, %v5689
        %5755 = vst.msk [vmem:[%s346 + $0x20] sm:$0xff] %vm5750, %v5690
        %5756 = vst.msk [vmem:[%s346 + $0x28] sm:$0xff] %vm5750, %v5691
        %5757 = vst.msk [vmem:[%s346 + $0x30] sm:$0xff] %vm5750, %v5692
        %5758 = vst.msk [vmem:[%s346 + $0x38] sm:$0xff] %vm5750, %v5693
        %5759 = vst.msk [vmem:[%s346 + $0x40] sm:$0xff] %vm5750, %v5694
        %5760 = vst.msk [vmem:[%s346 + $0x48] sm:$0xff] %vm5750, %v5695
        %5761 = vst.msk [vmem:[%s346 + $0x50] sm:$0xff] %vm5750, %v5696
        %5762 = vst.msk [vmem:[%s346 + $0x58] sm:$0xff] %vm5750, %v5697
        %5763 = vst.msk [vmem:[%s346 + $0x60] sm:$0xff] %vm5750, %v5698
        %5764 = vst.msk [vmem:[%s346 + $0x68] sm:$0xff] %vm5750, %v5699
        %5765 = vst.msk [vmem:[%s346 + $0x70] sm:$0xff] %vm5750, %v5700
        %5766 = vst.msk [vmem:[%s346 + $0x78] sm:$0xff] %vm5750, %v5701
        %5767 = vst.msk [vmem:[%s346 + $0x80] sm:$0xff] %vm5750, %v5702
        %5768 = vst.msk [vmem:[%s346 + $0x88] sm:$0xff] %vm5750, %v5703
        %5769 = vst.msk [vmem:[%s346 + $0x90] sm:$0xff] %vm5750, %v5704
        %5770 = vst.msk [vmem:[%s346 + $0x98] sm:$0xff] %vm5750, %v5705
        %5771 = vst.msk [vmem:[%s346 + $0xa0] sm:$0xff] %vm5750, %v5706
        %5772 = vst.msk [vmem:[%s346 + $0xa8] sm:$0xff] %vm5750, %v5707
        %5773 = vst.msk [vmem:[%s346 + $0xb0] sm:$0xff] %vm5750, %v5708
        %5774 = vst.msk [vmem:[%s346 + $0xb8] sm:$0xff] %vm5750, %v5709
        %5775 = vst.msk [vmem:[%s346 + $0xc0] sm:$0xff] %vm5750, %v5710
        %5776 = vst.msk [vmem:[%s346 + $0xc8] sm:$0xff] %vm5750, %v5711
        %5777 = vst.msk [vmem:[%s346 + $0xd0] sm:$0xff] %vm5750, %v5712
        %5778 = vst.msk [vmem:[%s346 + $0xd8] sm:$0xff] %vm5750, %v5713
        %5779 = vst.msk [vmem:[%s346 + $0xe0] sm:$0xff] %vm5750, %v5714
        %5780 = vst.msk [vmem:[%s346 + $0xe8] sm:$0xff] %vm5750, %v5715
        %5781 = vst.msk [vmem:[%s346 + $0xf0] sm:$0xff] %vm5750, %v5716
        %5782 = vst.msk [vmem:[%s346 + $0xf8] sm:$0xff] %vm5750, %v5717
        %5783 = vst.msk [vmem:[%s346 + $0x100] sm:$0xff] %vm5750, %v5718
        %5784 = vst.msk [vmem:[%s346 + $0x108] sm:$0xff] %vm5750, %v5719
        %5785 = vst.msk [vmem:[%s346 + $0x110] sm:$0xff] %vm5750, %v5720
        %5786 = vst.msk [vmem:[%s346 + $0x118] sm:$0xff] %vm5750, %v5721
        %5787 = vst.msk [vmem:[%s346 + $0x120] sm:$0xff] %vm5750, %v5722
        %5788 = vst.msk [vmem:[%s346 + $0x128] sm:$0xff] %vm5750, %v5723
        %5789 = vst.msk [vmem:[%s346 + $0x130] sm:$0xff] %vm5750, %v5724
        %5790 = vst.msk [vmem:[%s346 + $0x138] sm:$0xff] %vm5750, %v5725
        %5791 = vst.msk [vmem:[%s346 + $0x140] sm:$0xff] %vm5750, %v5726
        %5792 = vst.msk [vmem:[%s346 + $0x148] sm:$0xff] %vm5750, %v5727
        %5793 = vst.msk [vmem:[%s346 + $0x150] sm:$0xff] %vm5750, %v5728
        %5794 = vst.msk [vmem:[%s346 + $0x158] sm:$0xff] %vm5750, %v5729
        %5795 = vst.msk [vmem:[%s346 + $0x160] sm:$0xff] %vm5750, %v5730
        %5796 = vst.msk [vmem:[%s346 + $0x168] sm:$0xff] %vm5750, %v5731
        %5797 = vst.msk [vmem:[%s346 + $0x170] sm:$0xff] %vm5750, %v5732
        %5798 = vst.msk [vmem:[%s346 + $0x178] sm:$0xff] %vm5750, %v5733
        %5799 = vst.msk [vmem:[%s346 + $0x180] sm:$0xff] %vm5750, %v5734
        %5800 = vst.msk [vmem:[%s346 + $0x188] sm:$0xff] %vm5750, %v5735
        %5801 = vst.msk [vmem:[%s346 + $0x190] sm:$0xff] %vm5750, %v5736
        %5802 = vst.msk [vmem:[%s346 + $0x198] sm:$0xff] %vm5750, %v5737
        %5803 = vst.msk [vmem:[%s346 + $0x1a0] sm:$0xff] %vm5750, %v5738
        %5804 = vst.msk [vmem:[%s346 + $0x1a8] sm:$0xff] %vm5750, %v5739
        %5805 = vst.msk [vmem:[%s346 + $0x1b0] sm:$0xff] %vm5750, %v5740
        %5806 = vst.msk [vmem:[%s346 + $0x1b8] sm:$0xff] %vm5750, %v5741
        %5807 = vst.msk [vmem:[%s346 + $0x1c0] sm:$0xff] %vm5750, %v5742
        %5808 = vst.msk [vmem:[%s346 + $0x1c8] sm:$0xff] %vm5750, %v5743
        %5809 = vst.msk [vmem:[%s346 + $0x1d0] sm:$0xff] %vm5750, %v5744
        %5810 = vst.msk [vmem:[%s346 + $0x1d8] sm:$0xff] %vm5750, %v5745
        %5811 = vst.msk [vmem:[%s346 + $0x1e0] sm:$0xff] %vm5750, %v5746
        %5812 = vst.msk [vmem:[%s346 + $0x1e8] sm:$0xff] %vm5750, %v5747
        %5813 = vst.msk [vmem:[%s346 + $0x1f0] sm:$0xff] %vm5750, %v5748
        %5814 = vst.msk [vmem:[%s346 + $0x1f8] sm:$0xff] %vm5750, %v5749
      $region48: #{tpu_custom_call.1} parent=39 // pred_fallthru
        _
      %s5815 = smul.u32 64, %s23
      %p5816 = scmp.lt.s32.totalorder %s22, 1
      %s5817 = scalar_select %p5816, %s22, 1
      %p5818 = scmp.lt.s32.totalorder %s5815, 63
      %s5819 = scalar_select %p5818, %s5815, 63
      %s5820 = smul.addr %s5817, 64
      %s5821 = sadd.s32 %s5819, %s5820
      %s5822 = smul.addr %s5821, 8
      %s5823 = scalar_lea.vmem %s5, %s5822
      // Predicated region
      $region49: #{tpu_custom_call.1} parent=39 // pred_check
        %p5824 = pneg %p185
      $region50: #{tpu_custom_call.1} parent=39 // pred_check_branch
        %5826 = sbr.rel (%p5824) target = $region52
      $region51: #{tpu_custom_call.1} parent=39 // pred_region
        %s5827 = smul.u32 64, %s23
      $region52: #{tpu_custom_call.1} parent=39 // pred_fallthru
        _
    $region40: #{tpu_custom_call.1} parent=5 // pred_fallthru
      _
    %p5828 = scmp.le.s32.totalorder 2, %s12
    // Predicated region
    $region53: #{tpu_custom_call.1} parent=5 // pred_check
      %p5829 = pneg %p5828
    $region54: #{tpu_custom_call.1} parent=5 // pred_check_branch
      %5831 = sbr.rel (%p5829) target = $region56
    $region55: #{tpu_custom_call.1} parent=5 // pred_region
      %s5832 = ssub.s32 %s12, 2
      // Predicated region
      $region57: #{tpu_custom_call.1} parent=55 // pred_check
        %p5833 = pneg %p191
      $region58: #{tpu_custom_call.1} parent=55 // pred_check_branch
        %5835 = sbr.rel (%p5833) target = $region60
      $region59: #{tpu_custom_call.1} parent=55 // pred_region
        %s5836 = smul.u32 64, %s26
        %p5837 = scmp.lt.s32.totalorder %s25, 1
        %s5838 = scalar_select %p5837, %s25, 1
        %p5839 = scmp.lt.s32.totalorder %s5836, 63
        %s5840 = scalar_select %p5839, %s5836, 63
        %s5841 = smul.addr %s5838, 64
        %s5842 = sadd.s32 %s5840, %s5841
        %s5843 = smul.addr %s5842, 8
        %s5844 = scalar_lea.vmem %s5, %s5843
      $region60: #{tpu_custom_call.1} parent=55 // pred_fallthru
        _
    $region56: #{tpu_custom_call.1} parent=5 // pred_fallthru
      _
  $region6: #{tpu_custom_call.1} parent=0 // loop_footer
    %s16 = sadd.s32 1, %s12
  $region7: #{tpu_custom_call.1} parent=0 // loop_footer_branch
    %11 = sbr.rel target = $region3
  $region8: #{tpu_custom_call.1} parent=0 // loop_exit
    _

</llo_original>
